<compile_context>
chip_gen: v7x
topology: tpu7x:2x2x1
jax: 0.10.0
libtpu: 0.0.40
codegen_flags: <defaults>
</compile_context>

<pallas_src>
import functools

import numpy as np
import jax
import jax.numpy as jnp
from jax import lax
from jax.experimental import pallas as pl
from jax.experimental.pallas import tpu as pltpu

# Keep both the kernel and the pure-JAX reference at f32 matmul precision.
jax.config.update("jax_default_matmul_precision", "highest")


def _round_up(v, m):
    return (v + m - 1) // m * m


def _pick_chunk(tile_n, target=128):
    """Largest multiple of 8 that divides tile_n and is <= target."""
    c = min(tile_n, target)
    while tile_n % c != 0:
        c -= 8
    return c


# ----------------------------------------------------------------------------
# Pallas kernel: node-tiled segment mean/max/min + global MLP epilogue.
# ----------------------------------------------------------------------------
def _global_model_kernel(batch_row_ref, batch_col_ref, x_ref, u_ref,
                         w1s_ref, b1_ref, w2_ref, b2_ref, w3_ref, b3_ref,
                         out_ref,
                         sum_acc, cnt_acc, max_acc, min_acc,
                         *, num_graphs, chunk, num_chunks):
    t = pl.program_id(0)
    num_t = pl.num_programs(0)

    # ---- init accumulators on the first node tile --------------------------
    @pl.when(t == 0)
    def _init():
        sum_acc[...] = jnp.zeros(sum_acc.shape, sum_acc.dtype)
        cnt_acc[...] = jnp.zeros(cnt_acc.shape, cnt_acc.dtype)
        max_acc[...] = jnp.full(max_acc.shape, -jnp.inf, max_acc.dtype)
        min_acc[...] = jnp.full(min_acc.shape, jnp.inf, min_acc.dtype)

    # ---- segment sums + node counts (one-hot mask; sums on the MXU) --------
    x_t = x_ref[...].astype(jnp.float32)            # (tile_n, F), true width F
    br = batch_row_ref[...]                         # (1, tile_n) int32

    gid = lax.broadcasted_iota(jnp.int32, (num_graphs, br.shape[1]), 0)
    maskf = (br == gid).astype(jnp.float32)         # (B, tile_n)
    sum_acc[...] += jnp.dot(maskf, x_t,
                            preferred_element_type=jnp.float32,
                            precision=lax.Precision.HIGHEST)
    cnt_acc[...] += jnp.sum(maskf, axis=1, keepdims=True)        # (B, 1)

    # ---- per-graph running max / min, chunked along the node axis ----------
    # Each chunk of x is loaded once; all 2*B masked updates reuse it while
    # it is live in vregs (no 2*B full re-streams of the tile).
    def chunk_body(c, carry):
        start = pl.multiple_of(c * chunk, chunk)
        xc = x_ref[pl.ds(start, chunk), :].astype(jnp.float32)   # (chunk, F)
        bc = batch_col_ref[pl.ds(start, chunk), :]               # (chunk, 1)
        max_rows, min_rows = [], []
        for b in range(num_graphs):                              # B is static
            mb = bc == b
            max_rows.append(jnp.max(jnp.where(mb, xc, -jnp.inf),
                                    axis=0, keepdims=True))
            min_rows.append(jnp.min(jnp.where(mb, xc, jnp.inf),
                                    axis=0, keepdims=True))
        max_acc[...] = jnp.maximum(max_acc[...],
                                   jnp.concatenate(max_rows, axis=0))
        min_acc[...] = jnp.minimum(min_acc[...],
                                   jnp.concatenate(min_rows, axis=0))
        return carry

    lax.fori_loop(0, num_chunks, chunk_body, 0)

    # ---- finalize on the last node tile: mean divide + MLP + store ---------
    @pl.when(t == num_t - 1)
    def _finalize():
        cnt = cnt_acc[...]                                       # (B, 1) f32
        seg_mean = sum_acc[...] / jnp.maximum(cnt, 1.0)
        nonempty = cnt > 0.0                                     # empty-seg guard
        seg_max = jnp.where(nonempty, max_acc[...], 0.0)
        seg_min = jnp.where(nonempty, min_acc[...], 0.0)
        u = u_ref[...].astype(jnp.float32)                       # (B, F); cols >= 2 are zero

        # h1 = cat([u, mean, max, min]) @ w1  ==  sum of 4 row-split matmuls
        stats = (u, seg_mean, seg_max, seg_min)
        h1 = b1_ref[...]
        for s in range(4):                                       # static unroll
            h1 = h1 + jnp.dot(stats[s], w1s_ref[s],
                              preferred_element_type=jnp.float32,
                              precision=lax.Precision.HIGHEST)
        h1 = jnp.maximum(h1, 0.0)
        h2 = jnp.maximum(
            jnp.dot(h1, w2_ref[...], preferred_element_type=jnp.float32,
                    precision=lax.Precision.HIGHEST) + b2_ref[...], 0.0)
        out = (jnp.dot(h2, w3_ref[...], preferred_element_type=jnp.float32,
                       precision=lax.Precision.HIGHEST) + b3_ref[...])
        out_ref[...] = out.astype(out_ref.dtype)


# ----------------------------------------------------------------------------
# One-time parameter preparation (hoisted out of the per-step forward).
# ----------------------------------------------------------------------------
def prepare_global_model_params(params, feat_dim):
    """Pad / split the MLP params once.  Weights stored [in, out], biases [1, out]."""
    F = feat_dim
    H = params["w1"].shape[1]
    latent = params["w3"].shape[1]
    assert params["w1"].shape[0] == 3 * F + 2
    H_pad = _round_up(H, 128)
    L_pad = _round_up(latent, 128)

    def pad2(w, r, c):
        out = jnp.zeros((r, c), jnp.float32)
        return out.at[:w.shape[0], :w.shape[1]].set(jnp.asarray(w, jnp.float32))

    w1 = jnp.asarray(params["w1"], jnp.float32)   # rows: [u(2) | mean(F) | max(F) | min(F)]
    w1_u = pad2(w1[:2], F, H_pad)                 # u rows zero-padded up to F rows
    w1_mean = pad2(w1[2:2 + F], F, H_pad)
    w1_max = pad2(w1[2 + F:2 + 2 * F], F, H_pad)
    w1_min = pad2(w1[2 + 2 * F:2 + 3 * F], F, H_pad)
    w1s = jnp.stack([w1_u, w1_mean, w1_max, w1_min], axis=0)     # (4, F, H_pad)

    return dict(
        w1s=w1s,
        b1=pad2(params["b1"], 1, H_pad),
        w2=pad2(params["w2"], H_pad, H_pad),
        b2=pad2(params["b2"], 1, H_pad),
        w3=pad2(params["w3"], H_pad, L_pad),
        b3=pad2(params["b3"], 1, L_pad),
        feat_dim=F, latent=latent, latent_pad=L_pad,
    )


# ----------------------------------------------------------------------------
# Wrapper: node tiling + pallas_call.
# ----------------------------------------------------------------------------
def global_model_forward(x, u, batch, prep, *, max_tile_n=1024,
                         vmem_limit_bytes=32 * 1024 * 1024):
    """Pallas-backed forward of GlobalModel.

    x:     [N, F]  node features (f32; bf16 also accepted, cast in-kernel)
    u:     [B, 2]  global features
    batch: [N]     int32 graph id per node, values in [0, B)
    prep:  output of prepare_global_model_params(params, F)
    """
    N, F = x.shape
    assert F == prep["feat_dim"]
    B = u.shape[0]
    latent, L_pad = prep["latent"], prep["latent_pad"]

    # node tiling: whole (8-aligned) range if small, else max_tile_n chunks
    N8 = _round_up(max(N, 8), 8)
    tile_n = N8 if N8 <= max_tile_n else max_tile_n
    N_pad = _round_up(N8, tile_n)
    num_tiles = N_pad // tile_n
    chunk = _pick_chunk(tile_n)
    num_chunks = tile_n // chunk

    batch = batch.astype(jnp.int32)
    if N_pad != N:
        # padded rows: zero features (never NaN) + graph id B (matches no graph)
        x_in = jnp.zeros((N_pad, F), x.dtype).at[:N].set(x)
        batch_pad = jnp.full((N_pad,), B, jnp.int32).at[:N].set(batch)
    else:
        x_in, batch_pad = x, batch
    batch_row = batch_pad.reshape(1, N_pad)   # lane-dense, for the one-hot sum
    batch_col = batch_pad.reshape(N_pad, 1)   # node-major, for masked max/min

    # u padded to (B, F) so it matmuls against the u-rows slot of w1s
    u_pad = jnp.zeros((B, F), jnp.float32).at[:, :u.shape[1]].set(
        u.astype(jnp.float32))

    const2 = lambda i: (0, 0)
    const3 = lambda i: (0, 0, 0)
    in_specs = [
        pl.BlockSpec((1, tile_n), lambda i: (0, i)),     # batch_row
        pl.BlockSpec((tile_n, 1), lambda i: (i, 0)),     # batch_col
        pl.BlockSpec((tile_n, F), lambda i: (i, 0)),     # x at true width F
        pl.BlockSpec(u_pad.shape, const2),               # u (resident)
        pl.BlockSpec(prep["w1s"].shape, const3),         # stacked w1 splits
        pl.BlockSpec(prep["b1"].shape, const2),
        pl.BlockSpec(prep["w2"].shape, const2),
        pl.BlockSpec(prep["b2"].shape, const2),
        pl.BlockSpec(prep["w3"].shape, const2),
        pl.BlockSpec(prep["b3"].shape, const2),
    ]

    grid_spec = pltpu.PrefetchScalarGridSpec(
        num_scalar_prefetch=0,
        grid=(num_tiles,),
        in_specs=in_specs,
        out_specs=pl.BlockSpec((B, L_pad), const2),      # lane-dense output slab
        scratch_shapes=[
            pltpu.VMEM((B, F), jnp.float32),             # segment sums
            pltpu.VMEM((B, 1), jnp.float32),             # node counts (f32)
            pltpu.VMEM((B, F), jnp.float32),             # running max
            pltpu.VMEM((B, F), jnp.float32),             # running min
        ],
    )

    kernel = functools.partial(_global_model_kernel, num_graphs=B,
                               chunk=chunk, num_chunks=num_chunks)

    out_pad = pl.pallas_call(
        kernel,
        out_shape=jax.ShapeDtypeStruct((B, L_pad), jnp.float32),
        grid_spec=grid_spec,
        compiler_params=pltpu.CompilerParams(
            dimension_semantics=("arbitrary",),          # node axis is a reduction
            vmem_limit_bytes=vmem_limit_bytes),
    )(batch_row, batch_col, x_in, u_pad,
      prep["w1s"], prep["b1"], prep["w2"], prep["b2"], prep["w3"], prep["b3"])

    return out_pad[:, :latent]


# ----------------------------------------------------------------------------
# Pure-JAX reference (mirrors the PyTorch forward) for correctness checking.
# ----------------------------------------------------------------------------
def _ref_forward(x, u, batch, params):
    B = u.shape[0]
    ones = jnp.ones((x.shape[0], 1), jnp.float32)
    seg_sum = jax.ops.segment_sum(x, batch, num_segments=B)
    counts = jax.ops.segment_sum(ones, batch, num_segments=B)
    seg_mean = seg_sum / jnp.maximum(counts, 1.0)
    seg_max = jax.ops.segment_max(x, batch, num_segments=B)
    seg_min = jax.ops.segment_min(x, batch, num_segments=B)
    h = jnp.concatenate([u, seg_mean, seg_max, seg_min], axis=1)
    h = jnp.maximum(h @ params["w1"] + params["b1"], 0.0)
    h = jnp.maximum(h @ params["w2"] + params["b2"], 0.0)
    return h @ params["w3"] + params["b3"]


def _init_linear(key, fan_in, fan_out):
    # PyTorch default Linear init: U(-1/sqrt(fan_in), ...); stored [in, out].
    kw, kb = jax.random.split(key)
    bound = 1.0 / np.sqrt(fan_in)
    w = jax.random.uniform(kw, (fan_in, fan_out), jnp.float32, -bound, bound)
    b = jax.random.uniform(kb, (1, fan_out), jnp.float32, -bound, bound)
    return w, b


if __name__ == "__main__":
    # Small shapes consistent with the module.
    in_channels = 4
    latent_channels = 4
    hidden_channels = 32
    F = in_channels + latent_channels * 3 + 2          # node feature width = 18
    D_in = F * 3 + 2                                   # MLP input width = 56
    B = 2                                              # graphs in the batch
    N = 8                                              # total nodes

    key = jax.random.PRNGKey(0)
    kx, ku, kb_, k1, k2, k3 = jax.random.split(key, 6)

    x = jax.random.normal(kx, (N, F), jnp.float32)
    u = jax.random.normal(ku, (B, 2), jnp.float32)
    # every graph gets at least one node
    batch = jnp.sort(jax.random.randint(kb_, (N,), 0, B)).astype(jnp.int32)
    batch = batch.at[0].set(0).at[-1].set(B - 1)

    w1, b1 = _init_linear(k1, D_in, hidden_channels)
    w2, b2 = _init_linear(k2, hidden_channels, hidden_channels)
    w3, b3 = _init_linear(k3, hidden_channels, latent_channels)
    params = dict(w1=w1, b1=b1, w2=w2, b2=b2, w3=w3, b3=b3)

    prep = prepare_global_model_params(params, F)      # one-time prep (hoisted)
    out = jax.block_until_ready(global_model_forward(x, u, batch, prep))

    ref = jax.block_until_ready(_ref_forward(x, u, batch, params))
    np.testing.assert_allclose(np.asarray(out), np.asarray(ref),
                               rtol=2e-5, atol=2e-5)

    print("KERNEL_OK")
</pallas_src>

<mosaic_0001>
module attributes {stable_mosaic.version = 11 : i64} {
  func.func @_global_model_kernel(%arg0: i32, %arg1: memref<1x8xi32, #tpu.memory_space<vmem>>, %arg2: memref<8x1xi32, #tpu.memory_space<vmem>>, %arg3: memref<8x18xf32, #tpu.memory_space<vmem>>, %arg4: memref<2x18xf32, #tpu.memory_space<vmem>>, %arg5: memref<4x18x128xf32, #tpu.memory_space<vmem>>, %arg6: memref<1x128xf32, #tpu.memory_space<vmem>>, %arg7: memref<128x128xf32, #tpu.memory_space<vmem>>, %arg8: memref<1x128xf32, #tpu.memory_space<vmem>>, %arg9: memref<128x128xf32, #tpu.memory_space<vmem>>, %arg10: memref<1x128xf32, #tpu.memory_space<vmem>>, %arg11: memref<2x128xf32, #tpu.memory_space<vmem>>, %arg12: memref<2x18xf32, #tpu.memory_space<vmem>>, %arg13: memref<2x1xf32, #tpu.memory_space<vmem>>, %arg14: memref<2x18xf32, #tpu.memory_space<vmem>>, %arg15: memref<2x18xf32, #tpu.memory_space<vmem>>) attributes {dimension_semantics = [#tpu.dimension_semantics<arbitrary>], iteration_bounds = array<i64: 1>, scalar_prefetch = 0 : i64, scratch_operands = 4 : i64, tpu.core_type = #tpu.core_type<tc>, window_params = [{transform_indices = @transform_0, window_bounds = array<i64: 1, 8>}, {transform_indices = @transform_1, window_bounds = array<i64: 8, 1>}, {transform_indices = @transform_2, window_bounds = array<i64: 8, 18>}, {pipeline_mode = #tpu.pipeline_mode<synchronous>, transform_indices = @transform_3, window_bounds = array<i64: 2, 18>}, {pipeline_mode = #tpu.pipeline_mode<synchronous>, transform_indices = @transform_4, window_bounds = array<i64: 4, 18, 128>}, {pipeline_mode = #tpu.pipeline_mode<synchronous>, transform_indices = @transform_5, window_bounds = array<i64: 1, 128>}, {pipeline_mode = #tpu.pipeline_mode<synchronous>, transform_indices = @transform_6, window_bounds = array<i64: 128, 128>}, {pipeline_mode = #tpu.pipeline_mode<synchronous>, transform_indices = @transform_7, window_bounds = array<i64: 1, 128>}, {pipeline_mode = #tpu.pipeline_mode<synchronous>, transform_indices = @transform_8, window_bounds = array<i64: 128, 128>}, {pipeline_mode = #tpu.pipeline_mode<synchronous>, transform_indices = @transform_9, window_bounds = array<i64: 1, 128>}, {pipeline_mode = #tpu.pipeline_mode<synchronous>, transform_indices = @transform_10, window_bounds = array<i64: 2, 128>}]} {
    %c0_i32 = arith.constant 0 : i32
    %0 = arith.cmpi eq, %arg0, %c0_i32 : i32
    %1 = arith.extui %0 : i1 to i32
    %c0_i32_0 = arith.constant 0 : i32
    %2 = arith.cmpi ne, %1, %c0_i32_0 : i32
    scf.if %2 {
      %cst_36 = arith.constant 0.000000e+00 : f32
      %64 = vector.broadcast %cst_36 : f32 to vector<2x18xf32>
      %c0_37 = arith.constant 0 : index
      %c0_38 = arith.constant 0 : index
      %65 = vector.load %arg12[%c0_37, %c0_38] : memref<2x18xf32, #tpu.memory_space<vmem>>, vector<2x18xf32>
      tpu.vector_store %arg12[%c0_37, %c0_38], %64 {strides = array<i32>} : memref<2x18xf32, #tpu.memory_space<vmem>>, vector<2x18xf32>,
      %cst_39 = arith.constant 0.000000e+00 : f32
      %66 = vector.broadcast %cst_39 : f32 to vector<2x1xf32>
      %c0_40 = arith.constant 0 : index
      %c0_41 = arith.constant 0 : index
      %67 = vector.load %arg13[%c0_40, %c0_41] : memref<2x1xf32, #tpu.memory_space<vmem>>, vector<2x1xf32>
      tpu.vector_store %arg13[%c0_40, %c0_41], %66 {strides = array<i32>} : memref<2x1xf32, #tpu.memory_space<vmem>>, vector<2x1xf32>,
      %cst_42 = arith.constant 0xFF800000 : f32
      %68 = vector.broadcast %cst_42 : f32 to vector<2x18xf32>
      %c0_43 = arith.constant 0 : index
      %c0_44 = arith.constant 0 : index
      %69 = vector.load %arg14[%c0_43, %c0_44] : memref<2x18xf32, #tpu.memory_space<vmem>>, vector<2x18xf32>
      tpu.vector_store %arg14[%c0_43, %c0_44], %68 {strides = array<i32>} : memref<2x18xf32, #tpu.memory_space<vmem>>, vector<2x18xf32>,
      %cst_45 = arith.constant 0x7F800000 : f32
      %70 = vector.broadcast %cst_45 : f32 to vector<2x18xf32>
      %c0_46 = arith.constant 0 : index
      %c0_47 = arith.constant 0 : index
      %71 = vector.load %arg15[%c0_46, %c0_47] : memref<2x18xf32, #tpu.memory_space<vmem>>, vector<2x18xf32>
      tpu.vector_store %arg15[%c0_46, %c0_47], %70 {strides = array<i32>} : memref<2x18xf32, #tpu.memory_space<vmem>>, vector<2x18xf32>,
    } else {
    }
    %c0 = arith.constant 0 : index
    %c0_1 = arith.constant 0 : index
    %3 = vector.load %arg3[%c0, %c0_1] : memref<8x18xf32, #tpu.memory_space<vmem>>, vector<8x18xf32>
    %c0_2 = arith.constant 0 : index
    %c0_3 = arith.constant 0 : index
    %4 = vector.load %arg1[%c0_2, %c0_3] : memref<1x8xi32, #tpu.memory_space<vmem>>, vector<1x8xi32>
    %5 = tpu.iota {dimensions = array<i32: 0>} : vector<2x8xi32>
    %6 = vector.broadcast %4 : vector<1x8xi32> to vector<2x8xi32>
    %7 = arith.cmpi eq, %6, %5 : vector<2x8xi32>
    %8 = arith.extui %7 : vector<2x8xi1> to vector<2x8xi32>
    %9 = arith.sitofp %8 : vector<2x8xi32> to vector<2x8xf32>
    %c0_4 = arith.constant 0 : index
    %c0_5 = arith.constant 0 : index
    %10 = vector.load %arg12[%c0_4, %c0_5] : memref<2x18xf32, #tpu.memory_space<vmem>>, vector<2x18xf32>
    %cst = arith.constant dense<0.000000e+00> : vector<2x18xf32>
    %11 = tpu.matmul %9, %3, %cst {dimension_numbers = #tpu.dot_dimension_numbers<[1], [0], [0], [1], [0, 0, 1, 1], [], []>, precision = #tpu.contract_precision<fp32>} : vector<2x8xf32>, vector<8x18xf32>, vector<2x18xf32> -> vector<2x18xf32>
    %12 = arith.addf %10, %11 : vector<2x18xf32>
    %c0_6 = arith.constant 0 : index
    %c0_7 = arith.constant 0 : index
    %13 = vector.load %arg12[%c0_6, %c0_7] : memref<2x18xf32, #tpu.memory_space<vmem>>, vector<2x18xf32>
    tpu.vector_store %arg12[%c0_6, %c0_7], %12 {strides = array<i32>} : memref<2x18xf32, #tpu.memory_space<vmem>>, vector<2x18xf32>,
    %c0_8 = arith.constant 0 : index
    %c0_9 = arith.constant 0 : index
    %14 = vector.load %arg13[%c0_8, %c0_9] : memref<2x1xf32, #tpu.memory_space<vmem>>, vector<2x1xf32>
    %cst_10 = arith.constant dense<0.000000e+00> : vector<2xf32>
    %15 = vector.multi_reduction <add>, %9, %cst_10 [1] : vector<2x8xf32> to vector<2xf32>
    %16 = vector.shape_cast %15 : vector<2xf32> to vector<2x1xf32>
    %17 = arith.addf %14, %16 : vector<2x1xf32>
    %c0_11 = arith.constant 0 : index
    %c0_12 = arith.constant 0 : index
    %18 = vector.load %arg13[%c0_11, %c0_12] : memref<2x1xf32, #tpu.memory_space<vmem>>, vector<2x1xf32>
    tpu.vector_store %arg13[%c0_11, %c0_12], %17 {strides = array<i32>} : memref<2x1xf32, #tpu.memory_space<vmem>>, vector<2x1xf32>,
    %c0_i32_13 = arith.constant 0 : i32
    %c8_i32 = arith.constant 8 : i32
    %19 = arith.muli %c0_i32_13, %c8_i32 : i32
    %20 = tpu.assume_multiple %19, 8 : i32
    %21 = arith.index_cast %20 : i32 to index
    %c0_14 = arith.constant 0 : index
    %22 = vector.load %arg3[%21, %c0_14] : memref<8x18xf32, #tpu.memory_space<vmem>>, vector<8x18xf32>
    %23 = arith.index_cast %20 : i32 to index
    %c0_15 = arith.constant 0 : index
    %24 = vector.load %arg2[%23, %c0_15] : memref<8x1xi32, #tpu.memory_space<vmem>>, vector<8x1xi32>
    %c0_i32_16 = arith.constant 0 : i32
    %25 = vector.broadcast %c0_i32_16 : i32 to vector<8x1xi32>
    %26 = arith.cmpi eq, %24, %25 : vector<8x1xi32>
    %cst_17 = arith.constant 0xFF800000 : f32
    %27 = vector.shape_cast %26 : vector<8x1xi1> to vector<8x1xi1>
    %28 = vector.broadcast %27 : vector<8x1xi1> to vector<8x18xi1>
    %29 = vector.broadcast %cst_17 : f32 to vector<8x18xf32>
    %30 = arith.select %28, %22, %29 : vector<8x18xi1>, vector<8x18xf32>
    %cst_18 = arith.constant dense<0xFF800000> : vector<18xf32>
    %31 = vector.multi_reduction <maximumf>, %30, %cst_18 [0] : vector<8x18xf32> to vector<18xf32>
    %32 = vector.shape_cast %31 : vector<18xf32> to vector<1x18xf32>
    %cst_19 = arith.constant 0x7F800000 : f32
    %33 = vector.shape_cast %26 : vector<8x1xi1> to vector<8x1xi1>
    %34 = vector.broadcast %33 : vector<8x1xi1> to vector<8x18xi1>
    %35 = vector.broadcast %cst_19 : f32 to vector<8x18xf32>
    %36 = arith.select %34, %22, %35 : vector<8x18xi1>, vector<8x18xf32>
    %cst_20 = arith.constant dense<0x7F800000> : vector<18xf32>
    %37 = vector.multi_reduction <minimumf>, %36, %cst_20 [0] : vector<8x18xf32> to vector<18xf32>
    %38 = vector.shape_cast %37 : vector<18xf32> to vector<1x18xf32>
    %c1_i32 = arith.constant 1 : i32
    %39 = vector.broadcast %c1_i32 : i32 to vector<8x1xi32>
    %40 = arith.cmpi eq, %24, %39 : vector<8x1xi32>
    %cst_21 = arith.constant 0xFF800000 : f32
    %41 = vector.shape_cast %40 : vector<8x1xi1> to vector<8x1xi1>
    %42 = vector.broadcast %41 : vector<8x1xi1> to vector<8x18xi1>
    %43 = vector.broadcast %cst_21 : f32 to vector<8x18xf32>
    %44 = arith.select %42, %22, %43 : vector<8x18xi1>, vector<8x18xf32>
    %cst_22 = arith.constant dense<0xFF800000> : vector<18xf32>
    %45 = vector.multi_reduction <maximumf>, %44, %cst_22 [0] : vector<8x18xf32> to vector<18xf32>
    %46 = vector.shape_cast %45 : vector<18xf32> to vector<1x18xf32>
    %cst_23 = arith.constant 0x7F800000 : f32
    %47 = vector.shape_cast %40 : vector<8x1xi1> to vector<8x1xi1>
    %48 = vector.broadcast %47 : vector<8x1xi1> to vector<8x18xi1>
    %49 = vector.broadcast %cst_23 : f32 to vector<8x18xf32>
    %50 = arith.select %48, %22, %49 : vector<8x18xi1>, vector<8x18xf32>
    %cst_24 = arith.constant dense<0x7F800000> : vector<18xf32>
    %51 = vector.multi_reduction <minimumf>, %50, %cst_24 [0] : vector<8x18xf32> to vector<18xf32>
    %52 = vector.shape_cast %51 : vector<18xf32> to vector<1x18xf32>
    %c0_25 = arith.constant 0 : index
    %c0_26 = arith.constant 0 : index
    %53 = vector.load %arg14[%c0_25, %c0_26] : memref<2x18xf32, #tpu.memory_space<vmem>>, vector<2x18xf32>
    %54 = tpu.concatenate %32, %46 in 0 : vector<1x18xf32>, vector<1x18xf32> -> vector<2x18xf32>
    %55 = arith.maximumf %53, %54 : vector<2x18xf32>
    %c0_27 = arith.constant 0 : index
    %c0_28 = arith.constant 0 : index
    %56 = vector.load %arg14[%c0_27, %c0_28] : memref<2x18xf32, #tpu.memory_space<vmem>>, vector<2x18xf32>
    tpu.vector_store %arg14[%c0_27, %c0_28], %55 {strides = array<i32>} : memref<2x18xf32, #tpu.memory_space<vmem>>, vector<2x18xf32>,
    %c0_29 = arith.constant 0 : index
    %c0_30 = arith.constant 0 : index
    %57 = vector.load %arg15[%c0_29, %c0_30] : memref<2x18xf32, #tpu.memory_space<vmem>>, vector<2x18xf32>
    %58 = tpu.concatenate %38, %52 in 0 : vector<1x18xf32>, vector<1x18xf32> -> vector<2x18xf32>
    %59 = arith.minimumf %57, %58 : vector<2x18xf32>
    %c0_31 = arith.constant 0 : index
    %c0_32 = arith.constant 0 : index
    %60 = vector.load %arg15[%c0_31, %c0_32] : memref<2x18xf32, #tpu.memory_space<vmem>>, vector<2x18xf32>
    tpu.vector_store %arg15[%c0_31, %c0_32], %59 {strides = array<i32>} : memref<2x18xf32, #tpu.memory_space<vmem>>, vector<2x18xf32>,
    %c1_i32_33 = arith.constant 1 : i32
    %c0_i32_34 = arith.constant 0 : i32
    %61 = arith.cmpi eq, %arg0, %c0_i32_34 : i32
    %62 = arith.extui %61 : i1 to i32
    %c0_i32_35 = arith.constant 0 : i32
    %63 = arith.cmpi ne, %62, %c0_i32_35 : i32
    scf.if %63 {
      %c0_36 = arith.constant 0 : index
      %c0_37 = arith.constant 0 : index
      %64 = vector.load %arg13[%c0_36, %c0_37] : memref<2x1xf32, #tpu.memory_space<vmem>>, vector<2x1xf32>
      %c0_38 = arith.constant 0 : index
      %c0_39 = arith.constant 0 : index
      %65 = vector.load %arg12[%c0_38, %c0_39] : memref<2x18xf32, #tpu.memory_space<vmem>>, vector<2x18xf32>
      %cst_40 = arith.constant 1.000000e+00 : f32
      %66 = vector.broadcast %cst_40 : f32 to vector<2x1xf32>
      %67 = arith.maximumf %64, %66 : vector<2x1xf32>
      %68 = vector.broadcast %67 : vector<2x1xf32> to vector<2x18xf32>
      %69 = arith.divf %65, %68 : vector<2x18xf32>
      %cst_41 = arith.constant 0.000000e+00 : f32
      %70 = vector.broadcast %cst_41 : f32 to vector<2x1xf32>
      %71 = arith.cmpf ogt, %64, %70 : vector<2x1xf32>
      %c0_42 = arith.constant 0 : index
      %c0_43 = arith.constant 0 : index
      %72 = vector.load %arg14[%c0_42, %c0_43] : memref<2x18xf32, #tpu.memory_space<vmem>>, vector<2x18xf32>
      %cst_44 = arith.constant 0.000000e+00 : f32
      %73 = vector.shape_cast %71 : vector<2x1xi1> to vector<2x1xi1>
      %74 = vector.broadcast %73 : vector<2x1xi1> to vector<2x18xi1>
      %75 = vector.broadcast %cst_44 : f32 to vector<2x18xf32>
      %76 = arith.select %74, %72, %75 : vector<2x18xi1>, vector<2x18xf32>
      %c0_45 = arith.constant 0 : index
      %c0_46 = arith.constant 0 : index
      %77 = vector.load %arg15[%c0_45, %c0_46] : memref<2x18xf32, #tpu.memory_space<vmem>>, vector<2x18xf32>
      %cst_47 = arith.constant 0.000000e+00 : f32
      %78 = vector.shape_cast %71 : vector<2x1xi1> to vector<2x1xi1>
      %79 = vector.broadcast %78 : vector<2x1xi1> to vector<2x18xi1>
      %80 = vector.broadcast %cst_47 : f32 to vector<2x18xf32>
      %81 = arith.select %79, %77, %80 : vector<2x18xi1>, vector<2x18xf32>
      %c0_48 = arith.constant 0 : index
      %c0_49 = arith.constant 0 : index
      %82 = vector.load %arg4[%c0_48, %c0_49] : memref<2x18xf32, #tpu.memory_space<vmem>>, vector<2x18xf32>
      %c0_50 = arith.constant 0 : index
      %c0_51 = arith.constant 0 : index
      %83 = vector.load %arg6[%c0_50, %c0_51] : memref<1x128xf32, #tpu.memory_space<vmem>>, vector<1x128xf32>
      %c0_52 = arith.constant 0 : index
      %c0_53 = arith.constant 0 : index
      %c0_54 = arith.constant 0 : index
      %84 = vector.load %arg5[%c0_52, %c0_53, %c0_54] : memref<4x18x128xf32, #tpu.memory_space<vmem>>, vector<1x18x128xf32>
      %85 = vector.shape_cast %84 : vector<1x18x128xf32> to vector<18x128xf32>
      %cst_55 = arith.constant dense<0.000000e+00> : vector<2x128xf32>
      %86 = tpu.matmul %82, %85, %cst_55 {dimension_numbers = #tpu.dot_dimension_numbers<[1], [0], [0], [1], [0, 0, 1, 1], [], []>, precision = #tpu.contract_precision<fp32>} : vector<2x18xf32>, vector<18x128xf32>, vector<2x128xf32> -> vector<2x128xf32>
      %87 = vector.broadcast %83 : vector<1x128xf32> to vector<2x128xf32>
      %88 = arith.addf %87, %86 : vector<2x128xf32>
      %c1 = arith.constant 1 : index
      %c0_56 = arith.constant 0 : index
      %c0_57 = arith.constant 0 : index
      %89 = vector.load %arg5[%c1, %c0_56, %c0_57] : memref<4x18x128xf32, #tpu.memory_space<vmem>>, vector<1x18x128xf32>
      %90 = vector.shape_cast %89 : vector<1x18x128xf32> to vector<18x128xf32>
      %cst_58 = arith.constant dense<0.000000e+00> : vector<2x128xf32>
      %91 = tpu.matmul %69, %90, %cst_58 {dimension_numbers = #tpu.dot_dimension_numbers<[1], [0], [0], [1], [0, 0, 1, 1], [], []>, precision = #tpu.contract_precision<fp32>} : vector<2x18xf32>, vector<18x128xf32>, vector<2x128xf32> -> vector<2x128xf32>
      %92 = arith.addf %88, %91 : vector<2x128xf32>
      %c2 = arith.constant 2 : index
      %c0_59 = arith.constant 0 : index
      %c0_60 = arith.constant 0 : index
      %93 = vector.load %arg5[%c2, %c0_59, %c0_60] : memref<4x18x128xf32, #tpu.memory_space<vmem>>, vector<1x18x128xf32>
      %94 = vector.shape_cast %93 : vector<1x18x128xf32> to vector<18x128xf32>
      %cst_61 = arith.constant dense<0.000000e+00> : vector<2x128xf32>
      %95 = tpu.matmul %76, %94, %cst_61 {dimension_numbers = #tpu.dot_dimension_numbers<[1], [0], [0], [1], [0, 0, 1, 1], [], []>, precision = #tpu.contract_precision<fp32>} : vector<2x18xf32>, vector<18x128xf32>, vector<2x128xf32> -> vector<2x128xf32>
      %96 = arith.addf %92, %95 : vector<2x128xf32>
      %c3 = arith.constant 3 : index
      %c0_62 = arith.constant 0 : index
      %c0_63 = arith.constant 0 : index
      %97 = vector.load %arg5[%c3, %c0_62, %c0_63] : memref<4x18x128xf32, #tpu.memory_space<vmem>>, vector<1x18x128xf32>
      %98 = vector.shape_cast %97 : vector<1x18x128xf32> to vector<18x128xf32>
      %cst_64 = arith.constant dense<0.000000e+00> : vector<2x128xf32>
      %99 = tpu.matmul %81, %98, %cst_64 {dimension_numbers = #tpu.dot_dimension_numbers<[1], [0], [0], [1], [0, 0, 1, 1], [], []>, precision = #tpu.contract_precision<fp32>} : vector<2x18xf32>, vector<18x128xf32>, vector<2x128xf32> -> vector<2x128xf32>
      %100 = arith.addf %96, %99 : vector<2x128xf32>
      %cst_65 = arith.constant 0.000000e+00 : f32
      %101 = vector.broadcast %cst_65 : f32 to vector<2x128xf32>
      %102 = arith.maximumf %100, %101 : vector<2x128xf32>
      %c0_66 = arith.constant 0 : index
      %c0_67 = arith.constant 0 : index
      %103 = vector.load %arg7[%c0_66, %c0_67] : memref<128x128xf32, #tpu.memory_space<vmem>>, vector<128x128xf32>
      %cst_68 = arith.constant dense<0.000000e+00> : vector<2x128xf32>
      %104 = tpu.matmul %102, %103, %cst_68 {dimension_numbers = #tpu.dot_dimension_numbers<[1], [0], [0], [1], [0, 0, 1, 1], [], []>, precision = #tpu.contract_precision<fp32>} : vector<2x128xf32>, vector<128x128xf32>, vector<2x128xf32> -> vector<2x128xf32>
      %c0_69 = arith.constant 0 : index
      %c0_70 = arith.constant 0 : index
      %105 = vector.load %arg8[%c0_69, %c0_70] : memref<1x128xf32, #tpu.memory_space<vmem>>, vector<1x128xf32>
      %106 = vector.broadcast %105 : vector<1x128xf32> to vector<2x128xf32>
      %107 = arith.addf %104, %106 : vector<2x128xf32>
      %cst_71 = arith.constant 0.000000e+00 : f32
      %108 = vector.broadcast %cst_71 : f32 to vector<2x128xf32>
      %109 = arith.maximumf %107, %108 : vector<2x128xf32>
      %c0_72 = arith.constant 0 : index
      %c0_73 = arith.constant 0 : index
      %110 = vector.load %arg9[%c0_72, %c0_73] : memref<128x128xf32, #tpu.memory_space<vmem>>, vector<128x128xf32>
      %cst_74 = arith.constant dense<0.000000e+00> : vector<2x128xf32>
      %111 = tpu.matmul %109, %110, %cst_74 {dimension_numbers = #tpu.dot_dimension_numbers<[1], [0], [0], [1], [0, 0, 1, 1], [], []>, precision = #tpu.contract_precision<fp32>} : vector<2x128xf32>, vector<128x128xf32>, vector<2x128xf32> -> vector<2x128xf32>
      %c0_75 = arith.constant 0 : index
      %c0_76 = arith.constant 0 : index
      %112 = vector.load %arg10[%c0_75, %c0_76] : memref<1x128xf32, #tpu.memory_space<vmem>>, vector<1x128xf32>
      %113 = vector.broadcast %112 : vector<1x128xf32> to vector<2x128xf32>
      %114 = arith.addf %111, %113 : vector<2x128xf32>
      %c0_77 = arith.constant 0 : index
      %c0_78 = arith.constant 0 : index
      %115 = vector.load %arg11[%c0_77, %c0_78] : memref<2x128xf32, #tpu.memory_space<vmem>>, vector<2x128xf32>
      tpu.vector_store %arg11[%c0_77, %c0_78], %114 {strides = array<i32>} : memref<2x128xf32, #tpu.memory_space<vmem>>, vector<2x128xf32>,
    } else {
    }
    return
  }
  func.func @transform_0(%arg0: i32) -> (i32, i32) {
    %c0_i32 = arith.constant 0 : i32
    %c0_i32_0 = arith.constant 0 : i32
    return %c0_i32, %arg0 : i32, i32
  }
  func.func @transform_1(%arg0: i32) -> (i32, i32) {
    %c0_i32 = arith.constant 0 : i32
    %c0_i32_0 = arith.constant 0 : i32
    return %arg0, %c0_i32 : i32, i32
  }
  func.func @transform_2(%arg0: i32) -> (i32, i32) {
    %c0_i32 = arith.constant 0 : i32
    %c0_i32_0 = arith.constant 0 : i32
    return %arg0, %c0_i32 : i32, i32
  }
  func.func @transform_3(%arg0: i32) -> (i32, i32) {
    %c0_i32 = arith.constant 0 : i32
    %c0_i32_0 = arith.constant 0 : i32
    %c0_i32_1 = arith.constant 0 : i32
    return %c0_i32, %c0_i32_0 : i32, i32
  }
  func.func @transform_4(%arg0: i32) -> (i32, i32, i32) {
    %c0_i32 = arith.constant 0 : i32
    %c0_i32_0 = arith.constant 0 : i32
    %c0_i32_1 = arith.constant 0 : i32
    %c0_i32_2 = arith.constant 0 : i32
    return %c0_i32, %c0_i32_0, %c0_i32_1 : i32, i32, i32
  }
  func.func @transform_5(%arg0: i32) -> (i32, i32) {
    %c0_i32 = arith.constant 0 : i32
    %c0_i32_0 = arith.constant 0 : i32
    %c0_i32_1 = arith.constant 0 : i32
    return %c0_i32, %c0_i32_0 : i32, i32
  }
  func.func @transform_6(%arg0: i32) -> (i32, i32) {
    %c0_i32 = arith.constant 0 : i32
    %c0_i32_0 = arith.constant 0 : i32
    %c0_i32_1 = arith.constant 0 : i32
    return %c0_i32, %c0_i32_0 : i32, i32
  }
  func.func @transform_7(%arg0: i32) -> (i32, i32) {
    %c0_i32 = arith.constant 0 : i32
    %c0_i32_0 = arith.constant 0 : i32
    %c0_i32_1 = arith.constant 0 : i32
    return %c0_i32, %c0_i32_0 : i32, i32
  }
  func.func @transform_8(%arg0: i32) -> (i32, i32) {
    %c0_i32 = arith.constant 0 : i32
    %c0_i32_0 = arith.constant 0 : i32
    %c0_i32_1 = arith.constant 0 : i32
    return %c0_i32, %c0_i32_0 : i32, i32
  }
  func.func @transform_9(%arg0: i32) -> (i32, i32) {
    %c0_i32 = arith.constant 0 : i32
    %c0_i32_0 = arith.constant 0 : i32
    %c0_i32_1 = arith.constant 0 : i32
    return %c0_i32, %c0_i32_0 : i32, i32
  }
  func.func @transform_10(%arg0: i32) -> (i32, i32) {
    %c0_i32 = arith.constant 0 : i32
    %c0_i32_0 = arith.constant 0 : i32
    %c0_i32_1 = arith.constant 0 : i32
    return %c0_i32, %c0_i32_0 : i32, i32
  }
}

</mosaic_0001>

<llo_original>
// kernel: tpu_custom_call.1
$region0: #{tpu_custom_call.1}
  #allocation0 [shape = 'u32[]', space=smem, size = 0x4, offset = 0x4, fixed_abs, tag = 'smem constant byte address 0x4 - core index']
  #allocation1 [shape = 'u32[144,128]{1,0:T(1,128)}', space=vmem, size = 0x12000, scoped, tag = 'internal scratch']
  #allocation2 [shape = 'f32[2,18]{1,0:T(2,128)}', space=vmem, size = 0x400, scoped, tag = 'scratch operand']
  #allocation3 [shape = 'f32[2,1]{1,0:T(2,128)}', space=vmem, size = 0x400, scoped, tag = 'scratch operand']
  #allocation4 [shape = 'f32[2,18]{1,0:T(2,128)}', space=vmem, size = 0x400, scoped, tag = 'scratch operand']
  #allocation5 [shape = 'f32[2,18]{1,0:T(2,128)}', space=vmem, size = 0x400, scoped, tag = 'scratch operand']
  %s0 = inlined_call_operand.vmem [shape: s32[1,8], index: 0, kind: input, shape index: {}]
  %s1 = inlined_call_operand.vmem [shape: s32[8,1], index: 1, kind: input, shape index: {}]
  %s2 = inlined_call_operand.vmem [shape: f32[8,18], index: 2, kind: input, shape index: {}]
  %s3 = inlined_call_operand.vmem [shape: f32[2,18], index: 3, kind: input, shape index: {}]
  %s4 = inlined_call_operand.vmem [shape: f32[4,18,128], index: 4, kind: input, shape index: {}]
  %s5 = inlined_call_operand.vmem [shape: f32[1,128], index: 5, kind: input, shape index: {}]
  %s6 = inlined_call_operand.vmem [shape: f32[128,128], index: 6, kind: input, shape index: {}]
  %s7 = inlined_call_operand.vmem [shape: f32[1,128], index: 7, kind: input, shape index: {}]
  %s8 = inlined_call_operand.hbm [shape: f32[128,128], index: 8, kind: input, shape index: {}]
  %s9 = inlined_call_operand.vmem [shape: f32[1,128], index: 9, kind: input, shape index: {}]
  %s10 = inlined_call_operand.hbm [shape: f32[2,128], index: 10, kind: output, shape index: {}]
  %s11 = sld [smem:[#allocation0]]
  $region62: #{tpu_custom_call.1} parent=0
    _
  %s13 = ssub.s32 1, %s11
  %s14 = scalar_select 0, %s13, %s11
  $region1: #{tpu_custom_call.1} parent=0
    #allocation6 [shape = 'u8[65536]{0}', space=vmem, size = 0x10000, scoped, tag = 'input window, operand 8, single buffered']
    #allocation7 [shape = 's32[1]{0}', space=sflag, size = 0x4, scoped, tag = 'scoped memory for tpu_custom_call.1']
    #allocation8 [shape = 's32[1]{0}', space=sflag, size = 0x4, scoped, tag = 'scoped memory for tpu_custom_call.1']
    #allocation9 [shape = 'u8[1024]{0}', space=vmem, size = 0x400, scoped, tag = 'output window, operand 0, single buffered']
    %15 = vsyncpa [#allocation7], 0
    %16 = vsyncpa [#allocation8], 0
    // Predicated region
    $region2: #{tpu_custom_call.1} parent=1 // pred_check
      _
    $region3: #{tpu_custom_call.1} parent=1 // pred_check_branch
      %18 = sbr.rel (0) target = $region5
    $region4: #{tpu_custom_call.1} parent=1 // pred_region
      _
    $region5: #{tpu_custom_call.1} parent=1 // pred_fallthru
      _
    // Predicated region
    $region6: #{tpu_custom_call.1} parent=1 // pred_check
      _
    $region7: #{tpu_custom_call.1} parent=1 // pred_check_branch
      %20 = sbr.rel (0) target = $region9
    $region8: #{tpu_custom_call.1} parent=1 // pred_region
      _
    $region9: #{tpu_custom_call.1} parent=1 // pred_fallthru
      _
    // Predicated region
    $region10: #{tpu_custom_call.1} parent=1 // pred_check
      _
    $region11: #{tpu_custom_call.1} parent=1 // pred_check_branch
      %22 = sbr.rel (0) target = $region13
    $region12: #{tpu_custom_call.1} parent=1 // pred_region
      _
    $region13: #{tpu_custom_call.1} parent=1 // pred_fallthru
      _
    // Predicated region
    $region14: #{tpu_custom_call.1} parent=1 // pred_check
      _
    $region15: #{tpu_custom_call.1} parent=1 // pred_check_branch
      %24 = sbr.rel (0) target = $region17
    $region16: #{tpu_custom_call.1} parent=1 // pred_region
      _
    $region17: #{tpu_custom_call.1} parent=1 // pred_fallthru
      _
    // Predicated region
    $region18: #{tpu_custom_call.1} parent=1 // pred_check
      _
    $region19: #{tpu_custom_call.1} parent=1 // pred_check_branch
      %26 = sbr.rel (0) target = $region21
    $region20: #{tpu_custom_call.1} parent=1 // pred_region
      _
    $region21: #{tpu_custom_call.1} parent=1 // pred_fallthru
      _
    // Predicated region
    $region22: #{tpu_custom_call.1} parent=1 // pred_check
      _
    $region23: #{tpu_custom_call.1} parent=1 // pred_check_branch
      %28 = sbr.rel (0) target = $region25
    $region24: #{tpu_custom_call.1} parent=1 // pred_region
      _
    $region25: #{tpu_custom_call.1} parent=1 // pred_fallthru
      _
    // Predicated region
    $region26: #{tpu_custom_call.1} parent=1 // pred_check
      _
    $region27: #{tpu_custom_call.1} parent=1 // pred_check_branch
      %30 = sbr.rel (0) target = $region29
    $region28: #{tpu_custom_call.1} parent=1 // pred_region
      _
    $region29: #{tpu_custom_call.1} parent=1 // pred_fallthru
      _
    // Predicated region
    $region30: #{tpu_custom_call.1} parent=1 // pred_check
      _
    $region31: #{tpu_custom_call.1} parent=1 // pred_check_branch
      %32 = sbr.rel (0) target = $region33
    $region32: #{tpu_custom_call.1} parent=1 // pred_region
      _
    $region33: #{tpu_custom_call.1} parent=1 // pred_fallthru
      _
    // Predicated region
    $region34: #{tpu_custom_call.1} parent=1 // pred_check
      _
    $region35: #{tpu_custom_call.1} parent=1 // pred_check_branch
      %34 = sbr.rel (0) target = $region37
    $region36: #{tpu_custom_call.1} parent=1 // pred_region
      %s36 = ssub.s32 2048, 2048
      %37 = vsyncadd [#allocation7], %s36
      %s38 = sshll.u32 [#allocation6], 4
      %s39 = int_to_ptr.vmem [resolvable:$true] %s38
      %44 = dma.hbm_to_vmem [thread:$0]  %s8, 2048, %s39, [#allocation7], 128, 128, 8
    $region37: #{tpu_custom_call.1} parent=1 // pred_fallthru
      _
    // Predicated region
    $region38: #{tpu_custom_call.1} parent=1 // pred_check
      _
    $region39: #{tpu_custom_call.1} parent=1 // pred_check_branch
      %46 = sbr.rel (0) target = $region41
    $region40: #{tpu_custom_call.1} parent=1 // pred_region
      _
    $region41: #{tpu_custom_call.1} parent=1 // pred_fallthru
      _
    // Predicated region
    $region42: #{tpu_custom_call.1} parent=1 // pred_check
      _
    $region43: #{tpu_custom_call.1} parent=1 // pred_check_branch
      %48 = sbr.rel (0) target = $region45
    $region44: #{tpu_custom_call.1} parent=1 // pred_region
      %49 = dma.done [#allocation7], 2048
    $region45: #{tpu_custom_call.1} parent=1 // pred_fallthru
      _
    %p50 = scmp.eq.s32.totalorder 0, 0
    // Predicated region
    $region46: #{tpu_custom_call.1} parent=1 // pred_check
      %p51 = pneg %p50
    $region47: #{tpu_custom_call.1} parent=1 // pred_check_branch
      %53 = sbr.rel (%p51) target = $region49
    $region48: #{tpu_custom_call.1} parent=1 // pred_region
      %vm54 = vcmask 140288
      %55 = vst.msk [vmem:[#allocation2] sm:$0x3] %vm54, 0.0
      %vm56 = vcmask 1024
      %57 = vst.msk [vmem:[#allocation3] sm:$0x3] %vm56, 0.0
      %58 = vst.msk [vmem:[#allocation4] sm:$0x3] %vm54, -inf
      %59 = vst.msk [vmem:[#allocation5] sm:$0x3] %vm54, inf
    $region49: #{tpu_custom_call.1} parent=1 // pred_fallthru
      _
    %v60 = vld [vmem:[%s2] sm:$0xff]
    %v61 = vld [vmem:[%s0] sm:$0x1]
    %v62 = vlaneseq
    %v63 = vshrl.u32 %v62, 7
    %v64 = vlaneseq
    %v65 = vshrl.u32 %v64, 7
    %v66 = vsub.s32 0, %v65
    %v67 = vrot.slane %v61, %v66
    %vm68 = vcmp.eq.s32.totalorder %v67, %v63
    %v69 = vsel %vm68, 1, 0
    %v70 = vcvt.s32.f32 %v69
    %v71 = vld [vmem:[#allocation2] sm:$0x3]
    %vm72 = vcmask 64512
    %v74 = vsel %vm72, %v70, 0
    %76 = vmatprep.subr.mxu0 0.0
    %v77 = vand.u32 %v60, 4294901760
    %78 = vmatpush1.msra.mxu0 %v77
    %79 = vmatprep.subr.mxu0 0.0
    %80 = vmatpush1.msra.mxu0 0.0
    %81 = vmatprep.subr.mxu0 0.0
    %82 = vmatpush1.msra.mxu0 0.0
    %83 = vmatprep.subr.mxu0 0.0
    %84 = vmatpush1.msra.mxu0 0.0
    %85 = vmatprep.subr.mxu0 0.0
    %86 = vmatpush1.msra.mxu0 0.0
    %87 = vmatprep.subr.mxu0 0.0
    %88 = vmatpush1.msra.mxu0 0.0
    %89 = vmatprep.subr.mxu0 0.0
    %90 = vmatpush1.msra.mxu0 0.0
    %91 = vmatprep.subr.mxu0 0.0
    %92 = vmatpush1.msra.mxu0 0.0
    %93 = vmatprep.subr.mxu0 0.0
    %94 = vmatpush1.msra.mxu0 0.0
    %95 = vmatprep.subr.mxu0 0.0
    %96 = vmatpush1.msra.mxu0 0.0
    %97 = vmatprep.subr.mxu0 0.0
    %98 = vmatpush1.msra.mxu0 0.0
    %99 = vmatprep.subr.mxu0 0.0
    %100 = vmatpush1.msra.mxu0 0.0
    %101 = vmatprep.subr.mxu0 0.0
    %102 = vmatpush1.msra.mxu0 0.0
    %103 = vmatprep.subr.mxu0 0.0
    %104 = vmatpush1.msra.mxu0 0.0
    %105 = vmatprep.subr.mxu0 0.0
    %106 = vmatpush1.msra.mxu0 0.0
    %107 = vmatprep.subr.mxu0 0.0
    %108 = vmatpush1.msra.mxu0 0.0
    %109 = vmatprep.subr.mxu0 0.0
    %110 = vmatpush1.msra.mxu0 0.0
    %111 = vmatprep.subr.mxu0 0.0
    %112 = vmatpush1.msra.mxu0 0.0
    %113 = vmatprep.subr.mxu0 0.0
    %114 = vmatpush1.msra.mxu0 0.0
    %115 = vmatprep.subr.mxu0 0.0
    %116 = vmatpush1.msra.mxu0 0.0
    %117 = vmatprep.subr.mxu0 0.0
    %118 = vmatpush1.msra.mxu0 0.0
    %119 = vmatprep.subr.mxu0 0.0
    %120 = vmatpush1.msra.mxu0 0.0
    %121 = vmatprep.subr.mxu0 0.0
    %122 = vmatpush1.msra.mxu0 0.0
    %123 = vmatprep.subr.mxu0 0.0
    %124 = vmatpush1.msra.mxu0 0.0
    %125 = vmatprep.subr.mxu0 0.0
    %126 = vmatpush1.msra.mxu0 0.0
    %127 = vmatprep.subr.mxu0 0.0
    %128 = vmatpush1.msra.mxu0 0.0
    %129 = vmatprep.subr.mxu0 0.0
    %130 = vmatpush1.msra.mxu0 0.0
    %131 = vmatprep.subr.mxu0 0.0
    %132 = vmatpush1.msra.mxu0 0.0
    %133 = vmatprep.subr.mxu0 0.0
    %134 = vmatpush1.msra.mxu0 0.0
    %135 = vmatprep.subr.mxu0 0.0
    %136 = vmatpush1.msra.mxu0 0.0
    %137 = vmatprep.subr.mxu0 0.0
    %138 = vmatpush1.msra.mxu0 0.0
    %139 = vmatprep.subr.mxu0 0.0
    %140 = vmatpush1.msra.mxu0 0.0
    %141 = vmatprep.mubr.f32.mxu0 0.0
    %v142 = vand.u32 %v74, 4294901760
    %v143 = vsub.f32 %v74, %v142
    %v144 = vand.u32 %v143, 4294901760
    %v145 = vsub.f32 %v143, %v144
    %v146 = vand.u32 %v145, 4294901760
    %147 = vmatmul.mubr.f32.gmra.mrb[0].mxu0 %v146
    %v148 = vpop.f32.mrb[0].mxu0
    %v149 = vadd.f32 0.0, %v148
    %v150 = vpop.f32.mrb[0].mxu0
    %151 = vdwg.mxu0
    %152 = vmatprep.subr.mxu0 0.0
    %v153 = vand.u32 %v60, 4294901760
    %v154 = vsub.f32 %v60, %v153
    %v155 = vand.u32 %v154, 4294901760
    %v156 = vsub.f32 %v154, %v155
    %v157 = vand.u32 %v156, 4294901760
    %158 = vmatpush1.msra.mxu0 %v157
    %159 = vmatprep.subr.mxu0 0.0
    %160 = vmatpush1.msra.mxu0 0.0
    %161 = vmatprep.subr.mxu0 0.0
    %162 = vmatpush1.msra.mxu0 0.0
    %163 = vmatprep.subr.mxu0 0.0
    %164 = vmatpush1.msra.mxu0 0.0
    %165 = vmatprep.subr.mxu0 0.0
    %166 = vmatpush1.msra.mxu0 0.0
    %167 = vmatprep.subr.mxu0 0.0
    %168 = vmatpush1.msra.mxu0 0.0
    %169 = vmatprep.subr.mxu0 0.0
    %170 = vmatpush1.msra.mxu0 0.0
    %171 = vmatprep.subr.mxu0 0.0
    %172 = vmatpush1.msra.mxu0 0.0
    %173 = vmatprep.subr.mxu0 0.0
    %174 = vmatpush1.msra.mxu0 0.0
    %175 = vmatprep.subr.mxu0 0.0
    %176 = vmatpush1.msra.mxu0 0.0
    %177 = vmatprep.subr.mxu0 0.0
    %178 = vmatpush1.msra.mxu0 0.0
    %179 = vmatprep.subr.mxu0 0.0
    %180 = vmatpush1.msra.mxu0 0.0
    %181 = vmatprep.subr.mxu0 0.0
    %182 = vmatpush1.msra.mxu0 0.0
    %183 = vmatprep.subr.mxu0 0.0
    %184 = vmatpush1.msra.mxu0 0.0
    %185 = vmatprep.subr.mxu0 0.0
    %186 = vmatpush1.msra.mxu0 0.0
    %187 = vmatprep.subr.mxu0 0.0
    %188 = vmatpush1.msra.mxu0 0.0
    %189 = vmatprep.subr.mxu0 0.0
    %190 = vmatpush1.msra.mxu0 0.0
    %191 = vmatprep.subr.mxu0 0.0
    %192 = vmatpush1.msra.mxu0 0.0
    %193 = vmatprep.subr.mxu0 0.0
    %194 = vmatpush1.msra.mxu0 0.0
    %195 = vmatprep.subr.mxu0 0.0
    %196 = vmatpush1.msra.mxu0 0.0
    %197 = vmatprep.subr.mxu0 0.0
    %198 = vmatpush1.msra.mxu0 0.0
    %199 = vmatprep.subr.mxu0 0.0
    %200 = vmatpush1.msra.mxu0 0.0
    %201 = vmatprep.subr.mxu0 0.0
    %202 = vmatpush1.msra.mxu0 0.0
    %203 = vmatprep.subr.mxu0 0.0
    %204 = vmatpush1.msra.mxu0 0.0
    %205 = vmatprep.subr.mxu0 0.0
    %206 = vmatpush1.msra.mxu0 0.0
    %207 = vmatprep.subr.mxu0 0.0
    %208 = vmatpush1.msra.mxu0 0.0
    %209 = vmatprep.subr.mxu0 0.0
    %210 = vmatpush1.msra.mxu0 0.0
    %211 = vmatprep.subr.mxu0 0.0
    %212 = vmatpush1.msra.mxu0 0.0
    %213 = vmatprep.subr.mxu0 0.0
    %214 = vmatpush1.msra.mxu0 0.0
    %215 = vmatprep.subr.mxu0 0.0
    %216 = vmatpush1.msra.mxu0 0.0
    %217 = vmatprep.subr.mxu0 0.0
    %218 = vmatpush1.msra.mxu0 0.0
    %219 = vmatprep.subr.mxu0 0.0
    %220 = vmatpush1.msra.mxu0 0.0
    %221 = vmatprep.mubr.f32.mxu0 0.0
    %v222 = vand.u32 %v74, 4294901760
    %223 = vmatmul.mubr.f32.gmra.mrb[0].mxu0 %v222
    %v224 = vpop.f32.mrb[0].mxu0
    %v225 = vadd.f32 %v149, %v224
    %v226 = vpop.f32.mrb[0].mxu0
    %227 = vdwg.mxu0
    %228 = vmatprep.subr.mxu0 0.0
    %v229 = vand.u32 %v60, 4294901760
    %v230 = vsub.f32 %v60, %v229
    %231 = vmatpush1.msra.mxu0 %v230
    %232 = vmatprep.subr.mxu0 0.0
    %233 = vmatpush1.msra.mxu0 0.0
    %234 = vmatprep.subr.mxu0 0.0
    %235 = vmatpush1.msra.mxu0 0.0
    %236 = vmatprep.subr.mxu0 0.0
    %237 = vmatpush1.msra.mxu0 0.0
    %238 = vmatprep.subr.mxu0 0.0
    %239 = vmatpush1.msra.mxu0 0.0
    %240 = vmatprep.subr.mxu0 0.0
    %241 = vmatpush1.msra.mxu0 0.0
    %242 = vmatprep.subr.mxu0 0.0
    %243 = vmatpush1.msra.mxu0 0.0
    %244 = vmatprep.subr.mxu0 0.0
    %245 = vmatpush1.msra.mxu0 0.0
    %246 = vmatprep.subr.mxu0 0.0
    %247 = vmatpush1.msra.mxu0 0.0
    %248 = vmatprep.subr.mxu0 0.0
    %249 = vmatpush1.msra.mxu0 0.0
    %250 = vmatprep.subr.mxu0 0.0
    %251 = vmatpush1.msra.mxu0 0.0
    %252 = vmatprep.subr.mxu0 0.0
    %253 = vmatpush1.msra.mxu0 0.0
    %254 = vmatprep.subr.mxu0 0.0
    %255 = vmatpush1.msra.mxu0 0.0
    %256 = vmatprep.subr.mxu0 0.0
    %257 = vmatpush1.msra.mxu0 0.0
    %258 = vmatprep.subr.mxu0 0.0
    %259 = vmatpush1.msra.mxu0 0.0
    %260 = vmatprep.subr.mxu0 0.0
    %261 = vmatpush1.msra.mxu0 0.0
    %262 = vmatprep.subr.mxu0 0.0
    %263 = vmatpush1.msra.mxu0 0.0
    %264 = vmatprep.subr.mxu0 0.0
    %265 = vmatpush1.msra.mxu0 0.0
    %266 = vmatprep.subr.mxu0 0.0
    %267 = vmatpush1.msra.mxu0 0.0
    %268 = vmatprep.subr.mxu0 0.0
    %269 = vmatpush1.msra.mxu0 0.0
    %270 = vmatprep.subr.mxu0 0.0
    %271 = vmatpush1.msra.mxu0 0.0
    %272 = vmatprep.subr.mxu0 0.0
    %273 = vmatpush1.msra.mxu0 0.0
    %274 = vmatprep.subr.mxu0 0.0
    %275 = vmatpush1.msra.mxu0 0.0
    %276 = vmatprep.subr.mxu0 0.0
    %277 = vmatpush1.msra.mxu0 0.0
    %278 = vmatprep.subr.mxu0 0.0
    %279 = vmatpush1.msra.mxu0 0.0
    %280 = vmatprep.subr.mxu0 0.0
    %281 = vmatpush1.msra.mxu0 0.0
    %282 = vmatprep.subr.mxu0 0.0
    %283 = vmatpush1.msra.mxu0 0.0
    %284 = vmatprep.subr.mxu0 0.0
    %285 = vmatpush1.msra.mxu0 0.0
    %286 = vmatprep.subr.mxu0 0.0
    %287 = vmatpush1.msra.mxu0 0.0
    %288 = vmatprep.subr.mxu0 0.0
    %289 = vmatpush1.msra.mxu0 0.0
    %290 = vmatprep.subr.mxu0 0.0
    %291 = vmatpush1.msra.mxu0 0.0
    %292 = vmatprep.subr.mxu0 0.0
    %293 = vmatpush1.msra.mxu0 0.0
    %294 = vmatprep.mubr.f32.mxu0 0.0
    %v295 = vand.u32 %v74, 4294901760
    %v296 = vsub.f32 %v74, %v295
    %297 = vmatmul.mubr.f32.gmra.mrb[0].mxu0 %v296
    %v298 = vpop.f32.mrb[0].mxu0
    %v299 = vadd.f32 %v225, %v298
    %v300 = vpop.f32.mrb[0].mxu0
    %301 = vdwg.mxu0
    %302 = vmatprep.subr.mxu0 0.0
    %v303 = vand.u32 %v60, 4294901760
    %304 = vmatpush1.msra.mxu0 %v303
    %305 = vmatprep.subr.mxu0 0.0
    %306 = vmatpush1.msra.mxu0 0.0
    %307 = vmatprep.subr.mxu0 0.0
    %308 = vmatpush1.msra.mxu0 0.0
    %309 = vmatprep.subr.mxu0 0.0
    %310 = vmatpush1.msra.mxu0 0.0
    %311 = vmatprep.subr.mxu0 0.0
    %312 = vmatpush1.msra.mxu0 0.0
    %313 = vmatprep.subr.mxu0 0.0
    %314 = vmatpush1.msra.mxu0 0.0
    %315 = vmatprep.subr.mxu0 0.0
    %316 = vmatpush1.msra.mxu0 0.0
    %317 = vmatprep.subr.mxu0 0.0
    %318 = vmatpush1.msra.mxu0 0.0
    %319 = vmatprep.subr.mxu0 0.0
    %320 = vmatpush1.msra.mxu0 0.0
    %321 = vmatprep.subr.mxu0 0.0
    %322 = vmatpush1.msra.mxu0 0.0
    %323 = vmatprep.subr.mxu0 0.0
    %324 = vmatpush1.msra.mxu0 0.0
    %325 = vmatprep.subr.mxu0 0.0
    %326 = vmatpush1.msra.mxu0 0.0
    %327 = vmatprep.subr.mxu0 0.0
    %328 = vmatpush1.msra.mxu0 0.0
    %329 = vmatprep.subr.mxu0 0.0
    %330 = vmatpush1.msra.mxu0 0.0
    %331 = vmatprep.subr.mxu0 0.0
    %332 = vmatpush1.msra.mxu0 0.0
    %333 = vmatprep.subr.mxu0 0.0
    %334 = vmatpush1.msra.mxu0 0.0
    %335 = vmatprep.subr.mxu0 0.0
    %336 = vmatpush1.msra.mxu0 0.0
    %337 = vmatprep.subr.mxu0 0.0
    %338 = vmatpush1.msra.mxu0 0.0
    %339 = vmatprep.subr.mxu0 0.0
    %340 = vmatpush1.msra.mxu0 0.0
    %341 = vmatprep.subr.mxu0 0.0
    %342 = vmatpush1.msra.mxu0 0.0
    %343 = vmatprep.subr.mxu0 0.0
    %344 = vmatpush1.msra.mxu0 0.0
    %345 = vmatprep.subr.mxu0 0.0
    %346 = vmatpush1.msra.mxu0 0.0
    %347 = vmatprep.subr.mxu0 0.0
    %348 = vmatpush1.msra.mxu0 0.0
    %349 = vmatprep.subr.mxu0 0.0
    %350 = vmatpush1.msra.mxu0 0.0
    %351 = vmatprep.subr.mxu0 0.0
    %352 = vmatpush1.msra.mxu0 0.0
    %353 = vmatprep.subr.mxu0 0.0
    %354 = vmatpush1.msra.mxu0 0.0
    %355 = vmatprep.subr.mxu0 0.0
    %356 = vmatpush1.msra.mxu0 0.0
    %357 = vmatprep.subr.mxu0 0.0
    %358 = vmatpush1.msra.mxu0 0.0
    %359 = vmatprep.subr.mxu0 0.0
    %360 = vmatpush1.msra.mxu0 0.0
    %361 = vmatprep.subr.mxu0 0.0
    %362 = vmatpush1.msra.mxu0 0.0
    %363 = vmatprep.subr.mxu0 0.0
    %364 = vmatpush1.msra.mxu0 0.0
    %365 = vmatprep.subr.mxu0 0.0
    %366 = vmatpush1.msra.mxu0 0.0
    %367 = vmatprep.mubr.f32.mxu0 0.0
    %v368 = vand.u32 %v74, 4294901760
    %v369 = vsub.f32 %v74, %v368
    %v370 = vand.u32 %v369, 4294901760
    %371 = vmatmul.mubr.f32.gmra.mrb[0].mxu0 %v370
    %v372 = vpop.f32.mrb[0].mxu0
    %v373 = vadd.f32 %v299, %v372
    %v374 = vpop.f32.mrb[0].mxu0
    %375 = vdwg.mxu0
    %376 = vmatprep.subr.mxu0 0.0
    %v377 = vand.u32 %v60, 4294901760
    %v378 = vsub.f32 %v60, %v377
    %v379 = vand.u32 %v378, 4294901760
    %380 = vmatpush1.msra.mxu0 %v379
    %381 = vmatprep.subr.mxu0 0.0
    %382 = vmatpush1.msra.mxu0 0.0
    %383 = vmatprep.subr.mxu0 0.0
    %384 = vmatpush1.msra.mxu0 0.0
    %385 = vmatprep.subr.mxu0 0.0
    %386 = vmatpush1.msra.mxu0 0.0
    %387 = vmatprep.subr.mxu0 0.0
    %388 = vmatpush1.msra.mxu0 0.0
    %389 = vmatprep.subr.mxu0 0.0
    %390 = vmatpush1.msra.mxu0 0.0
    %391 = vmatprep.subr.mxu0 0.0
    %392 = vmatpush1.msra.mxu0 0.0
    %393 = vmatprep.subr.mxu0 0.0
    %394 = vmatpush1.msra.mxu0 0.0
    %395 = vmatprep.subr.mxu0 0.0
    %396 = vmatpush1.msra.mxu0 0.0
    %397 = vmatprep.subr.mxu0 0.0
    %398 = vmatpush1.msra.mxu0 0.0
    %399 = vmatprep.subr.mxu0 0.0
    %400 = vmatpush1.msra.mxu0 0.0
    %401 = vmatprep.subr.mxu0 0.0
    %402 = vmatpush1.msra.mxu0 0.0
    %403 = vmatprep.subr.mxu0 0.0
    %404 = vmatpush1.msra.mxu0 0.0
    %405 = vmatprep.subr.mxu0 0.0
    %406 = vmatpush1.msra.mxu0 0.0
    %407 = vmatprep.subr.mxu0 0.0
    %408 = vmatpush1.msra.mxu0 0.0
    %409 = vmatprep.subr.mxu0 0.0
    %410 = vmatpush1.msra.mxu0 0.0
    %411 = vmatprep.subr.mxu0 0.0
    %412 = vmatpush1.msra.mxu0 0.0
    %413 = vmatprep.subr.mxu0 0.0
    %414 = vmatpush1.msra.mxu0 0.0
    %415 = vmatprep.subr.mxu0 0.0
    %416 = vmatpush1.msra.mxu0 0.0
    %417 = vmatprep.subr.mxu0 0.0
    %418 = vmatpush1.msra.mxu0 0.0
    %419 = vmatprep.subr.mxu0 0.0
    %420 = vmatpush1.msra.mxu0 0.0
    %421 = vmatprep.subr.mxu0 0.0
    %422 = vmatpush1.msra.mxu0 0.0
    %423 = vmatprep.subr.mxu0 0.0
    %424 = vmatpush1.msra.mxu0 0.0
    %425 = vmatprep.subr.mxu0 0.0
    %426 = vmatpush1.msra.mxu0 0.0
    %427 = vmatprep.subr.mxu0 0.0
    %428 = vmatpush1.msra.mxu0 0.0
    %429 = vmatprep.subr.mxu0 0.0
    %430 = vmatpush1.msra.mxu0 0.0
    %431 = vmatprep.subr.mxu0 0.0
    %432 = vmatpush1.msra.mxu0 0.0
    %433 = vmatprep.subr.mxu0 0.0
    %434 = vmatpush1.msra.mxu0 0.0
    %435 = vmatprep.subr.mxu0 0.0
    %436 = vmatpush1.msra.mxu0 0.0
    %437 = vmatprep.subr.mxu0 0.0
    %438 = vmatpush1.msra.mxu0 0.0
    %439 = vmatprep.subr.mxu0 0.0
    %440 = vmatpush1.msra.mxu0 0.0
    %441 = vmatprep.subr.mxu0 0.0
    %442 = vmatpush1.msra.mxu0 0.0
    %443 = vmatprep.mubr.f32.mxu0 0.0
    %v444 = vand.u32 %v74, 4294901760
    %445 = vmatmul.mubr.f32.gmra.mrb[0].mxu0 %v444
    %v446 = vpop.f32.mrb[0].mxu0
    %v447 = vadd.f32 %v373, %v446
    %v448 = vpop.f32.mrb[0].mxu0
    %449 = vdwg.mxu0
    %450 = vmatprep.subr.mxu0 0.0
    %v451 = vand.u32 %v60, 4294901760
    %452 = vmatpush1.msra.mxu0 %v451
    %453 = vmatprep.subr.mxu0 0.0
    %454 = vmatpush1.msra.mxu0 0.0
    %455 = vmatprep.subr.mxu0 0.0
    %456 = vmatpush1.msra.mxu0 0.0
    %457 = vmatprep.subr.mxu0 0.0
    %458 = vmatpush1.msra.mxu0 0.0
    %459 = vmatprep.subr.mxu0 0.0
    %460 = vmatpush1.msra.mxu0 0.0
    %461 = vmatprep.subr.mxu0 0.0
    %462 = vmatpush1.msra.mxu0 0.0
    %463 = vmatprep.subr.mxu0 0.0
    %464 = vmatpush1.msra.mxu0 0.0
    %465 = vmatprep.subr.mxu0 0.0
    %466 = vmatpush1.msra.mxu0 0.0
    %467 = vmatprep.subr.mxu0 0.0
    %468 = vmatpush1.msra.mxu0 0.0
    %469 = vmatprep.subr.mxu0 0.0
    %470 = vmatpush1.msra.mxu0 0.0
    %471 = vmatprep.subr.mxu0 0.0
    %472 = vmatpush1.msra.mxu0 0.0
    %473 = vmatprep.subr.mxu0 0.0
    %474 = vmatpush1.msra.mxu0 0.0
    %475 = vmatprep.subr.mxu0 0.0
    %476 = vmatpush1.msra.mxu0 0.0
    %477 = vmatprep.subr.mxu0 0.0
    %478 = vmatpush1.msra.mxu0 0.0
    %479 = vmatprep.subr.mxu0 0.0
    %480 = vmatpush1.msra.mxu0 0.0
    %481 = vmatprep.subr.mxu0 0.0
    %482 = vmatpush1.msra.mxu0 0.0
    %483 = vmatprep.subr.mxu0 0.0
    %484 = vmatpush1.msra.mxu0 0.0
    %485 = vmatprep.subr.mxu0 0.0
    %486 = vmatpush1.msra.mxu0 0.0
    %487 = vmatprep.subr.mxu0 0.0
    %488 = vmatpush1.msra.mxu0 0.0
    %489 = vmatprep.subr.mxu0 0.0
    %490 = vmatpush1.msra.mxu0 0.0
    %491 = vmatprep.subr.mxu0 0.0
    %492 = vmatpush1.msra.mxu0 0.0
    %493 = vmatprep.subr.mxu0 0.0
    %494 = vmatpush1.msra.mxu0 0.0
    %495 = vmatprep.subr.mxu0 0.0
    %496 = vmatpush1.msra.mxu0 0.0
    %497 = vmatprep.subr.mxu0 0.0
    %498 = vmatpush1.msra.mxu0 0.0
    %499 = vmatprep.subr.mxu0 0.0
    %500 = vmatpush1.msra.mxu0 0.0
    %501 = vmatprep.subr.mxu0 0.0
    %502 = vmatpush1.msra.mxu0 0.0
    %503 = vmatprep.subr.mxu0 0.0
    %504 = vmatpush1.msra.mxu0 0.0
    %505 = vmatprep.subr.mxu0 0.0
    %506 = vmatpush1.msra.mxu0 0.0
    %507 = vmatprep.subr.mxu0 0.0
    %508 = vmatpush1.msra.mxu0 0.0
    %509 = vmatprep.subr.mxu0 0.0
    %510 = vmatpush1.msra.mxu0 0.0
    %511 = vmatprep.subr.mxu0 0.0
    %512 = vmatpush1.msra.mxu0 0.0
    %513 = vmatprep.subr.mxu0 0.0
    %514 = vmatpush1.msra.mxu0 0.0
    %515 = vmatprep.mubr.f32.mxu0 0.0
    %v516 = vand.u32 %v74, 4294901760
    %517 = vmatmul.mubr.f32.gmra.mrb[0].mxu0 %v516
    %v518 = vpop.f32.mrb[0].mxu0
    %v519 = vadd.f32 %v447, %v518
    %v520 = vpop.f32.mrb[0].mxu0
    %521 = vdwg.mxu0
    %v522 = vadd.f32 %v71, %v519
    %vm523 = vcmask 140288
    %524 = vst.msk [vmem:[#allocation2] sm:$0x3] %vm523, %v522
    %v525 = vld [vmem:[#allocation3] sm:$0x3]
    %vm526 = vcmask 58368
    %v527 = vsel %vm526, %v70, 0.0
    %528 = vadd.xlane.f32.xlu0 %v527
    %v529 = vpop.xlane.xlu0 %528
    %v530 = vadd.f32 %v525, %v529
    %vm531 = vcmask 1024
    %532 = vst.msk [vmem:[#allocation3] sm:$0x3] %vm531, %v530
    %v533 = vld [vmem:[%s2] sm:$0xff]
    %v534 = vld [vmem:[%s1] sm:$0xff]
    %vm535 = vcmp.eq.s32.totalorder %v534, 0
    %v536 = vsel %vm535, 1, 0
    %537 = vset.pattern.permute.xlu0 0
    %538 = vperm.xlu0 %537, %v536
    %v539 = vpop.permute.xlu0 %538
    %vm540 = vcmp.eq.s32.totalorder %v539, 1
    %v541 = vsel %vm540, %v533, -inf
    %vm542 = vcmask 146432
    %v543 = vsel %vm542, %v541, -inf
    %v544 = vrot.slane %v543, 4
    %v545 = vmax.f32 %v543, %v544
    %v546 = vrot.slane %v545, 2
    %v547 = vmax.f32 %v545, %v546
    %v548 = vrot.slane %v547, 1
    %v549 = vmax.f32 %v547, %v548
    %v550 = vsel %vm540, %v533, inf
    %v551 = vsel %vm542, %v550, inf
    %v552 = vrot.slane %v551, 4
    %v553 = vmin.f32 %v551, %v552
    %v554 = vrot.slane %v553, 2
    %v555 = vmin.f32 %v553, %v554
    %v556 = vrot.slane %v555, 1
    %v557 = vmin.f32 %v555, %v556
    %vm558 = vcmp.eq.s32.totalorder %v534, 1
    %v559 = vsel %vm558, 1, 0
    %560 = vset.pattern.permute.xlu0 0
    %561 = vperm.xlu0 %560, %v559
    %v562 = vpop.permute.xlu0 %561
    %vm563 = vcmp.eq.s32.totalorder %v562, 1
    %v564 = vsel %vm563, %v533, -inf
    %v565 = vsel %vm542, %v564, -inf
    %v566 = vrot.slane %v565, 4
    %v567 = vmax.f32 %v565, %v566
    %v568 = vrot.slane %v567, 2
    %v569 = vmax.f32 %v567, %v568
    %v570 = vrot.slane %v569, 1
    %v571 = vmax.f32 %v569, %v570
    %v572 = vsel %vm563, %v533, inf
    %v573 = vsel %vm542, %v572, inf
    %v574 = vrot.slane %v573, 4
    %v575 = vmin.f32 %v573, %v574
    %v576 = vrot.slane %v575, 2
    %v577 = vmin.f32 %v575, %v576
    %v578 = vrot.slane %v577, 1
    %v579 = vmin.f32 %v577, %v578
    %v580 = vld [vmem:[#allocation4] sm:$0x3]
    %vm581 = vcmask 1040384
    %v582 = vsel %vm581, %v549, %v571
    %v583 = vmax.f32 %v580, %v582
    %584 = vst.msk [vmem:[#allocation4] sm:$0x3] %vm523, %v583
    %v585 = vld [vmem:[#allocation5] sm:$0x3]
    %v586 = vsel %vm581, %v557, %v579
    %v587 = vmin.f32 %v585, %v586
    %588 = vst.msk [vmem:[#allocation5] sm:$0x3] %vm523, %v587
    // Predicated region
    $region50: #{tpu_custom_call.1} parent=1 // pred_check
      %p589 = pneg %p50
    $region51: #{tpu_custom_call.1} parent=1 // pred_check_branch
      %591 = sbr.rel (%p589) target = $region53
    $region52: #{tpu_custom_call.1} parent=1 // pred_region
      %v592 = vld [vmem:[#allocation3] sm:$0x3]
      %v593 = vld [vmem:[#allocation2] sm:$0x3]
      %v594 = vmax.f32 %v592, 1.0
      %596 = vset.pattern.permute.xlu0 0
      %597 = vperm.xlu0 %596, %v594
      %v598 = vpop.permute.xlu0 %597
      %v600 = vrcp.pop %v598
      %v601 = vmul.f32 %v593, %v600
      %vm602 = vcmp.gt.f32.partialorder %v592, 0.0
      %v603 = vld [vmem:[#allocation4] sm:$0x3]
      %v604 = vsel %vm602, 1, 0
      %605 = vset.pattern.permute.xlu0 0
      %606 = vperm.xlu0 %605, %v604
      %v607 = vpop.permute.xlu0 %606
      %vm608 = vcmp.eq.s32.totalorder %v607, 1
      %v609 = vsel %vm608, %v603, 0.0
      %v610 = vld [vmem:[#allocation5] sm:$0x3]
      %v611 = vsel %vm608, %v610, 0.0
      %v612 = vld [vmem:[%s3] sm:$0x3]
      %v613 = vld [vmem:[%s5] sm:$0x1]
      %v614 = vld [vmem:[%s4] sm:$0xff]
      %v615 = vld [vmem:[%s4 + $0x8] sm:$0xff]
      %v616 = vld [vmem:[%s4 + $0x10] sm:$0x3]
      %v618 = vsel %vm542, %v612, 0
      %vm620 = vcmask 1041408
      %v622 = vsel %vm620, %v616, 0
      %624 = vmatprep.subr.mxu0 0.0
      %v625 = vand.u32 %v614, 4294901760
      %626 = vmatpush1.msra.mxu0 %v625
      %627 = vmatprep.subr.mxu0 0.0
      %v628 = vand.u32 %v615, 4294901760
      %629 = vmatpush1.msra.mxu0 %v628
      %630 = vmatprep.subr.mxu0 0.0
      %v631 = vand.u32 %v622, 4294901760
      %632 = vmatpush1.msra.mxu0 %v631
      %633 = vmatprep.subr.mxu0 0.0
      %634 = vmatpush1.msra.mxu0 0.0
      %635 = vmatprep.subr.mxu0 0.0
      %636 = vmatpush1.msra.mxu0 0.0
      %637 = vmatprep.subr.mxu0 0.0
      %638 = vmatpush1.msra.mxu0 0.0
      %639 = vmatprep.subr.mxu0 0.0
      %640 = vmatpush1.msra.mxu0 0.0
      %641 = vmatprep.subr.mxu0 0.0
      %642 = vmatpush1.msra.mxu0 0.0
      %643 = vmatprep.subr.mxu0 0.0
      %644 = vmatpush1.msra.mxu0 0.0
      %645 = vmatprep.subr.mxu0 0.0
      %646 = vmatpush1.msra.mxu0 0.0
      %647 = vmatprep.subr.mxu0 0.0
      %648 = vmatpush1.msra.mxu0 0.0
      %649 = vmatprep.subr.mxu0 0.0
      %650 = vmatpush1.msra.mxu0 0.0
      %651 = vmatprep.subr.mxu0 0.0
      %652 = vmatpush1.msra.mxu0 0.0
      %653 = vmatprep.subr.mxu0 0.0
      %654 = vmatpush1.msra.mxu0 0.0
      %655 = vmatprep.subr.mxu0 0.0
      %656 = vmatpush1.msra.mxu0 0.0
      %657 = vmatprep.subr.mxu0 0.0
      %658 = vmatpush1.msra.mxu0 0.0
      %659 = vmatprep.subr.mxu0 0.0
      %660 = vmatpush1.msra.mxu0 0.0
      %661 = vmatprep.subr.mxu0 0.0
      %662 = vmatpush1.msra.mxu0 0.0
      %663 = vmatprep.subr.mxu0 0.0
      %664 = vmatpush1.msra.mxu0 0.0
      %665 = vmatprep.subr.mxu0 0.0
      %666 = vmatpush1.msra.mxu0 0.0
      %667 = vmatprep.subr.mxu0 0.0
      %668 = vmatpush1.msra.mxu0 0.0
      %669 = vmatprep.subr.mxu0 0.0
      %670 = vmatpush1.msra.mxu0 0.0
      %671 = vmatprep.subr.mxu0 0.0
      %672 = vmatpush1.msra.mxu0 0.0
      %673 = vmatprep.subr.mxu0 0.0
      %674 = vmatpush1.msra.mxu0 0.0
      %675 = vmatprep.subr.mxu0 0.0
      %676 = vmatpush1.msra.mxu0 0.0
      %677 = vmatprep.subr.mxu0 0.0
      %678 = vmatpush1.msra.mxu0 0.0
      %679 = vmatprep.subr.mxu0 0.0
      %680 = vmatpush1.msra.mxu0 0.0
      %681 = vmatprep.subr.mxu0 0.0
      %682 = vmatpush1.msra.mxu0 0.0
      %683 = vmatprep.subr.mxu0 0.0
      %684 = vmatpush1.msra.mxu0 0.0
      %685 = vmatprep.subr.mxu0 0.0
      %686 = vmatpush1.msra.mxu0 0.0
      %687 = vmatprep.subr.mxu0 0.0
      %688 = vmatpush1.msra.mxu0 0.0
      %689 = vmatprep.subr.mxu0 0.0
      %690 = vmatpush1.msra.mxu0 0.0
      %691 = vmatprep.mubr.f32.mxu0 0.0
      %v692 = vand.u32 %v618, 4294901760
      %v693 = vsub.f32 %v618, %v692
      %v694 = vand.u32 %v693, 4294901760
      %v695 = vsub.f32 %v693, %v694
      %v696 = vand.u32 %v695, 4294901760
      %697 = vmatmul.mubr.f32.gmra.mrb[0].mxu0 %v696
      %v698 = vpop.f32.mrb[0].mxu0
      %v699 = vadd.f32 0.0, %v698
      %v700 = vpop.f32.mrb[0].mxu0
      %701 = vdwg.mxu0
      %702 = vmatprep.subr.mxu0 0.0
      %v703 = vand.u32 %v614, 4294901760
      %v704 = vsub.f32 %v614, %v703
      %v705 = vand.u32 %v704, 4294901760
      %v706 = vsub.f32 %v704, %v705
      %v707 = vand.u32 %v706, 4294901760
      %708 = vmatpush1.msra.mxu0 %v707
      %709 = vmatprep.subr.mxu0 0.0
      %v710 = vand.u32 %v615, 4294901760
      %v711 = vsub.f32 %v615, %v710
      %v712 = vand.u32 %v711, 4294901760
      %v713 = vsub.f32 %v711, %v712
      %v714 = vand.u32 %v713, 4294901760
      %715 = vmatpush1.msra.mxu0 %v714
      %716 = vmatprep.subr.mxu0 0.0
      %v717 = vand.u32 %v622, 4294901760
      %v718 = vsub.f32 %v622, %v717
      %v719 = vand.u32 %v718, 4294901760
      %v720 = vsub.f32 %v718, %v719
      %v721 = vand.u32 %v720, 4294901760
      %722 = vmatpush1.msra.mxu0 %v721
      %723 = vmatprep.subr.mxu0 0.0
      %724 = vmatpush1.msra.mxu0 0.0
      %725 = vmatprep.subr.mxu0 0.0
      %726 = vmatpush1.msra.mxu0 0.0
      %727 = vmatprep.subr.mxu0 0.0
      %728 = vmatpush1.msra.mxu0 0.0
      %729 = vmatprep.subr.mxu0 0.0
      %730 = vmatpush1.msra.mxu0 0.0
      %731 = vmatprep.subr.mxu0 0.0
      %732 = vmatpush1.msra.mxu0 0.0
      %733 = vmatprep.subr.mxu0 0.0
      %734 = vmatpush1.msra.mxu0 0.0
      %735 = vmatprep.subr.mxu0 0.0
      %736 = vmatpush1.msra.mxu0 0.0
      %737 = vmatprep.subr.mxu0 0.0
      %738 = vmatpush1.msra.mxu0 0.0
      %739 = vmatprep.subr.mxu0 0.0
      %740 = vmatpush1.msra.mxu0 0.0
      %741 = vmatprep.subr.mxu0 0.0
      %742 = vmatpush1.msra.mxu0 0.0
      %743 = vmatprep.subr.mxu0 0.0
      %744 = vmatpush1.msra.mxu0 0.0
      %745 = vmatprep.subr.mxu0 0.0
      %746 = vmatpush1.msra.mxu0 0.0
      %747 = vmatprep.subr.mxu0 0.0
      %748 = vmatpush1.msra.mxu0 0.0
      %749 = vmatprep.subr.mxu0 0.0
      %750 = vmatpush1.msra.mxu0 0.0
      %751 = vmatprep.subr.mxu0 0.0
      %752 = vmatpush1.msra.mxu0 0.0
      %753 = vmatprep.subr.mxu0 0.0
      %754 = vmatpush1.msra.mxu0 0.0
      %755 = vmatprep.subr.mxu0 0.0
      %756 = vmatpush1.msra.mxu0 0.0
      %757 = vmatprep.subr.mxu0 0.0
      %758 = vmatpush1.msra.mxu0 0.0
      %759 = vmatprep.subr.mxu0 0.0
      %760 = vmatpush1.msra.mxu0 0.0
      %761 = vmatprep.subr.mxu0 0.0
      %762 = vmatpush1.msra.mxu0 0.0
      %763 = vmatprep.subr.mxu0 0.0
      %764 = vmatpush1.msra.mxu0 0.0
      %765 = vmatprep.subr.mxu0 0.0
      %766 = vmatpush1.msra.mxu0 0.0
      %767 = vmatprep.subr.mxu0 0.0
      %768 = vmatpush1.msra.mxu0 0.0
      %769 = vmatprep.subr.mxu0 0.0
      %770 = vmatpush1.msra.mxu0 0.0
      %771 = vmatprep.subr.mxu0 0.0
      %772 = vmatpush1.msra.mxu0 0.0
      %773 = vmatprep.subr.mxu0 0.0
      %774 = vmatpush1.msra.mxu0 0.0
      %775 = vmatprep.subr.mxu0 0.0
      %776 = vmatpush1.msra.mxu0 0.0
      %777 = vmatprep.subr.mxu0 0.0
      %778 = vmatpush1.msra.mxu0 0.0
      %779 = vmatprep.subr.mxu0 0.0
      %780 = vmatpush1.msra.mxu0 0.0
      %781 = vmatprep.mubr.f32.mxu0 0.0
      %v782 = vand.u32 %v618, 4294901760
      %783 = vmatmul.mubr.f32.gmra.mrb[0].mxu0 %v782
      %v784 = vpop.f32.mrb[0].mxu0
      %v785 = vadd.f32 %v699, %v784
      %v786 = vpop.f32.mrb[0].mxu0
      %787 = vdwg.mxu0
      %788 = vmatprep.subr.mxu0 0.0
      %v789 = vand.u32 %v614, 4294901760
      %v790 = vsub.f32 %v614, %v789
      %791 = vmatpush1.msra.mxu0 %v790
      %792 = vmatprep.subr.mxu0 0.0
      %v793 = vand.u32 %v615, 4294901760
      %v794 = vsub.f32 %v615, %v793
      %795 = vmatpush1.msra.mxu0 %v794
      %796 = vmatprep.subr.mxu0 0.0
      %v797 = vand.u32 %v622, 4294901760
      %v798 = vsub.f32 %v622, %v797
      %799 = vmatpush1.msra.mxu0 %v798
      %800 = vmatprep.subr.mxu0 0.0
      %801 = vmatpush1.msra.mxu0 0.0
      %802 = vmatprep.subr.mxu0 0.0
      %803 = vmatpush1.msra.mxu0 0.0
      %804 = vmatprep.subr.mxu0 0.0
      %805 = vmatpush1.msra.mxu0 0.0
      %806 = vmatprep.subr.mxu0 0.0
      %807 = vmatpush1.msra.mxu0 0.0
      %808 = vmatprep.subr.mxu0 0.0
      %809 = vmatpush1.msra.mxu0 0.0
      %810 = vmatprep.subr.mxu0 0.0
      %811 = vmatpush1.msra.mxu0 0.0
      %812 = vmatprep.subr.mxu0 0.0
      %813 = vmatpush1.msra.mxu0 0.0
      %814 = vmatprep.subr.mxu0 0.0
      %815 = vmatpush1.msra.mxu0 0.0
      %816 = vmatprep.subr.mxu0 0.0
      %817 = vmatpush1.msra.mxu0 0.0
      %818 = vmatprep.subr.mxu0 0.0
      %819 = vmatpush1.msra.mxu0 0.0
      %820 = vmatprep.subr.mxu0 0.0
      %821 = vmatpush1.msra.mxu0 0.0
      %822 = vmatprep.subr.mxu0 0.0
      %823 = vmatpush1.msra.mxu0 0.0
      %824 = vmatprep.subr.mxu0 0.0
      %825 = vmatpush1.msra.mxu0 0.0
      %826 = vmatprep.subr.mxu0 0.0
      %827 = vmatpush1.msra.mxu0 0.0
      %828 = vmatprep.subr.mxu0 0.0
      %829 = vmatpush1.msra.mxu0 0.0
      %830 = vmatprep.subr.mxu0 0.0
      %831 = vmatpush1.msra.mxu0 0.0
      %832 = vmatprep.subr.mxu0 0.0
      %833 = vmatpush1.msra.mxu0 0.0
      %834 = vmatprep.subr.mxu0 0.0
      %835 = vmatpush1.msra.mxu0 0.0
      %836 = vmatprep.subr.mxu0 0.0
      %837 = vmatpush1.msra.mxu0 0.0
      %838 = vmatprep.subr.mxu0 0.0
      %839 = vmatpush1.msra.mxu0 0.0
      %840 = vmatprep.subr.mxu0 0.0
      %841 = vmatpush1.msra.mxu0 0.0
      %842 = vmatprep.subr.mxu0 0.0
      %843 = vmatpush1.msra.mxu0 0.0
      %844 = vmatprep.subr.mxu0 0.0
      %845 = vmatpush1.msra.mxu0 0.0
      %846 = vmatprep.subr.mxu0 0.0
      %847 = vmatpush1.msra.mxu0 0.0
      %848 = vmatprep.subr.mxu0 0.0
      %849 = vmatpush1.msra.mxu0 0.0
      %850 = vmatprep.subr.mxu0 0.0
      %851 = vmatpush1.msra.mxu0 0.0
      %852 = vmatprep.subr.mxu0 0.0
      %853 = vmatpush1.msra.mxu0 0.0
      %854 = vmatprep.subr.mxu0 0.0
      %855 = vmatpush1.msra.mxu0 0.0
      %856 = vmatprep.subr.mxu0 0.0
      %857 = vmatpush1.msra.mxu0 0.0
      %858 = vmatprep.mubr.f32.mxu0 0.0
      %v859 = vand.u32 %v618, 4294901760
      %v860 = vsub.f32 %v618, %v859
      %861 = vmatmul.mubr.f32.gmra.mrb[0].mxu0 %v860
      %v862 = vpop.f32.mrb[0].mxu0
      %v863 = vadd.f32 %v785, %v862
      %v864 = vpop.f32.mrb[0].mxu0
      %865 = vdwg.mxu0
      %866 = vmatprep.subr.mxu0 0.0
      %v867 = vand.u32 %v614, 4294901760
      %868 = vmatpush1.msra.mxu0 %v867
      %869 = vmatprep.subr.mxu0 0.0
      %v870 = vand.u32 %v615, 4294901760
      %871 = vmatpush1.msra.mxu0 %v870
      %872 = vmatprep.subr.mxu0 0.0
      %v873 = vand.u32 %v622, 4294901760
      %874 = vmatpush1.msra.mxu0 %v873
      %875 = vmatprep.subr.mxu0 0.0
      %876 = vmatpush1.msra.mxu0 0.0
      %877 = vmatprep.subr.mxu0 0.0
      %878 = vmatpush1.msra.mxu0 0.0
      %879 = vmatprep.subr.mxu0 0.0
      %880 = vmatpush1.msra.mxu0 0.0
      %881 = vmatprep.subr.mxu0 0.0
      %882 = vmatpush1.msra.mxu0 0.0
      %883 = vmatprep.subr.mxu0 0.0
      %884 = vmatpush1.msra.mxu0 0.0
      %885 = vmatprep.subr.mxu0 0.0
      %886 = vmatpush1.msra.mxu0 0.0
      %887 = vmatprep.subr.mxu0 0.0
      %888 = vmatpush1.msra.mxu0 0.0
      %889 = vmatprep.subr.mxu0 0.0
      %890 = vmatpush1.msra.mxu0 0.0
      %891 = vmatprep.subr.mxu0 0.0
      %892 = vmatpush1.msra.mxu0 0.0
      %893 = vmatprep.subr.mxu0 0.0
      %894 = vmatpush1.msra.mxu0 0.0
      %895 = vmatprep.subr.mxu0 0.0
      %896 = vmatpush1.msra.mxu0 0.0
      %897 = vmatprep.subr.mxu0 0.0
      %898 = vmatpush1.msra.mxu0 0.0
      %899 = vmatprep.subr.mxu0 0.0
      %900 = vmatpush1.msra.mxu0 0.0
      %901 = vmatprep.subr.mxu0 0.0
      %902 = vmatpush1.msra.mxu0 0.0
      %903 = vmatprep.subr.mxu0 0.0
      %904 = vmatpush1.msra.mxu0 0.0
      %905 = vmatprep.subr.mxu0 0.0
      %906 = vmatpush1.msra.mxu0 0.0
      %907 = vmatprep.subr.mxu0 0.0
      %908 = vmatpush1.msra.mxu0 0.0
      %909 = vmatprep.subr.mxu0 0.0
      %910 = vmatpush1.msra.mxu0 0.0
      %911 = vmatprep.subr.mxu0 0.0
      %912 = vmatpush1.msra.mxu0 0.0
      %913 = vmatprep.subr.mxu0 0.0
      %914 = vmatpush1.msra.mxu0 0.0
      %915 = vmatprep.subr.mxu0 0.0
      %916 = vmatpush1.msra.mxu0 0.0
      %917 = vmatprep.subr.mxu0 0.0
      %918 = vmatpush1.msra.mxu0 0.0
      %919 = vmatprep.subr.mxu0 0.0
      %920 = vmatpush1.msra.mxu0 0.0
      %921 = vmatprep.subr.mxu0 0.0
      %922 = vmatpush1.msra.mxu0 0.0
      %923 = vmatprep.subr.mxu0 0.0
      %924 = vmatpush1.msra.mxu0 0.0
      %925 = vmatprep.subr.mxu0 0.0
      %926 = vmatpush1.msra.mxu0 0.0
      %927 = vmatprep.subr.mxu0 0.0
      %928 = vmatpush1.msra.mxu0 0.0
      %929 = vmatprep.subr.mxu0 0.0
      %930 = vmatpush1.msra.mxu0 0.0
      %931 = vmatprep.subr.mxu0 0.0
      %932 = vmatpush1.msra.mxu0 0.0
      %933 = vmatprep.mubr.f32.mxu0 0.0
      %v934 = vand.u32 %v618, 4294901760
      %v935 = vsub.f32 %v618, %v934
      %v936 = vand.u32 %v935, 4294901760
      %937 = vmatmul.mubr.f32.gmra.mrb[0].mxu0 %v936
      %v938 = vpop.f32.mrb[0].mxu0
      %v939 = vadd.f32 %v863, %v938
      %v940 = vpop.f32.mrb[0].mxu0
      %941 = vdwg.mxu0
      %942 = vmatprep.subr.mxu0 0.0
      %v943 = vand.u32 %v614, 4294901760
      %v944 = vsub.f32 %v614, %v943
      %v945 = vand.u32 %v944, 4294901760
      %946 = vmatpush1.msra.mxu0 %v945
      %947 = vmatprep.subr.mxu0 0.0
      %v948 = vand.u32 %v615, 4294901760
      %v949 = vsub.f32 %v615, %v948
      %v950 = vand.u32 %v949, 4294901760
      %951 = vmatpush1.msra.mxu0 %v950
      %952 = vmatprep.subr.mxu0 0.0
      %v953 = vand.u32 %v622, 4294901760
      %v954 = vsub.f32 %v622, %v953
      %v955 = vand.u32 %v954, 4294901760
      %956 = vmatpush1.msra.mxu0 %v955
      %957 = vmatprep.subr.mxu0 0.0
      %958 = vmatpush1.msra.mxu0 0.0
      %959 = vmatprep.subr.mxu0 0.0
      %960 = vmatpush1.msra.mxu0 0.0
      %961 = vmatprep.subr.mxu0 0.0
      %962 = vmatpush1.msra.mxu0 0.0
      %963 = vmatprep.subr.mxu0 0.0
      %964 = vmatpush1.msra.mxu0 0.0
      %965 = vmatprep.subr.mxu0 0.0
      %966 = vmatpush1.msra.mxu0 0.0
      %967 = vmatprep.subr.mxu0 0.0
      %968 = vmatpush1.msra.mxu0 0.0
      %969 = vmatprep.subr.mxu0 0.0
      %970 = vmatpush1.msra.mxu0 0.0
      %971 = vmatprep.subr.mxu0 0.0
      %972 = vmatpush1.msra.mxu0 0.0
      %973 = vmatprep.subr.mxu0 0.0
      %974 = vmatpush1.msra.mxu0 0.0
      %975 = vmatprep.subr.mxu0 0.0
      %976 = vmatpush1.msra.mxu0 0.0
      %977 = vmatprep.subr.mxu0 0.0
      %978 = vmatpush1.msra.mxu0 0.0
      %979 = vmatprep.subr.mxu0 0.0
      %980 = vmatpush1.msra.mxu0 0.0
      %981 = vmatprep.subr.mxu0 0.0
      %982 = vmatpush1.msra.mxu0 0.0
      %983 = vmatprep.subr.mxu0 0.0
      %984 = vmatpush1.msra.mxu0 0.0
      %985 = vmatprep.subr.mxu0 0.0
      %986 = vmatpush1.msra.mxu0 0.0
      %987 = vmatprep.subr.mxu0 0.0
      %988 = vmatpush1.msra.mxu0 0.0
      %989 = vmatprep.subr.mxu0 0.0
      %990 = vmatpush1.msra.mxu0 0.0
      %991 = vmatprep.subr.mxu0 0.0
      %992 = vmatpush1.msra.mxu0 0.0
      %993 = vmatprep.subr.mxu0 0.0
      %994 = vmatpush1.msra.mxu0 0.0
      %995 = vmatprep.subr.mxu0 0.0
      %996 = vmatpush1.msra.mxu0 0.0
      %997 = vmatprep.subr.mxu0 0.0
      %998 = vmatpush1.msra.mxu0 0.0
      %999 = vmatprep.subr.mxu0 0.0
      %1000 = vmatpush1.msra.mxu0 0.0
      %1001 = vmatprep.subr.mxu0 0.0
      %1002 = vmatpush1.msra.mxu0 0.0
      %1003 = vmatprep.subr.mxu0 0.0
      %1004 = vmatpush1.msra.mxu0 0.0
      %1005 = vmatprep.subr.mxu0 0.0
      %1006 = vmatpush1.msra.mxu0 0.0
      %1007 = vmatprep.subr.mxu0 0.0
      %1008 = vmatpush1.msra.mxu0 0.0
      %1009 = vmatprep.subr.mxu0 0.0
      %1010 = vmatpush1.msra.mxu0 0.0
      %1011 = vmatprep.subr.mxu0 0.0
      %1012 = vmatpush1.msra.mxu0 0.0
      %1013 = vmatprep.subr.mxu0 0.0
      %1014 = vmatpush1.msra.mxu0 0.0
      %1015 = vmatprep.mubr.f32.mxu0 0.0
      %v1016 = vand.u32 %v618, 4294901760
      %1017 = vmatmul.mubr.f32.gmra.mrb[0].mxu0 %v1016
      %v1018 = vpop.f32.mrb[0].mxu0
      %v1019 = vadd.f32 %v939, %v1018
      %v1020 = vpop.f32.mrb[0].mxu0
      %1021 = vdwg.mxu0
      %1022 = vmatprep.subr.mxu0 0.0
      %v1023 = vand.u32 %v614, 4294901760
      %1024 = vmatpush1.msra.mxu0 %v1023
      %1025 = vmatprep.subr.mxu0 0.0
      %v1026 = vand.u32 %v615, 4294901760
      %1027 = vmatpush1.msra.mxu0 %v1026
      %1028 = vmatprep.subr.mxu0 0.0
      %v1029 = vand.u32 %v622, 4294901760
      %1030 = vmatpush1.msra.mxu0 %v1029
      %1031 = vmatprep.subr.mxu0 0.0
      %1032 = vmatpush1.msra.mxu0 0.0
      %1033 = vmatprep.subr.mxu0 0.0
      %1034 = vmatpush1.msra.mxu0 0.0
      %1035 = vmatprep.subr.mxu0 0.0
      %1036 = vmatpush1.msra.mxu0 0.0
      %1037 = vmatprep.subr.mxu0 0.0
      %1038 = vmatpush1.msra.mxu0 0.0
      %1039 = vmatprep.subr.mxu0 0.0
      %1040 = vmatpush1.msra.mxu0 0.0
      %1041 = vmatprep.subr.mxu0 0.0
      %1042 = vmatpush1.msra.mxu0 0.0
      %1043 = vmatprep.subr.mxu0 0.0
      %1044 = vmatpush1.msra.mxu0 0.0
      %1045 = vmatprep.subr.mxu0 0.0
      %1046 = vmatpush1.msra.mxu0 0.0
      %1047 = vmatprep.subr.mxu0 0.0
      %1048 = vmatpush1.msra.mxu0 0.0
      %1049 = vmatprep.subr.mxu0 0.0
      %1050 = vmatpush1.msra.mxu0 0.0
      %1051 = vmatprep.subr.mxu0 0.0
      %1052 = vmatpush1.msra.mxu0 0.0
      %1053 = vmatprep.subr.mxu0 0.0
      %1054 = vmatpush1.msra.mxu0 0.0
      %1055 = vmatprep.subr.mxu0 0.0
      %1056 = vmatpush1.msra.mxu0 0.0
      %1057 = vmatprep.subr.mxu0 0.0
      %1058 = vmatpush1.msra.mxu0 0.0
      %1059 = vmatprep.subr.mxu0 0.0
      %1060 = vmatpush1.msra.mxu0 0.0
      %1061 = vmatprep.subr.mxu0 0.0
      %1062 = vmatpush1.msra.mxu0 0.0
      %1063 = vmatprep.subr.mxu0 0.0
      %1064 = vmatpush1.msra.mxu0 0.0
      %1065 = vmatprep.subr.mxu0 0.0
      %1066 = vmatpush1.msra.mxu0 0.0
      %1067 = vmatprep.subr.mxu0 0.0
      %1068 = vmatpush1.msra.mxu0 0.0
      %1069 = vmatprep.subr.mxu0 0.0
      %1070 = vmatpush1.msra.mxu0 0.0
      %1071 = vmatprep.subr.mxu0 0.0
      %1072 = vmatpush1.msra.mxu0 0.0
      %1073 = vmatprep.subr.mxu0 0.0
      %1074 = vmatpush1.msra.mxu0 0.0
      %1075 = vmatprep.subr.mxu0 0.0
      %1076 = vmatpush1.msra.mxu0 0.0
      %1077 = vmatprep.subr.mxu0 0.0
      %1078 = vmatpush1.msra.mxu0 0.0
      %1079 = vmatprep.subr.mxu0 0.0
      %1080 = vmatpush1.msra.mxu0 0.0
      %1081 = vmatprep.subr.mxu0 0.0
      %1082 = vmatpush1.msra.mxu0 0.0
      %1083 = vmatprep.subr.mxu0 0.0
      %1084 = vmatpush1.msra.mxu0 0.0
      %1085 = vmatprep.subr.mxu0 0.0
      %1086 = vmatpush1.msra.mxu0 0.0
      %1087 = vmatprep.subr.mxu0 0.0
      %1088 = vmatpush1.msra.mxu0 0.0
      %1089 = vmatprep.mubr.f32.mxu0 0.0
      %v1090 = vand.u32 %v618, 4294901760
      %1091 = vmatmul.mubr.f32.gmra.mrb[0].mxu0 %v1090
      %v1092 = vpop.f32.mrb[0].mxu0
      %v1093 = vadd.f32 %v1019, %v1092
      %v1094 = vpop.f32.mrb[0].mxu0
      %1095 = vdwg.mxu0
      %v1097 = vlaneseq
      %v1098 = vshrl.u32 %v1097, 7
      %v1099 = vsub.s32 0, %v1098
      %v1100 = vrot.slane %v613, %v1099
      %v1102 = vadd.f32 %v1100, %v1093
      %s1103 = scalar_lea.vmem %s4, 24
      %v1104 = vld [vmem:[%s1103] sm:$0xff]
      %v1105 = vld [vmem:[%s1103 + $0x8] sm:$0xff]
      %v1106 = vld [vmem:[%s1103 + $0x10] sm:$0x3]
      %v1108 = vsel %vm542, %v601, 0
      %v1111 = vsel %vm620, %v1106, 0
      %1113 = vmatprep.subr.mxu0 0.0
      %v1114 = vand.u32 %v1104, 4294901760
      %1115 = vmatpush1.msra.mxu0 %v1114
      %1116 = vmatprep.subr.mxu0 0.0
      %v1117 = vand.u32 %v1105, 4294901760
      %1118 = vmatpush1.msra.mxu0 %v1117
      %1119 = vmatprep.subr.mxu0 0.0
      %v1120 = vand.u32 %v1111, 4294901760
      %1121 = vmatpush1.msra.mxu0 %v1120
      %1122 = vmatprep.subr.mxu0 0.0
      %1123 = vmatpush1.msra.mxu0 0.0
      %1124 = vmatprep.subr.mxu0 0.0
      %1125 = vmatpush1.msra.mxu0 0.0
      %1126 = vmatprep.subr.mxu0 0.0
      %1127 = vmatpush1.msra.mxu0 0.0
      %1128 = vmatprep.subr.mxu0 0.0
      %1129 = vmatpush1.msra.mxu0 0.0
      %1130 = vmatprep.subr.mxu0 0.0
      %1131 = vmatpush1.msra.mxu0 0.0
      %1132 = vmatprep.subr.mxu0 0.0
      %1133 = vmatpush1.msra.mxu0 0.0
      %1134 = vmatprep.subr.mxu0 0.0
      %1135 = vmatpush1.msra.mxu0 0.0
      %1136 = vmatprep.subr.mxu0 0.0
      %1137 = vmatpush1.msra.mxu0 0.0
      %1138 = vmatprep.subr.mxu0 0.0
      %1139 = vmatpush1.msra.mxu0 0.0
      %1140 = vmatprep.subr.mxu0 0.0
      %1141 = vmatpush1.msra.mxu0 0.0
      %1142 = vmatprep.subr.mxu0 0.0
      %1143 = vmatpush1.msra.mxu0 0.0
      %1144 = vmatprep.subr.mxu0 0.0
      %1145 = vmatpush1.msra.mxu0 0.0
      %1146 = vmatprep.subr.mxu0 0.0
      %1147 = vmatpush1.msra.mxu0 0.0
      %1148 = vmatprep.subr.mxu0 0.0
      %1149 = vmatpush1.msra.mxu0 0.0
      %1150 = vmatprep.subr.mxu0 0.0
      %1151 = vmatpush1.msra.mxu0 0.0
      %1152 = vmatprep.subr.mxu0 0.0
      %1153 = vmatpush1.msra.mxu0 0.0
      %1154 = vmatprep.subr.mxu0 0.0
      %1155 = vmatpush1.msra.mxu0 0.0
      %1156 = vmatprep.subr.mxu0 0.0
      %1157 = vmatpush1.msra.mxu0 0.0
      %1158 = vmatprep.subr.mxu0 0.0
      %1159 = vmatpush1.msra.mxu0 0.0
      %1160 = vmatprep.subr.mxu0 0.0
      %1161 = vmatpush1.msra.mxu0 0.0
      %1162 = vmatprep.subr.mxu0 0.0
      %1163 = vmatpush1.msra.mxu0 0.0
      %1164 = vmatprep.subr.mxu0 0.0
      %1165 = vmatpush1.msra.mxu0 0.0
      %1166 = vmatprep.subr.mxu0 0.0
      %1167 = vmatpush1.msra.mxu0 0.0
      %1168 = vmatprep.subr.mxu0 0.0
      %1169 = vmatpush1.msra.mxu0 0.0
      %1170 = vmatprep.subr.mxu0 0.0
      %1171 = vmatpush1.msra.mxu0 0.0
      %1172 = vmatprep.subr.mxu0 0.0
      %1173 = vmatpush1.msra.mxu0 0.0
      %1174 = vmatprep.subr.mxu0 0.0
      %1175 = vmatpush1.msra.mxu0 0.0
      %1176 = vmatprep.subr.mxu0 0.0
      %1177 = vmatpush1.msra.mxu0 0.0
      %1178 = vmatprep.subr.mxu0 0.0
      %1179 = vmatpush1.msra.mxu0 0.0
      %1180 = vmatprep.mubr.f32.mxu0 0.0
      %v1181 = vand.u32 %v1108, 4294901760
      %v1182 = vsub.f32 %v1108, %v1181
      %v1183 = vand.u32 %v1182, 4294901760
      %v1184 = vsub.f32 %v1182, %v1183
      %v1185 = vand.u32 %v1184, 4294901760
      %1186 = vmatmul.mubr.f32.gmra.mrb[0].mxu0 %v1185
      %v1187 = vpop.f32.mrb[0].mxu0
      %v1188 = vadd.f32 0.0, %v1187
      %v1189 = vpop.f32.mrb[0].mxu0
      %1190 = vdwg.mxu0
      %1191 = vmatprep.subr.mxu0 0.0
      %v1192 = vand.u32 %v1104, 4294901760
      %v1193 = vsub.f32 %v1104, %v1192
      %v1194 = vand.u32 %v1193, 4294901760
      %v1195 = vsub.f32 %v1193, %v1194
      %v1196 = vand.u32 %v1195, 4294901760
      %1197 = vmatpush1.msra.mxu0 %v1196
      %1198 = vmatprep.subr.mxu0 0.0
      %v1199 = vand.u32 %v1105, 4294901760
      %v1200 = vsub.f32 %v1105, %v1199
      %v1201 = vand.u32 %v1200, 4294901760
      %v1202 = vsub.f32 %v1200, %v1201
      %v1203 = vand.u32 %v1202, 4294901760
      %1204 = vmatpush1.msra.mxu0 %v1203
      %1205 = vmatprep.subr.mxu0 0.0
      %v1206 = vand.u32 %v1111, 4294901760
      %v1207 = vsub.f32 %v1111, %v1206
      %v1208 = vand.u32 %v1207, 4294901760
      %v1209 = vsub.f32 %v1207, %v1208
      %v1210 = vand.u32 %v1209, 4294901760
      %1211 = vmatpush1.msra.mxu0 %v1210
      %1212 = vmatprep.subr.mxu0 0.0
      %1213 = vmatpush1.msra.mxu0 0.0
      %1214 = vmatprep.subr.mxu0 0.0
      %1215 = vmatpush1.msra.mxu0 0.0
      %1216 = vmatprep.subr.mxu0 0.0
      %1217 = vmatpush1.msra.mxu0 0.0
      %1218 = vmatprep.subr.mxu0 0.0
      %1219 = vmatpush1.msra.mxu0 0.0
      %1220 = vmatprep.subr.mxu0 0.0
      %1221 = vmatpush1.msra.mxu0 0.0
      %1222 = vmatprep.subr.mxu0 0.0
      %1223 = vmatpush1.msra.mxu0 0.0
      %1224 = vmatprep.subr.mxu0 0.0
      %1225 = vmatpush1.msra.mxu0 0.0
      %1226 = vmatprep.subr.mxu0 0.0
      %1227 = vmatpush1.msra.mxu0 0.0
      %1228 = vmatprep.subr.mxu0 0.0
      %1229 = vmatpush1.msra.mxu0 0.0
      %1230 = vmatprep.subr.mxu0 0.0
      %1231 = vmatpush1.msra.mxu0 0.0
      %1232 = vmatprep.subr.mxu0 0.0
      %1233 = vmatpush1.msra.mxu0 0.0
      %1234 = vmatprep.subr.mxu0 0.0
      %1235 = vmatpush1.msra.mxu0 0.0
      %1236 = vmatprep.subr.mxu0 0.0
      %1237 = vmatpush1.msra.mxu0 0.0
      %1238 = vmatprep.subr.mxu0 0.0
      %1239 = vmatpush1.msra.mxu0 0.0
      %1240 = vmatprep.subr.mxu0 0.0
      %1241 = vmatpush1.msra.mxu0 0.0
      %1242 = vmatprep.subr.mxu0 0.0
      %1243 = vmatpush1.msra.mxu0 0.0
      %1244 = vmatprep.subr.mxu0 0.0
      %1245 = vmatpush1.msra.mxu0 0.0
      %1246 = vmatprep.subr.mxu0 0.0
      %1247 = vmatpush1.msra.mxu0 0.0
      %1248 = vmatprep.subr.mxu0 0.0
      %1249 = vmatpush1.msra.mxu0 0.0
      %1250 = vmatprep.subr.mxu0 0.0
      %1251 = vmatpush1.msra.mxu0 0.0
      %1252 = vmatprep.subr.mxu0 0.0
      %1253 = vmatpush1.msra.mxu0 0.0
      %1254 = vmatprep.subr.mxu0 0.0
      %1255 = vmatpush1.msra.mxu0 0.0
      %1256 = vmatprep.subr.mxu0 0.0
      %1257 = vmatpush1.msra.mxu0 0.0
      %1258 = vmatprep.subr.mxu0 0.0
      %1259 = vmatpush1.msra.mxu0 0.0
      %1260 = vmatprep.subr.mxu0 0.0
      %1261 = vmatpush1.msra.mxu0 0.0
      %1262 = vmatprep.subr.mxu0 0.0
      %1263 = vmatpush1.msra.mxu0 0.0
      %1264 = vmatprep.subr.mxu0 0.0
      %1265 = vmatpush1.msra.mxu0 0.0
      %1266 = vmatprep.subr.mxu0 0.0
      %1267 = vmatpush1.msra.mxu0 0.0
      %1268 = vmatprep.subr.mxu0 0.0
      %1269 = vmatpush1.msra.mxu0 0.0
      %1270 = vmatprep.mubr.f32.mxu0 0.0
      %v1271 = vand.u32 %v1108, 4294901760
      %1272 = vmatmul.mubr.f32.gmra.mrb[0].mxu0 %v1271
      %v1273 = vpop.f32.mrb[0].mxu0
      %v1274 = vadd.f32 %v1188, %v1273
      %v1275 = vpop.f32.mrb[0].mxu0
      %1276 = vdwg.mxu0
      %1277 = vmatprep.subr.mxu0 0.0
      %v1278 = vand.u32 %v1104, 4294901760
      %v1279 = vsub.f32 %v1104, %v1278
      %1280 = vmatpush1.msra.mxu0 %v1279
      %1281 = vmatprep.subr.mxu0 0.0
      %v1282 = vand.u32 %v1105, 4294901760
      %v1283 = vsub.f32 %v1105, %v1282
      %1284 = vmatpush1.msra.mxu0 %v1283
      %1285 = vmatprep.subr.mxu0 0.0
      %v1286 = vand.u32 %v1111, 4294901760
      %v1287 = vsub.f32 %v1111, %v1286
      %1288 = vmatpush1.msra.mxu0 %v1287
      %1289 = vmatprep.subr.mxu0 0.0
      %1290 = vmatpush1.msra.mxu0 0.0
      %1291 = vmatprep.subr.mxu0 0.0
      %1292 = vmatpush1.msra.mxu0 0.0
      %1293 = vmatprep.subr.mxu0 0.0
      %1294 = vmatpush1.msra.mxu0 0.0
      %1295 = vmatprep.subr.mxu0 0.0
      %1296 = vmatpush1.msra.mxu0 0.0
      %1297 = vmatprep.subr.mxu0 0.0
      %1298 = vmatpush1.msra.mxu0 0.0
      %1299 = vmatprep.subr.mxu0 0.0
      %1300 = vmatpush1.msra.mxu0 0.0
      %1301 = vmatprep.subr.mxu0 0.0
      %1302 = vmatpush1.msra.mxu0 0.0
      %1303 = vmatprep.subr.mxu0 0.0
      %1304 = vmatpush1.msra.mxu0 0.0
      %1305 = vmatprep.subr.mxu0 0.0
      %1306 = vmatpush1.msra.mxu0 0.0
      %1307 = vmatprep.subr.mxu0 0.0
      %1308 = vmatpush1.msra.mxu0 0.0
      %1309 = vmatprep.subr.mxu0 0.0
      %1310 = vmatpush1.msra.mxu0 0.0
      %1311 = vmatprep.subr.mxu0 0.0
      %1312 = vmatpush1.msra.mxu0 0.0
      %1313 = vmatprep.subr.mxu0 0.0
      %1314 = vmatpush1.msra.mxu0 0.0
      %1315 = vmatprep.subr.mxu0 0.0
      %1316 = vmatpush1.msra.mxu0 0.0
      %1317 = vmatprep.subr.mxu0 0.0
      %1318 = vmatpush1.msra.mxu0 0.0
      %1319 = vmatprep.subr.mxu0 0.0
      %1320 = vmatpush1.msra.mxu0 0.0
      %1321 = vmatprep.subr.mxu0 0.0
      %1322 = vmatpush1.msra.mxu0 0.0
      %1323 = vmatprep.subr.mxu0 0.0
      %1324 = vmatpush1.msra.mxu0 0.0
      %1325 = vmatprep.subr.mxu0 0.0
      %1326 = vmatpush1.msra.mxu0 0.0
      %1327 = vmatprep.subr.mxu0 0.0
      %1328 = vmatpush1.msra.mxu0 0.0
      %1329 = vmatprep.subr.mxu0 0.0
      %1330 = vmatpush1.msra.mxu0 0.0
      %1331 = vmatprep.subr.mxu0 0.0
      %1332 = vmatpush1.msra.mxu0 0.0
      %1333 = vmatprep.subr.mxu0 0.0
      %1334 = vmatpush1.msra.mxu0 0.0
      %1335 = vmatprep.subr.mxu0 0.0
      %1336 = vmatpush1.msra.mxu0 0.0
      %1337 = vmatprep.subr.mxu0 0.0
      %1338 = vmatpush1.msra.mxu0 0.0
      %1339 = vmatprep.subr.mxu0 0.0
      %1340 = vmatpush1.msra.mxu0 0.0
      %1341 = vmatprep.subr.mxu0 0.0
      %1342 = vmatpush1.msra.mxu0 0.0
      %1343 = vmatprep.subr.mxu0 0.0
      %1344 = vmatpush1.msra.mxu0 0.0
      %1345 = vmatprep.subr.mxu0 0.0
      %1346 = vmatpush1.msra.mxu0 0.0
      %1347 = vmatprep.mubr.f32.mxu0 0.0
      %v1348 = vand.u32 %v1108, 4294901760
      %v1349 = vsub.f32 %v1108, %v1348
      %1350 = vmatmul.mubr.f32.gmra.mrb[0].mxu0 %v1349
      %v1351 = vpop.f32.mrb[0].mxu0
      %v1352 = vadd.f32 %v1274, %v1351
      %v1353 = vpop.f32.mrb[0].mxu0
      %1354 = vdwg.mxu0
      %1355 = vmatprep.subr.mxu0 0.0
      %v1356 = vand.u32 %v1104, 4294901760
      %1357 = vmatpush1.msra.mxu0 %v1356
      %1358 = vmatprep.subr.mxu0 0.0
      %v1359 = vand.u32 %v1105, 4294901760
      %1360 = vmatpush1.msra.mxu0 %v1359
      %1361 = vmatprep.subr.mxu0 0.0
      %v1362 = vand.u32 %v1111, 4294901760
      %1363 = vmatpush1.msra.mxu0 %v1362
      %1364 = vmatprep.subr.mxu0 0.0
      %1365 = vmatpush1.msra.mxu0 0.0
      %1366 = vmatprep.subr.mxu0 0.0
      %1367 = vmatpush1.msra.mxu0 0.0
      %1368 = vmatprep.subr.mxu0 0.0
      %1369 = vmatpush1.msra.mxu0 0.0
      %1370 = vmatprep.subr.mxu0 0.0
      %1371 = vmatpush1.msra.mxu0 0.0
      %1372 = vmatprep.subr.mxu0 0.0
      %1373 = vmatpush1.msra.mxu0 0.0
      %1374 = vmatprep.subr.mxu0 0.0
      %1375 = vmatpush1.msra.mxu0 0.0
      %1376 = vmatprep.subr.mxu0 0.0
      %1377 = vmatpush1.msra.mxu0 0.0
      %1378 = vmatprep.subr.mxu0 0.0
      %1379 = vmatpush1.msra.mxu0 0.0
      %1380 = vmatprep.subr.mxu0 0.0
      %1381 = vmatpush1.msra.mxu0 0.0
      %1382 = vmatprep.subr.mxu0 0.0
      %1383 = vmatpush1.msra.mxu0 0.0
      %1384 = vmatprep.subr.mxu0 0.0
      %1385 = vmatpush1.msra.mxu0 0.0
      %1386 = vmatprep.subr.mxu0 0.0
      %1387 = vmatpush1.msra.mxu0 0.0
      %1388 = vmatprep.subr.mxu0 0.0
      %1389 = vmatpush1.msra.mxu0 0.0
      %1390 = vmatprep.subr.mxu0 0.0
      %1391 = vmatpush1.msra.mxu0 0.0
      %1392 = vmatprep.subr.mxu0 0.0
      %1393 = vmatpush1.msra.mxu0 0.0
      %1394 = vmatprep.subr.mxu0 0.0
      %1395 = vmatpush1.msra.mxu0 0.0
      %1396 = vmatprep.subr.mxu0 0.0
      %1397 = vmatpush1.msra.mxu0 0.0
      %1398 = vmatprep.subr.mxu0 0.0
      %1399 = vmatpush1.msra.mxu0 0.0
      %1400 = vmatprep.subr.mxu0 0.0
      %1401 = vmatpush1.msra.mxu0 0.0
      %1402 = vmatprep.subr.mxu0 0.0
      %1403 = vmatpush1.msra.mxu0 0.0
      %1404 = vmatprep.subr.mxu0 0.0
      %1405 = vmatpush1.msra.mxu0 0.0
      %1406 = vmatprep.subr.mxu0 0.0
      %1407 = vmatpush1.msra.mxu0 0.0
      %1408 = vmatprep.subr.mxu0 0.0
      %1409 = vmatpush1.msra.mxu0 0.0
      %1410 = vmatprep.subr.mxu0 0.0
      %1411 = vmatpush1.msra.mxu0 0.0
      %1412 = vmatprep.subr.mxu0 0.0
      %1413 = vmatpush1.msra.mxu0 0.0
      %1414 = vmatprep.subr.mxu0 0.0
      %1415 = vmatpush1.msra.mxu0 0.0
      %1416 = vmatprep.subr.mxu0 0.0
      %1417 = vmatpush1.msra.mxu0 0.0
      %1418 = vmatprep.subr.mxu0 0.0
      %1419 = vmatpush1.msra.mxu0 0.0
      %1420 = vmatprep.subr.mxu0 0.0
      %1421 = vmatpush1.msra.mxu0 0.0
      %1422 = vmatprep.mubr.f32.mxu0 0.0
      %v1423 = vand.u32 %v1108, 4294901760
      %v1424 = vsub.f32 %v1108, %v1423
      %v1425 = vand.u32 %v1424, 4294901760
      %1426 = vmatmul.mubr.f32.gmra.mrb[0].mxu0 %v1425
      %v1427 = vpop.f32.mrb[0].mxu0
      %v1428 = vadd.f32 %v1352, %v1427
      %v1429 = vpop.f32.mrb[0].mxu0
      %1430 = vdwg.mxu0
      %1431 = vmatprep.subr.mxu0 0.0
      %v1432 = vand.u32 %v1104, 4294901760
      %v1433 = vsub.f32 %v1104, %v1432
      %v1434 = vand.u32 %v1433, 4294901760
      %1435 = vmatpush1.msra.mxu0 %v1434
      %1436 = vmatprep.subr.mxu0 0.0
      %v1437 = vand.u32 %v1105, 4294901760
      %v1438 = vsub.f32 %v1105, %v1437
      %v1439 = vand.u32 %v1438, 4294901760
      %1440 = vmatpush1.msra.mxu0 %v1439
      %1441 = vmatprep.subr.mxu0 0.0
      %v1442 = vand.u32 %v1111, 4294901760
      %v1443 = vsub.f32 %v1111, %v1442
      %v1444 = vand.u32 %v1443, 4294901760
      %1445 = vmatpush1.msra.mxu0 %v1444
      %1446 = vmatprep.subr.mxu0 0.0
      %1447 = vmatpush1.msra.mxu0 0.0
      %1448 = vmatprep.subr.mxu0 0.0
      %1449 = vmatpush1.msra.mxu0 0.0
      %1450 = vmatprep.subr.mxu0 0.0
      %1451 = vmatpush1.msra.mxu0 0.0
      %1452 = vmatprep.subr.mxu0 0.0
      %1453 = vmatpush1.msra.mxu0 0.0
      %1454 = vmatprep.subr.mxu0 0.0
      %1455 = vmatpush1.msra.mxu0 0.0
      %1456 = vmatprep.subr.mxu0 0.0
      %1457 = vmatpush1.msra.mxu0 0.0
      %1458 = vmatprep.subr.mxu0 0.0
      %1459 = vmatpush1.msra.mxu0 0.0
      %1460 = vmatprep.subr.mxu0 0.0
      %1461 = vmatpush1.msra.mxu0 0.0
      %1462 = vmatprep.subr.mxu0 0.0
      %1463 = vmatpush1.msra.mxu0 0.0
      %1464 = vmatprep.subr.mxu0 0.0
      %1465 = vmatpush1.msra.mxu0 0.0
      %1466 = vmatprep.subr.mxu0 0.0
      %1467 = vmatpush1.msra.mxu0 0.0
      %1468 = vmatprep.subr.mxu0 0.0
      %1469 = vmatpush1.msra.mxu0 0.0
      %1470 = vmatprep.subr.mxu0 0.0
      %1471 = vmatpush1.msra.mxu0 0.0
      %1472 = vmatprep.subr.mxu0 0.0
      %1473 = vmatpush1.msra.mxu0 0.0
      %1474 = vmatprep.subr.mxu0 0.0
      %1475 = vmatpush1.msra.mxu0 0.0
      %1476 = vmatprep.subr.mxu0 0.0
      %1477 = vmatpush1.msra.mxu0 0.0
      %1478 = vmatprep.subr.mxu0 0.0
      %1479 = vmatpush1.msra.mxu0 0.0
      %1480 = vmatprep.subr.mxu0 0.0
      %1481 = vmatpush1.msra.mxu0 0.0
      %1482 = vmatprep.subr.mxu0 0.0
      %1483 = vmatpush1.msra.mxu0 0.0
      %1484 = vmatprep.subr.mxu0 0.0
      %1485 = vmatpush1.msra.mxu0 0.0
      %1486 = vmatprep.subr.mxu0 0.0
      %1487 = vmatpush1.msra.mxu0 0.0
      %1488 = vmatprep.subr.mxu0 0.0
      %1489 = vmatpush1.msra.mxu0 0.0
      %1490 = vmatprep.subr.mxu0 0.0
      %1491 = vmatpush1.msra.mxu0 0.0
      %1492 = vmatprep.subr.mxu0 0.0
      %1493 = vmatpush1.msra.mxu0 0.0
      %1494 = vmatprep.subr.mxu0 0.0
      %1495 = vmatpush1.msra.mxu0 0.0
      %1496 = vmatprep.subr.mxu0 0.0
      %1497 = vmatpush1.msra.mxu0 0.0
      %1498 = vmatprep.subr.mxu0 0.0
      %1499 = vmatpush1.msra.mxu0 0.0
      %1500 = vmatprep.subr.mxu0 0.0
      %1501 = vmatpush1.msra.mxu0 0.0
      %1502 = vmatprep.subr.mxu0 0.0
      %1503 = vmatpush1.msra.mxu0 0.0
      %1504 = vmatprep.mubr.f32.mxu0 0.0
      %v1505 = vand.u32 %v1108, 4294901760
      %1506 = vmatmul.mubr.f32.gmra.mrb[0].mxu0 %v1505
      %v1507 = vpop.f32.mrb[0].mxu0
      %v1508 = vadd.f32 %v1428, %v1507
      %v1509 = vpop.f32.mrb[0].mxu0
      %1510 = vdwg.mxu0
      %1511 = vmatprep.subr.mxu0 0.0
      %v1512 = vand.u32 %v1104, 4294901760
      %1513 = vmatpush1.msra.mxu0 %v1512
      %1514 = vmatprep.subr.mxu0 0.0
      %v1515 = vand.u32 %v1105, 4294901760
      %1516 = vmatpush1.msra.mxu0 %v1515
      %1517 = vmatprep.subr.mxu0 0.0
      %v1518 = vand.u32 %v1111, 4294901760
      %1519 = vmatpush1.msra.mxu0 %v1518
      %1520 = vmatprep.subr.mxu0 0.0
      %1521 = vmatpush1.msra.mxu0 0.0
      %1522 = vmatprep.subr.mxu0 0.0
      %1523 = vmatpush1.msra.mxu0 0.0
      %1524 = vmatprep.subr.mxu0 0.0
      %1525 = vmatpush1.msra.mxu0 0.0
      %1526 = vmatprep.subr.mxu0 0.0
      %1527 = vmatpush1.msra.mxu0 0.0
      %1528 = vmatprep.subr.mxu0 0.0
      %1529 = vmatpush1.msra.mxu0 0.0
      %1530 = vmatprep.subr.mxu0 0.0
      %1531 = vmatpush1.msra.mxu0 0.0
      %1532 = vmatprep.subr.mxu0 0.0
      %1533 = vmatpush1.msra.mxu0 0.0
      %1534 = vmatprep.subr.mxu0 0.0
      %1535 = vmatpush1.msra.mxu0 0.0
      %1536 = vmatprep.subr.mxu0 0.0
      %1537 = vmatpush1.msra.mxu0 0.0
      %1538 = vmatprep.subr.mxu0 0.0
      %1539 = vmatpush1.msra.mxu0 0.0
      %1540 = vmatprep.subr.mxu0 0.0
      %1541 = vmatpush1.msra.mxu0 0.0
      %1542 = vmatprep.subr.mxu0 0.0
      %1543 = vmatpush1.msra.mxu0 0.0
      %1544 = vmatprep.subr.mxu0 0.0
      %1545 = vmatpush1.msra.mxu0 0.0
      %1546 = vmatprep.subr.mxu0 0.0
      %1547 = vmatpush1.msra.mxu0 0.0
      %1548 = vmatprep.subr.mxu0 0.0
      %1549 = vmatpush1.msra.mxu0 0.0
      %1550 = vmatprep.subr.mxu0 0.0
      %1551 = vmatpush1.msra.mxu0 0.0
      %1552 = vmatprep.subr.mxu0 0.0
      %1553 = vmatpush1.msra.mxu0 0.0
      %1554 = vmatprep.subr.mxu0 0.0
      %1555 = vmatpush1.msra.mxu0 0.0
      %1556 = vmatprep.subr.mxu0 0.0
      %1557 = vmatpush1.msra.mxu0 0.0
      %1558 = vmatprep.subr.mxu0 0.0
      %1559 = vmatpush1.msra.mxu0 0.0
      %1560 = vmatprep.subr.mxu0 0.0
      %1561 = vmatpush1.msra.mxu0 0.0
      %1562 = vmatprep.subr.mxu0 0.0
      %1563 = vmatpush1.msra.mxu0 0.0
      %1564 = vmatprep.subr.mxu0 0.0
      %1565 = vmatpush1.msra.mxu0 0.0
      %1566 = vmatprep.subr.mxu0 0.0
      %1567 = vmatpush1.msra.mxu0 0.0
      %1568 = vmatprep.subr.mxu0 0.0
      %1569 = vmatpush1.msra.mxu0 0.0
      %1570 = vmatprep.subr.mxu0 0.0
      %1571 = vmatpush1.msra.mxu0 0.0
      %1572 = vmatprep.subr.mxu0 0.0
      %1573 = vmatpush1.msra.mxu0 0.0
      %1574 = vmatprep.subr.mxu0 0.0
      %1575 = vmatpush1.msra.mxu0 0.0
      %1576 = vmatprep.subr.mxu0 0.0
      %1577 = vmatpush1.msra.mxu0 0.0
      %1578 = vmatprep.mubr.f32.mxu0 0.0
      %v1579 = vand.u32 %v1108, 4294901760
      %1580 = vmatmul.mubr.f32.gmra.mrb[0].mxu0 %v1579
      %v1581 = vpop.f32.mrb[0].mxu0
      %v1582 = vadd.f32 %v1508, %v1581
      %v1583 = vpop.f32.mrb[0].mxu0
      %1584 = vdwg.mxu0
      %v1585 = vadd.f32 %v1102, %v1582
      %s1586 = scalar_lea.vmem %s4, 48
      %v1587 = vld [vmem:[%s1586] sm:$0xff]
      %v1588 = vld [vmem:[%s1586 + $0x8] sm:$0xff]
      %v1589 = vld [vmem:[%s1586 + $0x10] sm:$0x3]
      %v1591 = vsel %vm542, %v609, 0
      %v1594 = vsel %vm620, %v1589, 0
      %1596 = vmatprep.subr.mxu0 0.0
      %v1597 = vand.u32 %v1587, 4294901760
      %1598 = vmatpush1.msra.mxu0 %v1597
      %1599 = vmatprep.subr.mxu0 0.0
      %v1600 = vand.u32 %v1588, 4294901760
      %1601 = vmatpush1.msra.mxu0 %v1600
      %1602 = vmatprep.subr.mxu0 0.0
      %v1603 = vand.u32 %v1594, 4294901760
      %1604 = vmatpush1.msra.mxu0 %v1603
      %1605 = vmatprep.subr.mxu0 0.0
      %1606 = vmatpush1.msra.mxu0 0.0
      %1607 = vmatprep.subr.mxu0 0.0
      %1608 = vmatpush1.msra.mxu0 0.0
      %1609 = vmatprep.subr.mxu0 0.0
      %1610 = vmatpush1.msra.mxu0 0.0
      %1611 = vmatprep.subr.mxu0 0.0
      %1612 = vmatpush1.msra.mxu0 0.0
      %1613 = vmatprep.subr.mxu0 0.0
      %1614 = vmatpush1.msra.mxu0 0.0
      %1615 = vmatprep.subr.mxu0 0.0
      %1616 = vmatpush1.msra.mxu0 0.0
      %1617 = vmatprep.subr.mxu0 0.0
      %1618 = vmatpush1.msra.mxu0 0.0
      %1619 = vmatprep.subr.mxu0 0.0
      %1620 = vmatpush1.msra.mxu0 0.0
      %1621 = vmatprep.subr.mxu0 0.0
      %1622 = vmatpush1.msra.mxu0 0.0
      %1623 = vmatprep.subr.mxu0 0.0
      %1624 = vmatpush1.msra.mxu0 0.0
      %1625 = vmatprep.subr.mxu0 0.0
      %1626 = vmatpush1.msra.mxu0 0.0
      %1627 = vmatprep.subr.mxu0 0.0
      %1628 = vmatpush1.msra.mxu0 0.0
      %1629 = vmatprep.subr.mxu0 0.0
      %1630 = vmatpush1.msra.mxu0 0.0
      %1631 = vmatprep.subr.mxu0 0.0
      %1632 = vmatpush1.msra.mxu0 0.0
      %1633 = vmatprep.subr.mxu0 0.0
      %1634 = vmatpush1.msra.mxu0 0.0
      %1635 = vmatprep.subr.mxu0 0.0
      %1636 = vmatpush1.msra.mxu0 0.0
      %1637 = vmatprep.subr.mxu0 0.0
      %1638 = vmatpush1.msra.mxu0 0.0
      %1639 = vmatprep.subr.mxu0 0.0
      %1640 = vmatpush1.msra.mxu0 0.0
      %1641 = vmatprep.subr.mxu0 0.0
      %1642 = vmatpush1.msra.mxu0 0.0
      %1643 = vmatprep.subr.mxu0 0.0
      %1644 = vmatpush1.msra.mxu0 0.0
      %1645 = vmatprep.subr.mxu0 0.0
      %1646 = vmatpush1.msra.mxu0 0.0
      %1647 = vmatprep.subr.mxu0 0.0
      %1648 = vmatpush1.msra.mxu0 0.0
      %1649 = vmatprep.subr.mxu0 0.0
      %1650 = vmatpush1.msra.mxu0 0.0
      %1651 = vmatprep.subr.mxu0 0.0
      %1652 = vmatpush1.msra.mxu0 0.0
      %1653 = vmatprep.subr.mxu0 0.0
      %1654 = vmatpush1.msra.mxu0 0.0
      %1655 = vmatprep.subr.mxu0 0.0
      %1656 = vmatpush1.msra.mxu0 0.0
      %1657 = vmatprep.subr.mxu0 0.0
      %1658 = vmatpush1.msra.mxu0 0.0
      %1659 = vmatprep.subr.mxu0 0.0
      %1660 = vmatpush1.msra.mxu0 0.0
      %1661 = vmatprep.subr.mxu0 0.0
      %1662 = vmatpush1.msra.mxu0 0.0
      %1663 = vmatprep.mubr.f32.mxu0 0.0
      %v1664 = vand.u32 %v1591, 4294901760
      %v1665 = vsub.f32 %v1591, %v1664
      %v1666 = vand.u32 %v1665, 4294901760
      %v1667 = vsub.f32 %v1665, %v1666
      %v1668 = vand.u32 %v1667, 4294901760
      %1669 = vmatmul.mubr.f32.gmra.mrb[0].mxu0 %v1668
      %v1670 = vpop.f32.mrb[0].mxu0
      %v1671 = vadd.f32 0.0, %v1670
      %v1672 = vpop.f32.mrb[0].mxu0
      %1673 = vdwg.mxu0
      %1674 = vmatprep.subr.mxu0 0.0
      %v1675 = vand.u32 %v1587, 4294901760
      %v1676 = vsub.f32 %v1587, %v1675
      %v1677 = vand.u32 %v1676, 4294901760
      %v1678 = vsub.f32 %v1676, %v1677
      %v1679 = vand.u32 %v1678, 4294901760
      %1680 = vmatpush1.msra.mxu0 %v1679
      %1681 = vmatprep.subr.mxu0 0.0
      %v1682 = vand.u32 %v1588, 4294901760
      %v1683 = vsub.f32 %v1588, %v1682
      %v1684 = vand.u32 %v1683, 4294901760
      %v1685 = vsub.f32 %v1683, %v1684
      %v1686 = vand.u32 %v1685, 4294901760
      %1687 = vmatpush1.msra.mxu0 %v1686
      %1688 = vmatprep.subr.mxu0 0.0
      %v1689 = vand.u32 %v1594, 4294901760
      %v1690 = vsub.f32 %v1594, %v1689
      %v1691 = vand.u32 %v1690, 4294901760
      %v1692 = vsub.f32 %v1690, %v1691
      %v1693 = vand.u32 %v1692, 4294901760
      %1694 = vmatpush1.msra.mxu0 %v1693
      %1695 = vmatprep.subr.mxu0 0.0
      %1696 = vmatpush1.msra.mxu0 0.0
      %1697 = vmatprep.subr.mxu0 0.0
      %1698 = vmatpush1.msra.mxu0 0.0
      %1699 = vmatprep.subr.mxu0 0.0
      %1700 = vmatpush1.msra.mxu0 0.0
      %1701 = vmatprep.subr.mxu0 0.0
      %1702 = vmatpush1.msra.mxu0 0.0
      %1703 = vmatprep.subr.mxu0 0.0
      %1704 = vmatpush1.msra.mxu0 0.0
      %1705 = vmatprep.subr.mxu0 0.0
      %1706 = vmatpush1.msra.mxu0 0.0
      %1707 = vmatprep.subr.mxu0 0.0
      %1708 = vmatpush1.msra.mxu0 0.0
      %1709 = vmatprep.subr.mxu0 0.0
      %1710 = vmatpush1.msra.mxu0 0.0
      %1711 = vmatprep.subr.mxu0 0.0
      %1712 = vmatpush1.msra.mxu0 0.0
      %1713 = vmatprep.subr.mxu0 0.0
      %1714 = vmatpush1.msra.mxu0 0.0
      %1715 = vmatprep.subr.mxu0 0.0
      %1716 = vmatpush1.msra.mxu0 0.0
      %1717 = vmatprep.subr.mxu0 0.0
      %1718 = vmatpush1.msra.mxu0 0.0
      %1719 = vmatprep.subr.mxu0 0.0
      %1720 = vmatpush1.msra.mxu0 0.0
      %1721 = vmatprep.subr.mxu0 0.0
      %1722 = vmatpush1.msra.mxu0 0.0
      %1723 = vmatprep.subr.mxu0 0.0
      %1724 = vmatpush1.msra.mxu0 0.0
      %1725 = vmatprep.subr.mxu0 0.0
      %1726 = vmatpush1.msra.mxu0 0.0
      %1727 = vmatprep.subr.mxu0 0.0
      %1728 = vmatpush1.msra.mxu0 0.0
      %1729 = vmatprep.subr.mxu0 0.0
      %1730 = vmatpush1.msra.mxu0 0.0
      %1731 = vmatprep.subr.mxu0 0.0
      %1732 = vmatpush1.msra.mxu0 0.0
      %1733 = vmatprep.subr.mxu0 0.0
      %1734 = vmatpush1.msra.mxu0 0.0
      %1735 = vmatprep.subr.mxu0 0.0
      %1736 = vmatpush1.msra.mxu0 0.0
      %1737 = vmatprep.subr.mxu0 0.0
      %1738 = vmatpush1.msra.mxu0 0.0
      %1739 = vmatprep.subr.mxu0 0.0
      %1740 = vmatpush1.msra.mxu0 0.0
      %1741 = vmatprep.subr.mxu0 0.0
      %1742 = vmatpush1.msra.mxu0 0.0
      %1743 = vmatprep.subr.mxu0 0.0
      %1744 = vmatpush1.msra.mxu0 0.0
      %1745 = vmatprep.subr.mxu0 0.0
      %1746 = vmatpush1.msra.mxu0 0.0
      %1747 = vmatprep.subr.mxu0 0.0
      %1748 = vmatpush1.msra.mxu0 0.0
      %1749 = vmatprep.subr.mxu0 0.0
      %1750 = vmatpush1.msra.mxu0 0.0
      %1751 = vmatprep.subr.mxu0 0.0
      %1752 = vmatpush1.msra.mxu0 0.0
      %1753 = vmatprep.mubr.f32.mxu0 0.0
      %v1754 = vand.u32 %v1591, 4294901760
      %1755 = vmatmul.mubr.f32.gmra.mrb[0].mxu0 %v1754
      %v1756 = vpop.f32.mrb[0].mxu0
      %v1757 = vadd.f32 %v1671, %v1756
      %v1758 = vpop.f32.mrb[0].mxu0
      %1759 = vdwg.mxu0
      %1760 = vmatprep.subr.mxu0 0.0
      %v1761 = vand.u32 %v1587, 4294901760
      %v1762 = vsub.f32 %v1587, %v1761
      %1763 = vmatpush1.msra.mxu0 %v1762
      %1764 = vmatprep.subr.mxu0 0.0
      %v1765 = vand.u32 %v1588, 4294901760
      %v1766 = vsub.f32 %v1588, %v1765
      %1767 = vmatpush1.msra.mxu0 %v1766
      %1768 = vmatprep.subr.mxu0 0.0
      %v1769 = vand.u32 %v1594, 4294901760
      %v1770 = vsub.f32 %v1594, %v1769
      %1771 = vmatpush1.msra.mxu0 %v1770
      %1772 = vmatprep.subr.mxu0 0.0
      %1773 = vmatpush1.msra.mxu0 0.0
      %1774 = vmatprep.subr.mxu0 0.0
      %1775 = vmatpush1.msra.mxu0 0.0
      %1776 = vmatprep.subr.mxu0 0.0
      %1777 = vmatpush1.msra.mxu0 0.0
      %1778 = vmatprep.subr.mxu0 0.0
      %1779 = vmatpush1.msra.mxu0 0.0
      %1780 = vmatprep.subr.mxu0 0.0
      %1781 = vmatpush1.msra.mxu0 0.0
      %1782 = vmatprep.subr.mxu0 0.0
      %1783 = vmatpush1.msra.mxu0 0.0
      %1784 = vmatprep.subr.mxu0 0.0
      %1785 = vmatpush1.msra.mxu0 0.0
      %1786 = vmatprep.subr.mxu0 0.0
      %1787 = vmatpush1.msra.mxu0 0.0
      %1788 = vmatprep.subr.mxu0 0.0
      %1789 = vmatpush1.msra.mxu0 0.0
      %1790 = vmatprep.subr.mxu0 0.0
      %1791 = vmatpush1.msra.mxu0 0.0
      %1792 = vmatprep.subr.mxu0 0.0
      %1793 = vmatpush1.msra.mxu0 0.0
      %1794 = vmatprep.subr.mxu0 0.0
      %1795 = vmatpush1.msra.mxu0 0.0
      %1796 = vmatprep.subr.mxu0 0.0
      %1797 = vmatpush1.msra.mxu0 0.0
      %1798 = vmatprep.subr.mxu0 0.0
      %1799 = vmatpush1.msra.mxu0 0.0
      %1800 = vmatprep.subr.mxu0 0.0
      %1801 = vmatpush1.msra.mxu0 0.0
      %1802 = vmatprep.subr.mxu0 0.0
      %1803 = vmatpush1.msra.mxu0 0.0
      %1804 = vmatprep.subr.mxu0 0.0
      %1805 = vmatpush1.msra.mxu0 0.0
      %1806 = vmatprep.subr.mxu0 0.0
      %1807 = vmatpush1.msra.mxu0 0.0
      %1808 = vmatprep.subr.mxu0 0.0
      %1809 = vmatpush1.msra.mxu0 0.0
      %1810 = vmatprep.subr.mxu0 0.0
      %1811 = vmatpush1.msra.mxu0 0.0
      %1812 = vmatprep.subr.mxu0 0.0
      %1813 = vmatpush1.msra.mxu0 0.0
      %1814 = vmatprep.subr.mxu0 0.0
      %1815 = vmatpush1.msra.mxu0 0.0
      %1816 = vmatprep.subr.mxu0 0.0
      %1817 = vmatpush1.msra.mxu0 0.0
      %1818 = vmatprep.subr.mxu0 0.0
      %1819 = vmatpush1.msra.mxu0 0.0
      %1820 = vmatprep.subr.mxu0 0.0
      %1821 = vmatpush1.msra.mxu0 0.0
      %1822 = vmatprep.subr.mxu0 0.0
      %1823 = vmatpush1.msra.mxu0 0.0
      %1824 = vmatprep.subr.mxu0 0.0
      %1825 = vmatpush1.msra.mxu0 0.0
      %1826 = vmatprep.subr.mxu0 0.0
      %1827 = vmatpush1.msra.mxu0 0.0
      %1828 = vmatprep.subr.mxu0 0.0
      %1829 = vmatpush1.msra.mxu0 0.0
      %1830 = vmatprep.mubr.f32.mxu0 0.0
      %v1831 = vand.u32 %v1591, 4294901760
      %v1832 = vsub.f32 %v1591, %v1831
      %1833 = vmatmul.mubr.f32.gmra.mrb[0].mxu0 %v1832
      %v1834 = vpop.f32.mrb[0].mxu0
      %v1835 = vadd.f32 %v1757, %v1834
      %v1836 = vpop.f32.mrb[0].mxu0
      %1837 = vdwg.mxu0
      %1838 = vmatprep.subr.mxu0 0.0
      %v1839 = vand.u32 %v1587, 4294901760
      %1840 = vmatpush1.msra.mxu0 %v1839
      %1841 = vmatprep.subr.mxu0 0.0
      %v1842 = vand.u32 %v1588, 4294901760
      %1843 = vmatpush1.msra.mxu0 %v1842
      %1844 = vmatprep.subr.mxu0 0.0
      %v1845 = vand.u32 %v1594, 4294901760
      %1846 = vmatpush1.msra.mxu0 %v1845
      %1847 = vmatprep.subr.mxu0 0.0
      %1848 = vmatpush1.msra.mxu0 0.0
      %1849 = vmatprep.subr.mxu0 0.0
      %1850 = vmatpush1.msra.mxu0 0.0
      %1851 = vmatprep.subr.mxu0 0.0
      %1852 = vmatpush1.msra.mxu0 0.0
      %1853 = vmatprep.subr.mxu0 0.0
      %1854 = vmatpush1.msra.mxu0 0.0
      %1855 = vmatprep.subr.mxu0 0.0
      %1856 = vmatpush1.msra.mxu0 0.0
      %1857 = vmatprep.subr.mxu0 0.0
      %1858 = vmatpush1.msra.mxu0 0.0
      %1859 = vmatprep.subr.mxu0 0.0
      %1860 = vmatpush1.msra.mxu0 0.0
      %1861 = vmatprep.subr.mxu0 0.0
      %1862 = vmatpush1.msra.mxu0 0.0
      %1863 = vmatprep.subr.mxu0 0.0
      %1864 = vmatpush1.msra.mxu0 0.0
      %1865 = vmatprep.subr.mxu0 0.0
      %1866 = vmatpush1.msra.mxu0 0.0
      %1867 = vmatprep.subr.mxu0 0.0
      %1868 = vmatpush1.msra.mxu0 0.0
      %1869 = vmatprep.subr.mxu0 0.0
      %1870 = vmatpush1.msra.mxu0 0.0
      %1871 = vmatprep.subr.mxu0 0.0
      %1872 = vmatpush1.msra.mxu0 0.0
      %1873 = vmatprep.subr.mxu0 0.0
      %1874 = vmatpush1.msra.mxu0 0.0
      %1875 = vmatprep.subr.mxu0 0.0
      %1876 = vmatpush1.msra.mxu0 0.0
      %1877 = vmatprep.subr.mxu0 0.0
      %1878 = vmatpush1.msra.mxu0 0.0
      %1879 = vmatprep.subr.mxu0 0.0
      %1880 = vmatpush1.msra.mxu0 0.0
      %1881 = vmatprep.subr.mxu0 0.0
      %1882 = vmatpush1.msra.mxu0 0.0
      %1883 = vmatprep.subr.mxu0 0.0
      %1884 = vmatpush1.msra.mxu0 0.0
      %1885 = vmatprep.subr.mxu0 0.0
      %1886 = vmatpush1.msra.mxu0 0.0
      %1887 = vmatprep.subr.mxu0 0.0
      %1888 = vmatpush1.msra.mxu0 0.0
      %1889 = vmatprep.subr.mxu0 0.0
      %1890 = vmatpush1.msra.mxu0 0.0
      %1891 = vmatprep.subr.mxu0 0.0
      %1892 = vmatpush1.msra.mxu0 0.0
      %1893 = vmatprep.subr.mxu0 0.0
      %1894 = vmatpush1.msra.mxu0 0.0
      %1895 = vmatprep.subr.mxu0 0.0
      %1896 = vmatpush1.msra.mxu0 0.0
      %1897 = vmatprep.subr.mxu0 0.0
      %1898 = vmatpush1.msra.mxu0 0.0
      %1899 = vmatprep.subr.mxu0 0.0
      %1900 = vmatpush1.msra.mxu0 0.0
      %1901 = vmatprep.subr.mxu0 0.0
      %1902 = vmatpush1.msra.mxu0 0.0
      %1903 = vmatprep.subr.mxu0 0.0
      %1904 = vmatpush1.msra.mxu0 0.0
      %1905 = vmatprep.mubr.f32.mxu0 0.0
      %v1906 = vand.u32 %v1591, 4294901760
      %v1907 = vsub.f32 %v1591, %v1906
      %v1908 = vand.u32 %v1907, 4294901760
      %1909 = vmatmul.mubr.f32.gmra.mrb[0].mxu0 %v1908
      %v1910 = vpop.f32.mrb[0].mxu0
      %v1911 = vadd.f32 %v1835, %v1910
      %v1912 = vpop.f32.mrb[0].mxu0
      %1913 = vdwg.mxu0
      %1914 = vmatprep.subr.mxu0 0.0
      %v1915 = vand.u32 %v1587, 4294901760
      %v1916 = vsub.f32 %v1587, %v1915
      %v1917 = vand.u32 %v1916, 4294901760
      %1918 = vmatpush1.msra.mxu0 %v1917
      %1919 = vmatprep.subr.mxu0 0.0
      %v1920 = vand.u32 %v1588, 4294901760
      %v1921 = vsub.f32 %v1588, %v1920
      %v1922 = vand.u32 %v1921, 4294901760
      %1923 = vmatpush1.msra.mxu0 %v1922
      %1924 = vmatprep.subr.mxu0 0.0
      %v1925 = vand.u32 %v1594, 4294901760
      %v1926 = vsub.f32 %v1594, %v1925
      %v1927 = vand.u32 %v1926, 4294901760
      %1928 = vmatpush1.msra.mxu0 %v1927
      %1929 = vmatprep.subr.mxu0 0.0
      %1930 = vmatpush1.msra.mxu0 0.0
      %1931 = vmatprep.subr.mxu0 0.0
      %1932 = vmatpush1.msra.mxu0 0.0
      %1933 = vmatprep.subr.mxu0 0.0
      %1934 = vmatpush1.msra.mxu0 0.0
      %1935 = vmatprep.subr.mxu0 0.0
      %1936 = vmatpush1.msra.mxu0 0.0
      %1937 = vmatprep.subr.mxu0 0.0
      %1938 = vmatpush1.msra.mxu0 0.0
      %1939 = vmatprep.subr.mxu0 0.0
      %1940 = vmatpush1.msra.mxu0 0.0
      %1941 = vmatprep.subr.mxu0 0.0
      %1942 = vmatpush1.msra.mxu0 0.0
      %1943 = vmatprep.subr.mxu0 0.0
      %1944 = vmatpush1.msra.mxu0 0.0
      %1945 = vmatprep.subr.mxu0 0.0
      %1946 = vmatpush1.msra.mxu0 0.0
      %1947 = vmatprep.subr.mxu0 0.0
      %1948 = vmatpush1.msra.mxu0 0.0
      %1949 = vmatprep.subr.mxu0 0.0
      %1950 = vmatpush1.msra.mxu0 0.0
      %1951 = vmatprep.subr.mxu0 0.0
      %1952 = vmatpush1.msra.mxu0 0.0
      %1953 = vmatprep.subr.mxu0 0.0
      %1954 = vmatpush1.msra.mxu0 0.0
      %1955 = vmatprep.subr.mxu0 0.0
      %1956 = vmatpush1.msra.mxu0 0.0
      %1957 = vmatprep.subr.mxu0 0.0
      %1958 = vmatpush1.msra.mxu0 0.0
      %1959 = vmatprep.subr.mxu0 0.0
      %1960 = vmatpush1.msra.mxu0 0.0
      %1961 = vmatprep.subr.mxu0 0.0
      %1962 = vmatpush1.msra.mxu0 0.0
      %1963 = vmatprep.subr.mxu0 0.0
      %1964 = vmatpush1.msra.mxu0 0.0
      %1965 = vmatprep.subr.mxu0 0.0
      %1966 = vmatpush1.msra.mxu0 0.0
      %1967 = vmatprep.subr.mxu0 0.0
      %1968 = vmatpush1.msra.mxu0 0.0
      %1969 = vmatprep.subr.mxu0 0.0
      %1970 = vmatpush1.msra.mxu0 0.0
      %1971 = vmatprep.subr.mxu0 0.0
      %1972 = vmatpush1.msra.mxu0 0.0
      %1973 = vmatprep.subr.mxu0 0.0
      %1974 = vmatpush1.msra.mxu0 0.0
      %1975 = vmatprep.subr.mxu0 0.0
      %1976 = vmatpush1.msra.mxu0 0.0
      %1977 = vmatprep.subr.mxu0 0.0
      %1978 = vmatpush1.msra.mxu0 0.0
      %1979 = vmatprep.subr.mxu0 0.0
      %1980 = vmatpush1.msra.mxu0 0.0
      %1981 = vmatprep.subr.mxu0 0.0
      %1982 = vmatpush1.msra.mxu0 0.0
      %1983 = vmatprep.subr.mxu0 0.0
      %1984 = vmatpush1.msra.mxu0 0.0
      %1985 = vmatprep.subr.mxu0 0.0
      %1986 = vmatpush1.msra.mxu0 0.0
      %1987 = vmatprep.mubr.f32.mxu0 0.0
      %v1988 = vand.u32 %v1591, 4294901760
      %1989 = vmatmul.mubr.f32.gmra.mrb[0].mxu0 %v1988
      %v1990 = vpop.f32.mrb[0].mxu0
      %v1991 = vadd.f32 %v1911, %v1990
      %v1992 = vpop.f32.mrb[0].mxu0
      %1993 = vdwg.mxu0
      %1994 = vmatprep.subr.mxu0 0.0
      %v1995 = vand.u32 %v1587, 4294901760
      %1996 = vmatpush1.msra.mxu0 %v1995
      %1997 = vmatprep.subr.mxu0 0.0
      %v1998 = vand.u32 %v1588, 4294901760
      %1999 = vmatpush1.msra.mxu0 %v1998
      %2000 = vmatprep.subr.mxu0 0.0
      %v2001 = vand.u32 %v1594, 4294901760
      %2002 = vmatpush1.msra.mxu0 %v2001
      %2003 = vmatprep.subr.mxu0 0.0
      %2004 = vmatpush1.msra.mxu0 0.0
      %2005 = vmatprep.subr.mxu0 0.0
      %2006 = vmatpush1.msra.mxu0 0.0
      %2007 = vmatprep.subr.mxu0 0.0
      %2008 = vmatpush1.msra.mxu0 0.0
      %2009 = vmatprep.subr.mxu0 0.0
      %2010 = vmatpush1.msra.mxu0 0.0
      %2011 = vmatprep.subr.mxu0 0.0
      %2012 = vmatpush1.msra.mxu0 0.0
      %2013 = vmatprep.subr.mxu0 0.0
      %2014 = vmatpush1.msra.mxu0 0.0
      %2015 = vmatprep.subr.mxu0 0.0
      %2016 = vmatpush1.msra.mxu0 0.0
      %2017 = vmatprep.subr.mxu0 0.0
      %2018 = vmatpush1.msra.mxu0 0.0
      %2019 = vmatprep.subr.mxu0 0.0
      %2020 = vmatpush1.msra.mxu0 0.0
      %2021 = vmatprep.subr.mxu0 0.0
      %2022 = vmatpush1.msra.mxu0 0.0
      %2023 = vmatprep.subr.mxu0 0.0
      %2024 = vmatpush1.msra.mxu0 0.0
      %2025 = vmatprep.subr.mxu0 0.0
      %2026 = vmatpush1.msra.mxu0 0.0
      %2027 = vmatprep.subr.mxu0 0.0
      %2028 = vmatpush1.msra.mxu0 0.0
      %2029 = vmatprep.subr.mxu0 0.0
      %2030 = vmatpush1.msra.mxu0 0.0
      %2031 = vmatprep.subr.mxu0 0.0
      %2032 = vmatpush1.msra.mxu0 0.0
      %2033 = vmatprep.subr.mxu0 0.0
      %2034 = vmatpush1.msra.mxu0 0.0
      %2035 = vmatprep.subr.mxu0 0.0
      %2036 = vmatpush1.msra.mxu0 0.0
      %2037 = vmatprep.subr.mxu0 0.0
      %2038 = vmatpush1.msra.mxu0 0.0
      %2039 = vmatprep.subr.mxu0 0.0
      %2040 = vmatpush1.msra.mxu0 0.0
      %2041 = vmatprep.subr.mxu0 0.0
      %2042 = vmatpush1.msra.mxu0 0.0
      %2043 = vmatprep.subr.mxu0 0.0
      %2044 = vmatpush1.msra.mxu0 0.0
      %2045 = vmatprep.subr.mxu0 0.0
      %2046 = vmatpush1.msra.mxu0 0.0
      %2047 = vmatprep.subr.mxu0 0.0
      %2048 = vmatpush1.msra.mxu0 0.0
      %2049 = vmatprep.subr.mxu0 0.0
      %2050 = vmatpush1.msra.mxu0 0.0
      %2051 = vmatprep.subr.mxu0 0.0
      %2052 = vmatpush1.msra.mxu0 0.0
      %2053 = vmatprep.subr.mxu0 0.0
      %2054 = vmatpush1.msra.mxu0 0.0
      %2055 = vmatprep.subr.mxu0 0.0
      %2056 = vmatpush1.msra.mxu0 0.0
      %2057 = vmatprep.subr.mxu0 0.0
      %2058 = vmatpush1.msra.mxu0 0.0
      %2059 = vmatprep.subr.mxu0 0.0
      %2060 = vmatpush1.msra.mxu0 0.0
      %2061 = vmatprep.mubr.f32.mxu0 0.0
      %v2062 = vand.u32 %v1591, 4294901760
      %2063 = vmatmul.mubr.f32.gmra.mrb[0].mxu0 %v2062
      %v2064 = vpop.f32.mrb[0].mxu0
      %v2065 = vadd.f32 %v1991, %v2064
      %v2066 = vpop.f32.mrb[0].mxu0
      %2067 = vdwg.mxu0
      %v2068 = vadd.f32 %v1585, %v2065
      %s2069 = scalar_lea.vmem %s4, 72
      %v2070 = vld [vmem:[%s2069] sm:$0xff]
      %v2071 = vld [vmem:[%s2069 + $0x8] sm:$0xff]
      %v2072 = vld [vmem:[%s2069 + $0x10] sm:$0x3]
      %v2074 = vsel %vm542, %v611, 0
      %v2077 = vsel %vm620, %v2072, 0
      %2079 = vmatprep.subr.mxu0 0.0
      %v2080 = vand.u32 %v2070, 4294901760
      %2081 = vmatpush1.msra.mxu0 %v2080
      %2082 = vmatprep.subr.mxu0 0.0
      %v2083 = vand.u32 %v2071, 4294901760
      %2084 = vmatpush1.msra.mxu0 %v2083
      %2085 = vmatprep.subr.mxu0 0.0
      %v2086 = vand.u32 %v2077, 4294901760
      %2087 = vmatpush1.msra.mxu0 %v2086
      %2088 = vmatprep.subr.mxu0 0.0
      %2089 = vmatpush1.msra.mxu0 0.0
      %2090 = vmatprep.subr.mxu0 0.0
      %2091 = vmatpush1.msra.mxu0 0.0
      %2092 = vmatprep.subr.mxu0 0.0
      %2093 = vmatpush1.msra.mxu0 0.0
      %2094 = vmatprep.subr.mxu0 0.0
      %2095 = vmatpush1.msra.mxu0 0.0
      %2096 = vmatprep.subr.mxu0 0.0
      %2097 = vmatpush1.msra.mxu0 0.0
      %2098 = vmatprep.subr.mxu0 0.0
      %2099 = vmatpush1.msra.mxu0 0.0
      %2100 = vmatprep.subr.mxu0 0.0
      %2101 = vmatpush1.msra.mxu0 0.0
      %2102 = vmatprep.subr.mxu0 0.0
      %2103 = vmatpush1.msra.mxu0 0.0
      %2104 = vmatprep.subr.mxu0 0.0
      %2105 = vmatpush1.msra.mxu0 0.0
      %2106 = vmatprep.subr.mxu0 0.0
      %2107 = vmatpush1.msra.mxu0 0.0
      %2108 = vmatprep.subr.mxu0 0.0
      %2109 = vmatpush1.msra.mxu0 0.0
      %2110 = vmatprep.subr.mxu0 0.0
      %2111 = vmatpush1.msra.mxu0 0.0
      %2112 = vmatprep.subr.mxu0 0.0
      %2113 = vmatpush1.msra.mxu0 0.0
      %2114 = vmatprep.subr.mxu0 0.0
      %2115 = vmatpush1.msra.mxu0 0.0
      %2116 = vmatprep.subr.mxu0 0.0
      %2117 = vmatpush1.msra.mxu0 0.0
      %2118 = vmatprep.subr.mxu0 0.0
      %2119 = vmatpush1.msra.mxu0 0.0
      %2120 = vmatprep.subr.mxu0 0.0
      %2121 = vmatpush1.msra.mxu0 0.0
      %2122 = vmatprep.subr.mxu0 0.0
      %2123 = vmatpush1.msra.mxu0 0.0
      %2124 = vmatprep.subr.mxu0 0.0
      %2125 = vmatpush1.msra.mxu0 0.0
      %2126 = vmatprep.subr.mxu0 0.0
      %2127 = vmatpush1.msra.mxu0 0.0
      %2128 = vmatprep.subr.mxu0 0.0
      %2129 = vmatpush1.msra.mxu0 0.0
      %2130 = vmatprep.subr.mxu0 0.0
      %2131 = vmatpush1.msra.mxu0 0.0
      %2132 = vmatprep.subr.mxu0 0.0
      %2133 = vmatpush1.msra.mxu0 0.0
      %2134 = vmatprep.subr.mxu0 0.0
      %2135 = vmatpush1.msra.mxu0 0.0
      %2136 = vmatprep.subr.mxu0 0.0
      %2137 = vmatpush1.msra.mxu0 0.0
      %2138 = vmatprep.subr.mxu0 0.0
      %2139 = vmatpush1.msra.mxu0 0.0
      %2140 = vmatprep.subr.mxu0 0.0
      %2141 = vmatpush1.msra.mxu0 0.0
      %2142 = vmatprep.subr.mxu0 0.0
      %2143 = vmatpush1.msra.mxu0 0.0
      %2144 = vmatprep.subr.mxu0 0.0
      %2145 = vmatpush1.msra.mxu0 0.0
      %2146 = vmatprep.mubr.f32.mxu0 0.0
      %v2147 = vand.u32 %v2074, 4294901760
      %v2148 = vsub.f32 %v2074, %v2147
      %v2149 = vand.u32 %v2148, 4294901760
      %v2150 = vsub.f32 %v2148, %v2149
      %v2151 = vand.u32 %v2150, 4294901760
      %2152 = vmatmul.mubr.f32.gmra.mrb[0].mxu0 %v2151
      %v2153 = vpop.f32.mrb[0].mxu0
      %v2154 = vadd.f32 0.0, %v2153
      %v2155 = vpop.f32.mrb[0].mxu0
      %2156 = vdwg.mxu0
      %2157 = vmatprep.subr.mxu0 0.0
      %v2158 = vand.u32 %v2070, 4294901760
      %v2159 = vsub.f32 %v2070, %v2158
      %v2160 = vand.u32 %v2159, 4294901760
      %v2161 = vsub.f32 %v2159, %v2160
      %v2162 = vand.u32 %v2161, 4294901760
      %2163 = vmatpush1.msra.mxu0 %v2162
      %2164 = vmatprep.subr.mxu0 0.0
      %v2165 = vand.u32 %v2071, 4294901760
      %v2166 = vsub.f32 %v2071, %v2165
      %v2167 = vand.u32 %v2166, 4294901760
      %v2168 = vsub.f32 %v2166, %v2167
      %v2169 = vand.u32 %v2168, 4294901760
      %2170 = vmatpush1.msra.mxu0 %v2169
      %2171 = vmatprep.subr.mxu0 0.0
      %v2172 = vand.u32 %v2077, 4294901760
      %v2173 = vsub.f32 %v2077, %v2172
      %v2174 = vand.u32 %v2173, 4294901760
      %v2175 = vsub.f32 %v2173, %v2174
      %v2176 = vand.u32 %v2175, 4294901760
      %2177 = vmatpush1.msra.mxu0 %v2176
      %2178 = vmatprep.subr.mxu0 0.0
      %2179 = vmatpush1.msra.mxu0 0.0
      %2180 = vmatprep.subr.mxu0 0.0
      %2181 = vmatpush1.msra.mxu0 0.0
      %2182 = vmatprep.subr.mxu0 0.0
      %2183 = vmatpush1.msra.mxu0 0.0
      %2184 = vmatprep.subr.mxu0 0.0
      %2185 = vmatpush1.msra.mxu0 0.0
      %2186 = vmatprep.subr.mxu0 0.0
      %2187 = vmatpush1.msra.mxu0 0.0
      %2188 = vmatprep.subr.mxu0 0.0
      %2189 = vmatpush1.msra.mxu0 0.0
      %2190 = vmatprep.subr.mxu0 0.0
      %2191 = vmatpush1.msra.mxu0 0.0
      %2192 = vmatprep.subr.mxu0 0.0
      %2193 = vmatpush1.msra.mxu0 0.0
      %2194 = vmatprep.subr.mxu0 0.0
      %2195 = vmatpush1.msra.mxu0 0.0
      %2196 = vmatprep.subr.mxu0 0.0
      %2197 = vmatpush1.msra.mxu0 0.0
      %2198 = vmatprep.subr.mxu0 0.0
      %2199 = vmatpush1.msra.mxu0 0.0
      %2200 = vmatprep.subr.mxu0 0.0
      %2201 = vmatpush1.msra.mxu0 0.0
      %2202 = vmatprep.subr.mxu0 0.0
      %2203 = vmatpush1.msra.mxu0 0.0
      %2204 = vmatprep.subr.mxu0 0.0
      %2205 = vmatpush1.msra.mxu0 0.0
      %2206 = vmatprep.subr.mxu0 0.0
      %2207 = vmatpush1.msra.mxu0 0.0
      %2208 = vmatprep.subr.mxu0 0.0
      %2209 = vmatpush1.msra.mxu0 0.0
      %2210 = vmatprep.subr.mxu0 0.0
      %2211 = vmatpush1.msra.mxu0 0.0
      %2212 = vmatprep.subr.mxu0 0.0
      %2213 = vmatpush1.msra.mxu0 0.0
      %2214 = vmatprep.subr.mxu0 0.0
      %2215 = vmatpush1.msra.mxu0 0.0
      %2216 = vmatprep.subr.mxu0 0.0
      %2217 = vmatpush1.msra.mxu0 0.0
      %2218 = vmatprep.subr.mxu0 0.0
      %2219 = vmatpush1.msra.mxu0 0.0
      %2220 = vmatprep.subr.mxu0 0.0
      %2221 = vmatpush1.msra.mxu0 0.0
      %2222 = vmatprep.subr.mxu0 0.0
      %2223 = vmatpush1.msra.mxu0 0.0
      %2224 = vmatprep.subr.mxu0 0.0
      %2225 = vmatpush1.msra.mxu0 0.0
      %2226 = vmatprep.subr.mxu0 0.0
      %2227 = vmatpush1.msra.mxu0 0.0
      %2228 = vmatprep.subr.mxu0 0.0
      %2229 = vmatpush1.msra.mxu0 0.0
      %2230 = vmatprep.subr.mxu0 0.0
      %2231 = vmatpush1.msra.mxu0 0.0
      %2232 = vmatprep.subr.mxu0 0.0
      %2233 = vmatpush1.msra.mxu0 0.0
      %2234 = vmatprep.subr.mxu0 0.0
      %2235 = vmatpush1.msra.mxu0 0.0
      %2236 = vmatprep.mubr.f32.mxu0 0.0
      %v2237 = vand.u32 %v2074, 4294901760
      %2238 = vmatmul.mubr.f32.gmra.mrb[0].mxu0 %v2237
      %v2239 = vpop.f32.mrb[0].mxu0
      %v2240 = vadd.f32 %v2154, %v2239
      %v2241 = vpop.f32.mrb[0].mxu0
      %2242 = vdwg.mxu0
      %2243 = vmatprep.subr.mxu0 0.0
      %v2244 = vand.u32 %v2070, 4294901760
      %v2245 = vsub.f32 %v2070, %v2244
      %2246 = vmatpush1.msra.mxu0 %v2245
      %2247 = vmatprep.subr.mxu0 0.0
      %v2248 = vand.u32 %v2071, 4294901760
      %v2249 = vsub.f32 %v2071, %v2248
      %2250 = vmatpush1.msra.mxu0 %v2249
      %2251 = vmatprep.subr.mxu0 0.0
      %v2252 = vand.u32 %v2077, 4294901760
      %v2253 = vsub.f32 %v2077, %v2252
      %2254 = vmatpush1.msra.mxu0 %v2253
      %2255 = vmatprep.subr.mxu0 0.0
      %2256 = vmatpush1.msra.mxu0 0.0
      %2257 = vmatprep.subr.mxu0 0.0
      %2258 = vmatpush1.msra.mxu0 0.0
      %2259 = vmatprep.subr.mxu0 0.0
      %2260 = vmatpush1.msra.mxu0 0.0
      %2261 = vmatprep.subr.mxu0 0.0
      %2262 = vmatpush1.msra.mxu0 0.0
      %2263 = vmatprep.subr.mxu0 0.0
      %2264 = vmatpush1.msra.mxu0 0.0
      %2265 = vmatprep.subr.mxu0 0.0
      %2266 = vmatpush1.msra.mxu0 0.0
      %2267 = vmatprep.subr.mxu0 0.0
      %2268 = vmatpush1.msra.mxu0 0.0
      %2269 = vmatprep.subr.mxu0 0.0
      %2270 = vmatpush1.msra.mxu0 0.0
      %2271 = vmatprep.subr.mxu0 0.0
      %2272 = vmatpush1.msra.mxu0 0.0
      %2273 = vmatprep.subr.mxu0 0.0
      %2274 = vmatpush1.msra.mxu0 0.0
      %2275 = vmatprep.subr.mxu0 0.0
      %2276 = vmatpush1.msra.mxu0 0.0
      %2277 = vmatprep.subr.mxu0 0.0
      %2278 = vmatpush1.msra.mxu0 0.0
      %2279 = vmatprep.subr.mxu0 0.0
      %2280 = vmatpush1.msra.mxu0 0.0
      %2281 = vmatprep.subr.mxu0 0.0
      %2282 = vmatpush1.msra.mxu0 0.0
      %2283 = vmatprep.subr.mxu0 0.0
      %2284 = vmatpush1.msra.mxu0 0.0
      %2285 = vmatprep.subr.mxu0 0.0
      %2286 = vmatpush1.msra.mxu0 0.0
      %2287 = vmatprep.subr.mxu0 0.0
      %2288 = vmatpush1.msra.mxu0 0.0
      %2289 = vmatprep.subr.mxu0 0.0
      %2290 = vmatpush1.msra.mxu0 0.0
      %2291 = vmatprep.subr.mxu0 0.0
      %2292 = vmatpush1.msra.mxu0 0.0
      %2293 = vmatprep.subr.mxu0 0.0
      %2294 = vmatpush1.msra.mxu0 0.0
      %2295 = vmatprep.subr.mxu0 0.0
      %2296 = vmatpush1.msra.mxu0 0.0
      %2297 = vmatprep.subr.mxu0 0.0
      %2298 = vmatpush1.msra.mxu0 0.0
      %2299 = vmatprep.subr.mxu0 0.0
      %2300 = vmatpush1.msra.mxu0 0.0
      %2301 = vmatprep.subr.mxu0 0.0
      %2302 = vmatpush1.msra.mxu0 0.0
      %2303 = vmatprep.subr.mxu0 0.0
      %2304 = vmatpush1.msra.mxu0 0.0
      %2305 = vmatprep.subr.mxu0 0.0
      %2306 = vmatpush1.msra.mxu0 0.0
      %2307 = vmatprep.subr.mxu0 0.0
      %2308 = vmatpush1.msra.mxu0 0.0
      %2309 = vmatprep.subr.mxu0 0.0
      %2310 = vmatpush1.msra.mxu0 0.0
      %2311 = vmatprep.subr.mxu0 0.0
      %2312 = vmatpush1.msra.mxu0 0.0
      %2313 = vmatprep.mubr.f32.mxu0 0.0
      %v2314 = vand.u32 %v2074, 4294901760
      %v2315 = vsub.f32 %v2074, %v2314
      %2316 = vmatmul.mubr.f32.gmra.mrb[0].mxu0 %v2315
      %v2317 = vpop.f32.mrb[0].mxu0
      %v2318 = vadd.f32 %v2240, %v2317
      %v2319 = vpop.f32.mrb[0].mxu0
      %2320 = vdwg.mxu0
      %2321 = vmatprep.subr.mxu0 0.0
      %v2322 = vand.u32 %v2070, 4294901760
      %2323 = vmatpush1.msra.mxu0 %v2322
      %2324 = vmatprep.subr.mxu0 0.0
      %v2325 = vand.u32 %v2071, 4294901760
      %2326 = vmatpush1.msra.mxu0 %v2325
      %2327 = vmatprep.subr.mxu0 0.0
      %v2328 = vand.u32 %v2077, 4294901760
      %2329 = vmatpush1.msra.mxu0 %v2328
      %2330 = vmatprep.subr.mxu0 0.0
      %2331 = vmatpush1.msra.mxu0 0.0
      %2332 = vmatprep.subr.mxu0 0.0
      %2333 = vmatpush1.msra.mxu0 0.0
      %2334 = vmatprep.subr.mxu0 0.0
      %2335 = vmatpush1.msra.mxu0 0.0
      %2336 = vmatprep.subr.mxu0 0.0
      %2337 = vmatpush1.msra.mxu0 0.0
      %2338 = vmatprep.subr.mxu0 0.0
      %2339 = vmatpush1.msra.mxu0 0.0
      %2340 = vmatprep.subr.mxu0 0.0
      %2341 = vmatpush1.msra.mxu0 0.0
      %2342 = vmatprep.subr.mxu0 0.0
      %2343 = vmatpush1.msra.mxu0 0.0
      %2344 = vmatprep.subr.mxu0 0.0
      %2345 = vmatpush1.msra.mxu0 0.0
      %2346 = vmatprep.subr.mxu0 0.0
      %2347 = vmatpush1.msra.mxu0 0.0
      %2348 = vmatprep.subr.mxu0 0.0
      %2349 = vmatpush1.msra.mxu0 0.0
      %2350 = vmatprep.subr.mxu0 0.0
      %2351 = vmatpush1.msra.mxu0 0.0
      %2352 = vmatprep.subr.mxu0 0.0
      %2353 = vmatpush1.msra.mxu0 0.0
      %2354 = vmatprep.subr.mxu0 0.0
      %2355 = vmatpush1.msra.mxu0 0.0
      %2356 = vmatprep.subr.mxu0 0.0
      %2357 = vmatpush1.msra.mxu0 0.0
      %2358 = vmatprep.subr.mxu0 0.0
      %2359 = vmatpush1.msra.mxu0 0.0
      %2360 = vmatprep.subr.mxu0 0.0
      %2361 = vmatpush1.msra.mxu0 0.0
      %2362 = vmatprep.subr.mxu0 0.0
      %2363 = vmatpush1.msra.mxu0 0.0
      %2364 = vmatprep.subr.mxu0 0.0
      %2365 = vmatpush1.msra.mxu0 0.0
      %2366 = vmatprep.subr.mxu0 0.0
      %2367 = vmatpush1.msra.mxu0 0.0
      %2368 = vmatprep.subr.mxu0 0.0
      %2369 = vmatpush1.msra.mxu0 0.0
      %2370 = vmatprep.subr.mxu0 0.0
      %2371 = vmatpush1.msra.mxu0 0.0
      %2372 = vmatprep.subr.mxu0 0.0
      %2373 = vmatpush1.msra.mxu0 0.0
      %2374 = vmatprep.subr.mxu0 0.0
      %2375 = vmatpush1.msra.mxu0 0.0
      %2376 = vmatprep.subr.mxu0 0.0
      %2377 = vmatpush1.msra.mxu0 0.0
      %2378 = vmatprep.subr.mxu0 0.0
      %2379 = vmatpush1.msra.mxu0 0.0
      %2380 = vmatprep.subr.mxu0 0.0
      %2381 = vmatpush1.msra.mxu0 0.0
      %2382 = vmatprep.subr.mxu0 0.0
      %2383 = vmatpush1.msra.mxu0 0.0
      %2384 = vmatprep.subr.mxu0 0.0
      %2385 = vmatpush1.msra.mxu0 0.0
      %2386 = vmatprep.subr.mxu0 0.0
      %2387 = vmatpush1.msra.mxu0 0.0
      %2388 = vmatprep.mubr.f32.mxu0 0.0
      %v2389 = vand.u32 %v2074, 4294901760
      %v2390 = vsub.f32 %v2074, %v2389
      %v2391 = vand.u32 %v2390, 4294901760
      %2392 = vmatmul.mubr.f32.gmra.mrb[0].mxu0 %v2391
      %v2393 = vpop.f32.mrb[0].mxu0
      %v2394 = vadd.f32 %v2318, %v2393
      %v2395 = vpop.f32.mrb[0].mxu0
      %2396 = vdwg.mxu0
      %2397 = vmatprep.subr.mxu0 0.0
      %v2398 = vand.u32 %v2070, 4294901760
      %v2399 = vsub.f32 %v2070, %v2398
      %v2400 = vand.u32 %v2399, 4294901760
      %2401 = vmatpush1.msra.mxu0 %v2400
      %2402 = vmatprep.subr.mxu0 0.0
      %v2403 = vand.u32 %v2071, 4294901760
      %v2404 = vsub.f32 %v2071, %v2403
      %v2405 = vand.u32 %v2404, 4294901760
      %2406 = vmatpush1.msra.mxu0 %v2405
      %2407 = vmatprep.subr.mxu0 0.0
      %v2408 = vand.u32 %v2077, 4294901760
      %v2409 = vsub.f32 %v2077, %v2408
      %v2410 = vand.u32 %v2409, 4294901760
      %2411 = vmatpush1.msra.mxu0 %v2410
      %2412 = vmatprep.subr.mxu0 0.0
      %2413 = vmatpush1.msra.mxu0 0.0
      %2414 = vmatprep.subr.mxu0 0.0
      %2415 = vmatpush1.msra.mxu0 0.0
      %2416 = vmatprep.subr.mxu0 0.0
      %2417 = vmatpush1.msra.mxu0 0.0
      %2418 = vmatprep.subr.mxu0 0.0
      %2419 = vmatpush1.msra.mxu0 0.0
      %2420 = vmatprep.subr.mxu0 0.0
      %2421 = vmatpush1.msra.mxu0 0.0
      %2422 = vmatprep.subr.mxu0 0.0
      %2423 = vmatpush1.msra.mxu0 0.0
      %2424 = vmatprep.subr.mxu0 0.0
      %2425 = vmatpush1.msra.mxu0 0.0
      %2426 = vmatprep.subr.mxu0 0.0
      %2427 = vmatpush1.msra.mxu0 0.0
      %2428 = vmatprep.subr.mxu0 0.0
      %2429 = vmatpush1.msra.mxu0 0.0
      %2430 = vmatprep.subr.mxu0 0.0
      %2431 = vmatpush1.msra.mxu0 0.0
      %2432 = vmatprep.subr.mxu0 0.0
      %2433 = vmatpush1.msra.mxu0 0.0
      %2434 = vmatprep.subr.mxu0 0.0
      %2435 = vmatpush1.msra.mxu0 0.0
      %2436 = vmatprep.subr.mxu0 0.0
      %2437 = vmatpush1.msra.mxu0 0.0
      %2438 = vmatprep.subr.mxu0 0.0
      %2439 = vmatpush1.msra.mxu0 0.0
      %2440 = vmatprep.subr.mxu0 0.0
      %2441 = vmatpush1.msra.mxu0 0.0
      %2442 = vmatprep.subr.mxu0 0.0
      %2443 = vmatpush1.msra.mxu0 0.0
      %2444 = vmatprep.subr.mxu0 0.0
      %2445 = vmatpush1.msra.mxu0 0.0
      %2446 = vmatprep.subr.mxu0 0.0
      %2447 = vmatpush1.msra.mxu0 0.0
      %2448 = vmatprep.subr.mxu0 0.0
      %2449 = vmatpush1.msra.mxu0 0.0
      %2450 = vmatprep.subr.mxu0 0.0
      %2451 = vmatpush1.msra.mxu0 0.0
      %2452 = vmatprep.subr.mxu0 0.0
      %2453 = vmatpush1.msra.mxu0 0.0
      %2454 = vmatprep.subr.mxu0 0.0
      %2455 = vmatpush1.msra.mxu0 0.0
      %2456 = vmatprep.subr.mxu0 0.0
      %2457 = vmatpush1.msra.mxu0 0.0
      %2458 = vmatprep.subr.mxu0 0.0
      %2459 = vmatpush1.msra.mxu0 0.0
      %2460 = vmatprep.subr.mxu0 0.0
      %2461 = vmatpush1.msra.mxu0 0.0
      %2462 = vmatprep.subr.mxu0 0.0
      %2463 = vmatpush1.msra.mxu0 0.0
      %2464 = vmatprep.subr.mxu0 0.0
      %2465 = vmatpush1.msra.mxu0 0.0
      %2466 = vmatprep.subr.mxu0 0.0
      %2467 = vmatpush1.msra.mxu0 0.0
      %2468 = vmatprep.subr.mxu0 0.0
      %2469 = vmatpush1.msra.mxu0 0.0
      %2470 = vmatprep.mubr.f32.mxu0 0.0
      %v2471 = vand.u32 %v2074, 4294901760
      %2472 = vmatmul.mubr.f32.gmra.mrb[0].mxu0 %v2471
      %v2473 = vpop.f32.mrb[0].mxu0
      %v2474 = vadd.f32 %v2394, %v2473
      %v2475 = vpop.f32.mrb[0].mxu0
      %2476 = vdwg.mxu0
      %2477 = vmatprep.subr.mxu0 0.0
      %v2478 = vand.u32 %v2070, 4294901760
      %2479 = vmatpush1.msra.mxu0 %v2478
      %2480 = vmatprep.subr.mxu0 0.0
      %v2481 = vand.u32 %v2071, 4294901760
      %2482 = vmatpush1.msra.mxu0 %v2481
      %2483 = vmatprep.subr.mxu0 0.0
      %v2484 = vand.u32 %v2077, 4294901760
      %2485 = vmatpush1.msra.mxu0 %v2484
      %2486 = vmatprep.subr.mxu0 0.0
      %2487 = vmatpush1.msra.mxu0 0.0
      %2488 = vmatprep.subr.mxu0 0.0
      %2489 = vmatpush1.msra.mxu0 0.0
      %2490 = vmatprep.subr.mxu0 0.0
      %2491 = vmatpush1.msra.mxu0 0.0
      %2492 = vmatprep.subr.mxu0 0.0
      %2493 = vmatpush1.msra.mxu0 0.0
      %2494 = vmatprep.subr.mxu0 0.0
      %2495 = vmatpush1.msra.mxu0 0.0
      %2496 = vmatprep.subr.mxu0 0.0
      %2497 = vmatpush1.msra.mxu0 0.0
      %2498 = vmatprep.subr.mxu0 0.0
      %2499 = vmatpush1.msra.mxu0 0.0
      %2500 = vmatprep.subr.mxu0 0.0
      %2501 = vmatpush1.msra.mxu0 0.0
      %2502 = vmatprep.subr.mxu0 0.0
      %2503 = vmatpush1.msra.mxu0 0.0
      %2504 = vmatprep.subr.mxu0 0.0
      %2505 = vmatpush1.msra.mxu0 0.0
      %2506 = vmatprep.subr.mxu0 0.0
      %2507 = vmatpush1.msra.mxu0 0.0
      %2508 = vmatprep.subr.mxu0 0.0
      %2509 = vmatpush1.msra.mxu0 0.0
      %2510 = vmatprep.subr.mxu0 0.0
      %2511 = vmatpush1.msra.mxu0 0.0
      %2512 = vmatprep.subr.mxu0 0.0
      %2513 = vmatpush1.msra.mxu0 0.0
      %2514 = vmatprep.subr.mxu0 0.0
      %2515 = vmatpush1.msra.mxu0 0.0
      %2516 = vmatprep.subr.mxu0 0.0
      %2517 = vmatpush1.msra.mxu0 0.0
      %2518 = vmatprep.subr.mxu0 0.0
      %2519 = vmatpush1.msra.mxu0 0.0
      %2520 = vmatprep.subr.mxu0 0.0
      %2521 = vmatpush1.msra.mxu0 0.0
      %2522 = vmatprep.subr.mxu0 0.0
      %2523 = vmatpush1.msra.mxu0 0.0
      %2524 = vmatprep.subr.mxu0 0.0
      %2525 = vmatpush1.msra.mxu0 0.0
      %2526 = vmatprep.subr.mxu0 0.0
      %2527 = vmatpush1.msra.mxu0 0.0
      %2528 = vmatprep.subr.mxu0 0.0
      %2529 = vmatpush1.msra.mxu0 0.0
      %2530 = vmatprep.subr.mxu0 0.0
      %2531 = vmatpush1.msra.mxu0 0.0
      %2532 = vmatprep.subr.mxu0 0.0
      %2533 = vmatpush1.msra.mxu0 0.0
      %2534 = vmatprep.subr.mxu0 0.0
      %2535 = vmatpush1.msra.mxu0 0.0
      %2536 = vmatprep.subr.mxu0 0.0
      %2537 = vmatpush1.msra.mxu0 0.0
      %2538 = vmatprep.subr.mxu0 0.0
      %2539 = vmatpush1.msra.mxu0 0.0
      %2540 = vmatprep.subr.mxu0 0.0
      %2541 = vmatpush1.msra.mxu0 0.0
      %2542 = vmatprep.subr.mxu0 0.0
      %2543 = vmatpush1.msra.mxu0 0.0
      %2544 = vmatprep.mubr.f32.mxu0 0.0
      %v2545 = vand.u32 %v2074, 4294901760
      %2546 = vmatmul.mubr.f32.gmra.mrb[0].mxu0 %v2545
      %v2547 = vpop.f32.mrb[0].mxu0
      %v2548 = vadd.f32 %v2474, %v2547
      %v2549 = vpop.f32.mrb[0].mxu0
      %2550 = vdwg.mxu0
      %v2551 = vadd.f32 %v2068, %v2548
      %v2552 = vmax.f32 %v2551, 0.0
      %v2553 = vld [vmem:[%s6] sm:$0xff]
      %v2554 = vld [vmem:[%s6 + $0x8] sm:$0xff]
      %v2555 = vld [vmem:[%s6 + $0x10] sm:$0xff]
      %v2556 = vld [vmem:[%s6 + $0x18] sm:$0xff]
      %v2557 = vld [vmem:[%s6 + $0x20] sm:$0xff]
      %v2558 = vld [vmem:[%s6 + $0x28] sm:$0xff]
      %v2559 = vld [vmem:[%s6 + $0x30] sm:$0xff]
      %v2560 = vld [vmem:[%s6 + $0x38] sm:$0xff]
      %v2561 = vld [vmem:[%s6 + $0x40] sm:$0xff]
      %v2562 = vld [vmem:[%s6 + $0x48] sm:$0xff]
      %v2563 = vld [vmem:[%s6 + $0x50] sm:$0xff]
      %v2564 = vld [vmem:[%s6 + $0x58] sm:$0xff]
      %v2565 = vld [vmem:[%s6 + $0x60] sm:$0xff]
      %v2566 = vld [vmem:[%s6 + $0x68] sm:$0xff]
      %v2567 = vld [vmem:[%s6 + $0x70] sm:$0xff]
      %v2568 = vld [vmem:[%s6 + $0x78] sm:$0xff]
      %v2569 = vld [vmem:[%s7] sm:$0x1]
      %v2571 = vlaneseq
      %v2572 = vshrl.u32 %v2571, 7
      %v2573 = vsub.s32 0, %v2572
      %v2574 = vrot.slane %v2569, %v2573
      %2576 = vmatprep.subr.mxu0 0.0
      %v2577 = vand.u32 %v2553, 4294901760
      %2578 = vmatpush1.msra.mxu0 %v2577
      %2579 = vmatprep.subr.mxu0 0.0
      %v2580 = vand.u32 %v2554, 4294901760
      %2581 = vmatpush1.msra.mxu0 %v2580
      %2582 = vmatprep.subr.mxu0 0.0
      %v2583 = vand.u32 %v2555, 4294901760
      %2584 = vmatpush1.msra.mxu0 %v2583
      %2585 = vmatprep.subr.mxu0 0.0
      %v2586 = vand.u32 %v2556, 4294901760
      %2587 = vmatpush1.msra.mxu0 %v2586
      %2588 = vmatprep.subr.mxu0 0.0
      %v2589 = vand.u32 %v2557, 4294901760
      %2590 = vmatpush1.msra.mxu0 %v2589
      %2591 = vmatprep.subr.mxu0 0.0
      %v2592 = vand.u32 %v2558, 4294901760
      %2593 = vmatpush1.msra.mxu0 %v2592
      %2594 = vmatprep.subr.mxu0 0.0
      %v2595 = vand.u32 %v2559, 4294901760
      %2596 = vmatpush1.msra.mxu0 %v2595
      %2597 = vmatprep.subr.mxu0 0.0
      %v2598 = vand.u32 %v2560, 4294901760
      %2599 = vmatpush1.msra.mxu0 %v2598
      %2600 = vmatprep.subr.mxu0 0.0
      %v2601 = vand.u32 %v2561, 4294901760
      %2602 = vmatpush1.msra.mxu0 %v2601
      %2603 = vmatprep.subr.mxu0 0.0
      %v2604 = vand.u32 %v2562, 4294901760
      %2605 = vmatpush1.msra.mxu0 %v2604
      %2606 = vmatprep.subr.mxu0 0.0
      %v2607 = vand.u32 %v2563, 4294901760
      %2608 = vmatpush1.msra.mxu0 %v2607
      %2609 = vmatprep.subr.mxu0 0.0
      %v2610 = vand.u32 %v2564, 4294901760
      %2611 = vmatpush1.msra.mxu0 %v2610
      %2612 = vmatprep.subr.mxu0 0.0
      %v2613 = vand.u32 %v2565, 4294901760
      %2614 = vmatpush1.msra.mxu0 %v2613
      %2615 = vmatprep.subr.mxu0 0.0
      %v2616 = vand.u32 %v2566, 4294901760
      %2617 = vmatpush1.msra.mxu0 %v2616
      %2618 = vmatprep.subr.mxu0 0.0
      %v2619 = vand.u32 %v2567, 4294901760
      %2620 = vmatpush1.msra.mxu0 %v2619
      %2621 = vmatprep.subr.mxu0 0.0
      %v2622 = vand.u32 %v2568, 4294901760
      %2623 = vmatpush1.msra.mxu0 %v2622
      %2624 = vmatprep.subr.mxu0 0.0
      %2625 = vmatpush1.msra.mxu0 0.0
      %2626 = vmatprep.subr.mxu0 0.0
      %2627 = vmatpush1.msra.mxu0 0.0
      %2628 = vmatprep.subr.mxu0 0.0
      %2629 = vmatpush1.msra.mxu0 0.0
      %2630 = vmatprep.subr.mxu0 0.0
      %2631 = vmatpush1.msra.mxu0 0.0
      %2632 = vmatprep.subr.mxu0 0.0
      %2633 = vmatpush1.msra.mxu0 0.0
      %2634 = vmatprep.subr.mxu0 0.0
      %2635 = vmatpush1.msra.mxu0 0.0
      %2636 = vmatprep.subr.mxu0 0.0
      %2637 = vmatpush1.msra.mxu0 0.0
      %2638 = vmatprep.subr.mxu0 0.0
      %2639 = vmatpush1.msra.mxu0 0.0
      %2640 = vmatprep.subr.mxu0 0.0
      %2641 = vmatpush1.msra.mxu0 0.0
      %2642 = vmatprep.subr.mxu0 0.0
      %2643 = vmatpush1.msra.mxu0 0.0
      %2644 = vmatprep.subr.mxu0 0.0
      %2645 = vmatpush1.msra.mxu0 0.0
      %2646 = vmatprep.subr.mxu0 0.0
      %2647 = vmatpush1.msra.mxu0 0.0
      %2648 = vmatprep.subr.mxu0 0.0
      %2649 = vmatpush1.msra.mxu0 0.0
      %2650 = vmatprep.subr.mxu0 0.0
      %2651 = vmatpush1.msra.mxu0 0.0
      %2652 = vmatprep.subr.mxu0 0.0
      %2653 = vmatpush1.msra.mxu0 0.0
      %2654 = vmatprep.subr.mxu0 0.0
      %2655 = vmatpush1.msra.mxu0 0.0
      %2656 = vmatprep.mubr.f32.mxu0 0.0
      %v2657 = vand.u32 %v2552, 4294901760
      %v2658 = vsub.f32 %v2552, %v2657
      %v2659 = vand.u32 %v2658, 4294901760
      %v2660 = vsub.f32 %v2658, %v2659
      %v2661 = vand.u32 %v2660, 4294901760
      %2662 = vmatmul.mubr.f32.gmra.mrb[0].mxu0 %v2661
      %v2663 = vpop.f32.mrb[0].mxu0
      %v2664 = vadd.f32 %v2574, %v2663
      %v2665 = vpop.f32.mrb[0].mxu0
      %2666 = vdwg.mxu0
      %2667 = vmatprep.subr.mxu0 0.0
      %v2668 = vand.u32 %v2553, 4294901760
      %v2669 = vsub.f32 %v2553, %v2668
      %v2670 = vand.u32 %v2669, 4294901760
      %v2671 = vsub.f32 %v2669, %v2670
      %v2672 = vand.u32 %v2671, 4294901760
      %2673 = vmatpush1.msra.mxu0 %v2672
      %2674 = vmatprep.subr.mxu0 0.0
      %v2675 = vand.u32 %v2554, 4294901760
      %v2676 = vsub.f32 %v2554, %v2675
      %v2677 = vand.u32 %v2676, 4294901760
      %v2678 = vsub.f32 %v2676, %v2677
      %v2679 = vand.u32 %v2678, 4294901760
      %2680 = vmatpush1.msra.mxu0 %v2679
      %2681 = vmatprep.subr.mxu0 0.0
      %v2682 = vand.u32 %v2555, 4294901760
      %v2683 = vsub.f32 %v2555, %v2682
      %v2684 = vand.u32 %v2683, 4294901760
      %v2685 = vsub.f32 %v2683, %v2684
      %v2686 = vand.u32 %v2685, 4294901760
      %2687 = vmatpush1.msra.mxu0 %v2686
      %2688 = vmatprep.subr.mxu0 0.0
      %v2689 = vand.u32 %v2556, 4294901760
      %v2690 = vsub.f32 %v2556, %v2689
      %v2691 = vand.u32 %v2690, 4294901760
      %v2692 = vsub.f32 %v2690, %v2691
      %v2693 = vand.u32 %v2692, 4294901760
      %2694 = vmatpush1.msra.mxu0 %v2693
      %2695 = vmatprep.subr.mxu0 0.0
      %v2696 = vand.u32 %v2557, 4294901760
      %v2697 = vsub.f32 %v2557, %v2696
      %v2698 = vand.u32 %v2697, 4294901760
      %v2699 = vsub.f32 %v2697, %v2698
      %v2700 = vand.u32 %v2699, 4294901760
      %2701 = vmatpush1.msra.mxu0 %v2700
      %2702 = vmatprep.subr.mxu0 0.0
      %v2703 = vand.u32 %v2558, 4294901760
      %v2704 = vsub.f32 %v2558, %v2703
      %v2705 = vand.u32 %v2704, 4294901760
      %v2706 = vsub.f32 %v2704, %v2705
      %v2707 = vand.u32 %v2706, 4294901760
      %2708 = vmatpush1.msra.mxu0 %v2707
      %2709 = vmatprep.subr.mxu0 0.0
      %v2710 = vand.u32 %v2559, 4294901760
      %v2711 = vsub.f32 %v2559, %v2710
      %v2712 = vand.u32 %v2711, 4294901760
      %v2713 = vsub.f32 %v2711, %v2712
      %v2714 = vand.u32 %v2713, 4294901760
      %2715 = vmatpush1.msra.mxu0 %v2714
      %2716 = vmatprep.subr.mxu0 0.0
      %v2717 = vand.u32 %v2560, 4294901760
      %v2718 = vsub.f32 %v2560, %v2717
      %v2719 = vand.u32 %v2718, 4294901760
      %v2720 = vsub.f32 %v2718, %v2719
      %v2721 = vand.u32 %v2720, 4294901760
      %2722 = vmatpush1.msra.mxu0 %v2721
      %2723 = vmatprep.subr.mxu0 0.0
      %v2724 = vand.u32 %v2561, 4294901760
      %v2725 = vsub.f32 %v2561, %v2724
      %v2726 = vand.u32 %v2725, 4294901760
      %v2727 = vsub.f32 %v2725, %v2726
      %v2728 = vand.u32 %v2727, 4294901760
      %2729 = vmatpush1.msra.mxu0 %v2728
      %2730 = vmatprep.subr.mxu0 0.0
      %v2731 = vand.u32 %v2562, 4294901760
      %v2732 = vsub.f32 %v2562, %v2731
      %v2733 = vand.u32 %v2732, 4294901760
      %v2734 = vsub.f32 %v2732, %v2733
      %v2735 = vand.u32 %v2734, 4294901760
      %2736 = vmatpush1.msra.mxu0 %v2735
      %2737 = vmatprep.subr.mxu0 0.0
      %v2738 = vand.u32 %v2563, 4294901760
      %v2739 = vsub.f32 %v2563, %v2738
      %v2740 = vand.u32 %v2739, 4294901760
      %v2741 = vsub.f32 %v2739, %v2740
      %v2742 = vand.u32 %v2741, 4294901760
      %2743 = vmatpush1.msra.mxu0 %v2742
      %2744 = vmatprep.subr.mxu0 0.0
      %v2745 = vand.u32 %v2564, 4294901760
      %v2746 = vsub.f32 %v2564, %v2745
      %v2747 = vand.u32 %v2746, 4294901760
      %v2748 = vsub.f32 %v2746, %v2747
      %v2749 = vand.u32 %v2748, 4294901760
      %2750 = vmatpush1.msra.mxu0 %v2749
      %2751 = vmatprep.subr.mxu0 0.0
      %v2752 = vand.u32 %v2565, 4294901760
      %v2753 = vsub.f32 %v2565, %v2752
      %v2754 = vand.u32 %v2753, 4294901760
      %v2755 = vsub.f32 %v2753, %v2754
      %v2756 = vand.u32 %v2755, 4294901760
      %2757 = vmatpush1.msra.mxu0 %v2756
      %2758 = vmatprep.subr.mxu0 0.0
      %v2759 = vand.u32 %v2566, 4294901760
      %v2760 = vsub.f32 %v2566, %v2759
      %v2761 = vand.u32 %v2760, 4294901760
      %v2762 = vsub.f32 %v2760, %v2761
      %v2763 = vand.u32 %v2762, 4294901760
      %2764 = vmatpush1.msra.mxu0 %v2763
      %2765 = vmatprep.subr.mxu0 0.0
      %v2766 = vand.u32 %v2567, 4294901760
      %v2767 = vsub.f32 %v2567, %v2766
      %v2768 = vand.u32 %v2767, 4294901760
      %v2769 = vsub.f32 %v2767, %v2768
      %v2770 = vand.u32 %v2769, 4294901760
      %2771 = vmatpush1.msra.mxu0 %v2770
      %2772 = vmatprep.subr.mxu0 0.0
      %v2773 = vand.u32 %v2568, 4294901760
      %v2774 = vsub.f32 %v2568, %v2773
      %v2775 = vand.u32 %v2774, 4294901760
      %v2776 = vsub.f32 %v2774, %v2775
      %v2777 = vand.u32 %v2776, 4294901760
      %2778 = vmatpush1.msra.mxu0 %v2777
      %2779 = vmatprep.subr.mxu0 0.0
      %2780 = vmatpush1.msra.mxu0 0.0
      %2781 = vmatprep.subr.mxu0 0.0
      %2782 = vmatpush1.msra.mxu0 0.0
      %2783 = vmatprep.subr.mxu0 0.0
      %2784 = vmatpush1.msra.mxu0 0.0
      %2785 = vmatprep.subr.mxu0 0.0
      %2786 = vmatpush1.msra.mxu0 0.0
      %2787 = vmatprep.subr.mxu0 0.0
      %2788 = vmatpush1.msra.mxu0 0.0
      %2789 = vmatprep.subr.mxu0 0.0
      %2790 = vmatpush1.msra.mxu0 0.0
      %2791 = vmatprep.subr.mxu0 0.0
      %2792 = vmatpush1.msra.mxu0 0.0
      %2793 = vmatprep.subr.mxu0 0.0
      %2794 = vmatpush1.msra.mxu0 0.0
      %2795 = vmatprep.subr.mxu0 0.0
      %2796 = vmatpush1.msra.mxu0 0.0
      %2797 = vmatprep.subr.mxu0 0.0
      %2798 = vmatpush1.msra.mxu0 0.0
      %2799 = vmatprep.subr.mxu0 0.0
      %2800 = vmatpush1.msra.mxu0 0.0
      %2801 = vmatprep.subr.mxu0 0.0
      %2802 = vmatpush1.msra.mxu0 0.0
      %2803 = vmatprep.subr.mxu0 0.0
      %2804 = vmatpush1.msra.mxu0 0.0
      %2805 = vmatprep.subr.mxu0 0.0
      %2806 = vmatpush1.msra.mxu0 0.0
      %2807 = vmatprep.subr.mxu0 0.0
      %2808 = vmatpush1.msra.mxu0 0.0
      %2809 = vmatprep.subr.mxu0 0.0
      %2810 = vmatpush1.msra.mxu0 0.0
      %2811 = vmatprep.mubr.f32.mxu0 0.0
      %v2812 = vand.u32 %v2552, 4294901760
      %2813 = vmatmul.mubr.f32.gmra.mrb[0].mxu0 %v2812
      %v2814 = vpop.f32.mrb[0].mxu0
      %v2815 = vadd.f32 %v2664, %v2814
      %v2816 = vpop.f32.mrb[0].mxu0
      %2817 = vdwg.mxu0
      %2818 = vmatprep.subr.mxu0 0.0
      %v2819 = vand.u32 %v2553, 4294901760
      %v2820 = vsub.f32 %v2553, %v2819
      %2821 = vmatpush1.msra.mxu0 %v2820
      %2822 = vmatprep.subr.mxu0 0.0
      %v2823 = vand.u32 %v2554, 4294901760
      %v2824 = vsub.f32 %v2554, %v2823
      %2825 = vmatpush1.msra.mxu0 %v2824
      %2826 = vmatprep.subr.mxu0 0.0
      %v2827 = vand.u32 %v2555, 4294901760
      %v2828 = vsub.f32 %v2555, %v2827
      %2829 = vmatpush1.msra.mxu0 %v2828
      %2830 = vmatprep.subr.mxu0 0.0
      %v2831 = vand.u32 %v2556, 4294901760
      %v2832 = vsub.f32 %v2556, %v2831
      %2833 = vmatpush1.msra.mxu0 %v2832
      %2834 = vmatprep.subr.mxu0 0.0
      %v2835 = vand.u32 %v2557, 4294901760
      %v2836 = vsub.f32 %v2557, %v2835
      %2837 = vmatpush1.msra.mxu0 %v2836
      %2838 = vmatprep.subr.mxu0 0.0
      %v2839 = vand.u32 %v2558, 4294901760
      %v2840 = vsub.f32 %v2558, %v2839
      %2841 = vmatpush1.msra.mxu0 %v2840
      %2842 = vmatprep.subr.mxu0 0.0
      %v2843 = vand.u32 %v2559, 4294901760
      %v2844 = vsub.f32 %v2559, %v2843
      %2845 = vmatpush1.msra.mxu0 %v2844
      %2846 = vmatprep.subr.mxu0 0.0
      %v2847 = vand.u32 %v2560, 4294901760
      %v2848 = vsub.f32 %v2560, %v2847
      %2849 = vmatpush1.msra.mxu0 %v2848
      %2850 = vmatprep.subr.mxu0 0.0
      %v2851 = vand.u32 %v2561, 4294901760
      %v2852 = vsub.f32 %v2561, %v2851
      %2853 = vmatpush1.msra.mxu0 %v2852
      %2854 = vmatprep.subr.mxu0 0.0
      %v2855 = vand.u32 %v2562, 4294901760
      %v2856 = vsub.f32 %v2562, %v2855
      %2857 = vmatpush1.msra.mxu0 %v2856
      %2858 = vmatprep.subr.mxu0 0.0
      %v2859 = vand.u32 %v2563, 4294901760
      %v2860 = vsub.f32 %v2563, %v2859
      %2861 = vmatpush1.msra.mxu0 %v2860
      %2862 = vmatprep.subr.mxu0 0.0
      %v2863 = vand.u32 %v2564, 4294901760
      %v2864 = vsub.f32 %v2564, %v2863
      %2865 = vmatpush1.msra.mxu0 %v2864
      %2866 = vmatprep.subr.mxu0 0.0
      %v2867 = vand.u32 %v2565, 4294901760
      %v2868 = vsub.f32 %v2565, %v2867
      %2869 = vmatpush1.msra.mxu0 %v2868
      %2870 = vmatprep.subr.mxu0 0.0
      %v2871 = vand.u32 %v2566, 4294901760
      %v2872 = vsub.f32 %v2566, %v2871
      %2873 = vmatpush1.msra.mxu0 %v2872
      %2874 = vmatprep.subr.mxu0 0.0
      %v2875 = vand.u32 %v2567, 4294901760
      %v2876 = vsub.f32 %v2567, %v2875
      %2877 = vmatpush1.msra.mxu0 %v2876
      %2878 = vmatprep.subr.mxu0 0.0
      %v2879 = vand.u32 %v2568, 4294901760
      %v2880 = vsub.f32 %v2568, %v2879
      %2881 = vmatpush1.msra.mxu0 %v2880
      %2882 = vmatprep.subr.mxu0 0.0
      %2883 = vmatpush1.msra.mxu0 0.0
      %2884 = vmatprep.subr.mxu0 0.0
      %2885 = vmatpush1.msra.mxu0 0.0
      %2886 = vmatprep.subr.mxu0 0.0
      %2887 = vmatpush1.msra.mxu0 0.0
      %2888 = vmatprep.subr.mxu0 0.0
      %2889 = vmatpush1.msra.mxu0 0.0
      %2890 = vmatprep.subr.mxu0 0.0
      %2891 = vmatpush1.msra.mxu0 0.0
      %2892 = vmatprep.subr.mxu0 0.0
      %2893 = vmatpush1.msra.mxu0 0.0
      %2894 = vmatprep.subr.mxu0 0.0
      %2895 = vmatpush1.msra.mxu0 0.0
      %2896 = vmatprep.subr.mxu0 0.0
      %2897 = vmatpush1.msra.mxu0 0.0
      %2898 = vmatprep.subr.mxu0 0.0
      %2899 = vmatpush1.msra.mxu0 0.0
      %2900 = vmatprep.subr.mxu0 0.0
      %2901 = vmatpush1.msra.mxu0 0.0
      %2902 = vmatprep.subr.mxu0 0.0
      %2903 = vmatpush1.msra.mxu0 0.0
      %2904 = vmatprep.subr.mxu0 0.0
      %2905 = vmatpush1.msra.mxu0 0.0
      %2906 = vmatprep.subr.mxu0 0.0
      %2907 = vmatpush1.msra.mxu0 0.0
      %2908 = vmatprep.subr.mxu0 0.0
      %2909 = vmatpush1.msra.mxu0 0.0
      %2910 = vmatprep.subr.mxu0 0.0
      %2911 = vmatpush1.msra.mxu0 0.0
      %2912 = vmatprep.subr.mxu0 0.0
      %2913 = vmatpush1.msra.mxu0 0.0
      %2914 = vmatprep.mubr.f32.mxu0 0.0
      %v2915 = vand.u32 %v2552, 4294901760
      %v2916 = vsub.f32 %v2552, %v2915
      %2917 = vmatmul.mubr.f32.gmra.mrb[0].mxu0 %v2916
      %v2918 = vpop.f32.mrb[0].mxu0
      %v2919 = vadd.f32 %v2815, %v2918
      %v2920 = vpop.f32.mrb[0].mxu0
      %2921 = vdwg.mxu0
      %2922 = vmatprep.subr.mxu0 0.0
      %v2923 = vand.u32 %v2553, 4294901760
      %2924 = vmatpush1.msra.mxu0 %v2923
      %2925 = vmatprep.subr.mxu0 0.0
      %v2926 = vand.u32 %v2554, 4294901760
      %2927 = vmatpush1.msra.mxu0 %v2926
      %2928 = vmatprep.subr.mxu0 0.0
      %v2929 = vand.u32 %v2555, 4294901760
      %2930 = vmatpush1.msra.mxu0 %v2929
      %2931 = vmatprep.subr.mxu0 0.0
      %v2932 = vand.u32 %v2556, 4294901760
      %2933 = vmatpush1.msra.mxu0 %v2932
      %2934 = vmatprep.subr.mxu0 0.0
      %v2935 = vand.u32 %v2557, 4294901760
      %2936 = vmatpush1.msra.mxu0 %v2935
      %2937 = vmatprep.subr.mxu0 0.0
      %v2938 = vand.u32 %v2558, 4294901760
      %2939 = vmatpush1.msra.mxu0 %v2938
      %2940 = vmatprep.subr.mxu0 0.0
      %v2941 = vand.u32 %v2559, 4294901760
      %2942 = vmatpush1.msra.mxu0 %v2941
      %2943 = vmatprep.subr.mxu0 0.0
      %v2944 = vand.u32 %v2560, 4294901760
      %2945 = vmatpush1.msra.mxu0 %v2944
      %2946 = vmatprep.subr.mxu0 0.0
      %v2947 = vand.u32 %v2561, 4294901760
      %2948 = vmatpush1.msra.mxu0 %v2947
      %2949 = vmatprep.subr.mxu0 0.0
      %v2950 = vand.u32 %v2562, 4294901760
      %2951 = vmatpush1.msra.mxu0 %v2950
      %2952 = vmatprep.subr.mxu0 0.0
      %v2953 = vand.u32 %v2563, 4294901760
      %2954 = vmatpush1.msra.mxu0 %v2953
      %2955 = vmatprep.subr.mxu0 0.0
      %v2956 = vand.u32 %v2564, 4294901760
      %2957 = vmatpush1.msra.mxu0 %v2956
      %2958 = vmatprep.subr.mxu0 0.0
      %v2959 = vand.u32 %v2565, 4294901760
      %2960 = vmatpush1.msra.mxu0 %v2959
      %2961 = vmatprep.subr.mxu0 0.0
      %v2962 = vand.u32 %v2566, 4294901760
      %2963 = vmatpush1.msra.mxu0 %v2962
      %2964 = vmatprep.subr.mxu0 0.0
      %v2965 = vand.u32 %v2567, 4294901760
      %2966 = vmatpush1.msra.mxu0 %v2965
      %2967 = vmatprep.subr.mxu0 0.0
      %v2968 = vand.u32 %v2568, 4294901760
      %2969 = vmatpush1.msra.mxu0 %v2968
      %2970 = vmatprep.subr.mxu0 0.0
      %2971 = vmatpush1.msra.mxu0 0.0
      %2972 = vmatprep.subr.mxu0 0.0
      %2973 = vmatpush1.msra.mxu0 0.0
      %2974 = vmatprep.subr.mxu0 0.0
      %2975 = vmatpush1.msra.mxu0 0.0
      %2976 = vmatprep.subr.mxu0 0.0
      %2977 = vmatpush1.msra.mxu0 0.0
      %2978 = vmatprep.subr.mxu0 0.0
      %2979 = vmatpush1.msra.mxu0 0.0
      %2980 = vmatprep.subr.mxu0 0.0
      %2981 = vmatpush1.msra.mxu0 0.0
      %2982 = vmatprep.subr.mxu0 0.0
      %2983 = vmatpush1.msra.mxu0 0.0
      %2984 = vmatprep.subr.mxu0 0.0
      %2985 = vmatpush1.msra.mxu0 0.0
      %2986 = vmatprep.subr.mxu0 0.0
      %2987 = vmatpush1.msra.mxu0 0.0
      %2988 = vmatprep.subr.mxu0 0.0
      %2989 = vmatpush1.msra.mxu0 0.0
      %2990 = vmatprep.subr.mxu0 0.0
      %2991 = vmatpush1.msra.mxu0 0.0
      %2992 = vmatprep.subr.mxu0 0.0
      %2993 = vmatpush1.msra.mxu0 0.0
      %2994 = vmatprep.subr.mxu0 0.0
      %2995 = vmatpush1.msra.mxu0 0.0
      %2996 = vmatprep.subr.mxu0 0.0
      %2997 = vmatpush1.msra.mxu0 0.0
      %2998 = vmatprep.subr.mxu0 0.0
      %2999 = vmatpush1.msra.mxu0 0.0
      %3000 = vmatprep.subr.mxu0 0.0
      %3001 = vmatpush1.msra.mxu0 0.0
      %3002 = vmatprep.mubr.f32.mxu0 0.0
      %v3003 = vand.u32 %v2552, 4294901760
      %v3004 = vsub.f32 %v2552, %v3003
      %v3005 = vand.u32 %v3004, 4294901760
      %3006 = vmatmul.mubr.f32.gmra.mrb[0].mxu0 %v3005
      %v3007 = vpop.f32.mrb[0].mxu0
      %v3008 = vadd.f32 %v2919, %v3007
      %v3009 = vpop.f32.mrb[0].mxu0
      %3010 = vdwg.mxu0
      %3011 = vmatprep.subr.mxu0 0.0
      %v3012 = vand.u32 %v2553, 4294901760
      %v3013 = vsub.f32 %v2553, %v3012
      %v3014 = vand.u32 %v3013, 4294901760
      %3015 = vmatpush1.msra.mxu0 %v3014
      %3016 = vmatprep.subr.mxu0 0.0
      %v3017 = vand.u32 %v2554, 4294901760
      %v3018 = vsub.f32 %v2554, %v3017
      %v3019 = vand.u32 %v3018, 4294901760
      %3020 = vmatpush1.msra.mxu0 %v3019
      %3021 = vmatprep.subr.mxu0 0.0
      %v3022 = vand.u32 %v2555, 4294901760
      %v3023 = vsub.f32 %v2555, %v3022
      %v3024 = vand.u32 %v3023, 4294901760
      %3025 = vmatpush1.msra.mxu0 %v3024
      %3026 = vmatprep.subr.mxu0 0.0
      %v3027 = vand.u32 %v2556, 4294901760
      %v3028 = vsub.f32 %v2556, %v3027
      %v3029 = vand.u32 %v3028, 4294901760
      %3030 = vmatpush1.msra.mxu0 %v3029
      %3031 = vmatprep.subr.mxu0 0.0
      %v3032 = vand.u32 %v2557, 4294901760
      %v3033 = vsub.f32 %v2557, %v3032
      %v3034 = vand.u32 %v3033, 4294901760
      %3035 = vmatpush1.msra.mxu0 %v3034
      %3036 = vmatprep.subr.mxu0 0.0
      %v3037 = vand.u32 %v2558, 4294901760
      %v3038 = vsub.f32 %v2558, %v3037
      %v3039 = vand.u32 %v3038, 4294901760
      %3040 = vmatpush1.msra.mxu0 %v3039
      %3041 = vmatprep.subr.mxu0 0.0
      %v3042 = vand.u32 %v2559, 4294901760
      %v3043 = vsub.f32 %v2559, %v3042
      %v3044 = vand.u32 %v3043, 4294901760
      %3045 = vmatpush1.msra.mxu0 %v3044
      %3046 = vmatprep.subr.mxu0 0.0
      %v3047 = vand.u32 %v2560, 4294901760
      %v3048 = vsub.f32 %v2560, %v3047
      %v3049 = vand.u32 %v3048, 4294901760
      %3050 = vmatpush1.msra.mxu0 %v3049
      %3051 = vmatprep.subr.mxu0 0.0
      %v3052 = vand.u32 %v2561, 4294901760
      %v3053 = vsub.f32 %v2561, %v3052
      %v3054 = vand.u32 %v3053, 4294901760
      %3055 = vmatpush1.msra.mxu0 %v3054
      %3056 = vmatprep.subr.mxu0 0.0
      %v3057 = vand.u32 %v2562, 4294901760
      %v3058 = vsub.f32 %v2562, %v3057
      %v3059 = vand.u32 %v3058, 4294901760
      %3060 = vmatpush1.msra.mxu0 %v3059
      %3061 = vmatprep.subr.mxu0 0.0
      %v3062 = vand.u32 %v2563, 4294901760
      %v3063 = vsub.f32 %v2563, %v3062
      %v3064 = vand.u32 %v3063, 4294901760
      %3065 = vmatpush1.msra.mxu0 %v3064
      %3066 = vmatprep.subr.mxu0 0.0
      %v3067 = vand.u32 %v2564, 4294901760
      %v3068 = vsub.f32 %v2564, %v3067
      %v3069 = vand.u32 %v3068, 4294901760
      %3070 = vmatpush1.msra.mxu0 %v3069
      %3071 = vmatprep.subr.mxu0 0.0
      %v3072 = vand.u32 %v2565, 4294901760
      %v3073 = vsub.f32 %v2565, %v3072
      %v3074 = vand.u32 %v3073, 4294901760
      %3075 = vmatpush1.msra.mxu0 %v3074
      %3076 = vmatprep.subr.mxu0 0.0
      %v3077 = vand.u32 %v2566, 4294901760
      %v3078 = vsub.f32 %v2566, %v3077
      %v3079 = vand.u32 %v3078, 4294901760
      %3080 = vmatpush1.msra.mxu0 %v3079
      %3081 = vmatprep.subr.mxu0 0.0
      %v3082 = vand.u32 %v2567, 4294901760
      %v3083 = vsub.f32 %v2567, %v3082
      %v3084 = vand.u32 %v3083, 4294901760
      %3085 = vmatpush1.msra.mxu0 %v3084
      %3086 = vmatprep.subr.mxu0 0.0
      %v3087 = vand.u32 %v2568, 4294901760
      %v3088 = vsub.f32 %v2568, %v3087
      %v3089 = vand.u32 %v3088, 4294901760
      %3090 = vmatpush1.msra.mxu0 %v3089
      %3091 = vmatprep.subr.mxu0 0.0
      %3092 = vmatpush1.msra.mxu0 0.0
      %3093 = vmatprep.subr.mxu0 0.0
      %3094 = vmatpush1.msra.mxu0 0.0
      %3095 = vmatprep.subr.mxu0 0.0
      %3096 = vmatpush1.msra.mxu0 0.0
      %3097 = vmatprep.subr.mxu0 0.0
      %3098 = vmatpush1.msra.mxu0 0.0
      %3099 = vmatprep.subr.mxu0 0.0
      %3100 = vmatpush1.msra.mxu0 0.0
      %3101 = vmatprep.subr.mxu0 0.0
      %3102 = vmatpush1.msra.mxu0 0.0
      %3103 = vmatprep.subr.mxu0 0.0
      %3104 = vmatpush1.msra.mxu0 0.0
      %3105 = vmatprep.subr.mxu0 0.0
      %3106 = vmatpush1.msra.mxu0 0.0
      %3107 = vmatprep.subr.mxu0 0.0
      %3108 = vmatpush1.msra.mxu0 0.0
      %3109 = vmatprep.subr.mxu0 0.0
      %3110 = vmatpush1.msra.mxu0 0.0
      %3111 = vmatprep.subr.mxu0 0.0
      %3112 = vmatpush1.msra.mxu0 0.0
      %3113 = vmatprep.subr.mxu0 0.0
      %3114 = vmatpush1.msra.mxu0 0.0
      %3115 = vmatprep.subr.mxu0 0.0
      %3116 = vmatpush1.msra.mxu0 0.0
      %3117 = vmatprep.subr.mxu0 0.0
      %3118 = vmatpush1.msra.mxu0 0.0
      %3119 = vmatprep.subr.mxu0 0.0
      %3120 = vmatpush1.msra.mxu0 0.0
      %3121 = vmatprep.subr.mxu0 0.0
      %3122 = vmatpush1.msra.mxu0 0.0
      %3123 = vmatprep.mubr.f32.mxu0 0.0
      %v3124 = vand.u32 %v2552, 4294901760
      %3125 = vmatmul.mubr.f32.gmra.mrb[0].mxu0 %v3124
      %v3126 = vpop.f32.mrb[0].mxu0
      %v3127 = vadd.f32 %v3008, %v3126
      %v3128 = vpop.f32.mrb[0].mxu0
      %3129 = vdwg.mxu0
      %3130 = vmatprep.subr.mxu0 0.0
      %v3131 = vand.u32 %v2553, 4294901760
      %3132 = vmatpush1.msra.mxu0 %v3131
      %3133 = vmatprep.subr.mxu0 0.0
      %v3134 = vand.u32 %v2554, 4294901760
      %3135 = vmatpush1.msra.mxu0 %v3134
      %3136 = vmatprep.subr.mxu0 0.0
      %v3137 = vand.u32 %v2555, 4294901760
      %3138 = vmatpush1.msra.mxu0 %v3137
      %3139 = vmatprep.subr.mxu0 0.0
      %v3140 = vand.u32 %v2556, 4294901760
      %3141 = vmatpush1.msra.mxu0 %v3140
      %3142 = vmatprep.subr.mxu0 0.0
      %v3143 = vand.u32 %v2557, 4294901760
      %3144 = vmatpush1.msra.mxu0 %v3143
      %3145 = vmatprep.subr.mxu0 0.0
      %v3146 = vand.u32 %v2558, 4294901760
      %3147 = vmatpush1.msra.mxu0 %v3146
      %3148 = vmatprep.subr.mxu0 0.0
      %v3149 = vand.u32 %v2559, 4294901760
      %3150 = vmatpush1.msra.mxu0 %v3149
      %3151 = vmatprep.subr.mxu0 0.0
      %v3152 = vand.u32 %v2560, 4294901760
      %3153 = vmatpush1.msra.mxu0 %v3152
      %3154 = vmatprep.subr.mxu0 0.0
      %v3155 = vand.u32 %v2561, 4294901760
      %3156 = vmatpush1.msra.mxu0 %v3155
      %3157 = vmatprep.subr.mxu0 0.0
      %v3158 = vand.u32 %v2562, 4294901760
      %3159 = vmatpush1.msra.mxu0 %v3158
      %3160 = vmatprep.subr.mxu0 0.0
      %v3161 = vand.u32 %v2563, 4294901760
      %3162 = vmatpush1.msra.mxu0 %v3161
      %3163 = vmatprep.subr.mxu0 0.0
      %v3164 = vand.u32 %v2564, 4294901760
      %3165 = vmatpush1.msra.mxu0 %v3164
      %3166 = vmatprep.subr.mxu0 0.0
      %v3167 = vand.u32 %v2565, 4294901760
      %3168 = vmatpush1.msra.mxu0 %v3167
      %3169 = vmatprep.subr.mxu0 0.0
      %v3170 = vand.u32 %v2566, 4294901760
      %3171 = vmatpush1.msra.mxu0 %v3170
      %3172 = vmatprep.subr.mxu0 0.0
      %v3173 = vand.u32 %v2567, 4294901760
      %3174 = vmatpush1.msra.mxu0 %v3173
      %3175 = vmatprep.subr.mxu0 0.0
      %v3176 = vand.u32 %v2568, 4294901760
      %3177 = vmatpush1.msra.mxu0 %v3176
      %3178 = vmatprep.subr.mxu0 0.0
      %3179 = vmatpush1.msra.mxu0 0.0
      %3180 = vmatprep.subr.mxu0 0.0
      %3181 = vmatpush1.msra.mxu0 0.0
      %3182 = vmatprep.subr.mxu0 0.0
      %3183 = vmatpush1.msra.mxu0 0.0
      %3184 = vmatprep.subr.mxu0 0.0
      %3185 = vmatpush1.msra.mxu0 0.0
      %3186 = vmatprep.subr.mxu0 0.0
      %3187 = vmatpush1.msra.mxu0 0.0
      %3188 = vmatprep.subr.mxu0 0.0
      %3189 = vmatpush1.msra.mxu0 0.0
      %3190 = vmatprep.subr.mxu0 0.0
      %3191 = vmatpush1.msra.mxu0 0.0
      %3192 = vmatprep.subr.mxu0 0.0
      %3193 = vmatpush1.msra.mxu0 0.0
      %3194 = vmatprep.subr.mxu0 0.0
      %3195 = vmatpush1.msra.mxu0 0.0
      %3196 = vmatprep.subr.mxu0 0.0
      %3197 = vmatpush1.msra.mxu0 0.0
      %3198 = vmatprep.subr.mxu0 0.0
      %3199 = vmatpush1.msra.mxu0 0.0
      %3200 = vmatprep.subr.mxu0 0.0
      %3201 = vmatpush1.msra.mxu0 0.0
      %3202 = vmatprep.subr.mxu0 0.0
      %3203 = vmatpush1.msra.mxu0 0.0
      %3204 = vmatprep.subr.mxu0 0.0
      %3205 = vmatpush1.msra.mxu0 0.0
      %3206 = vmatprep.subr.mxu0 0.0
      %3207 = vmatpush1.msra.mxu0 0.0
      %3208 = vmatprep.subr.mxu0 0.0
      %3209 = vmatpush1.msra.mxu0 0.0
      %3210 = vmatprep.mubr.f32.mxu0 0.0
      %v3211 = vand.u32 %v2552, 4294901760
      %3212 = vmatmul.mubr.f32.gmra.mrb[0].mxu0 %v3211
      %v3213 = vpop.f32.mrb[0].mxu0
      %v3214 = vadd.f32 %v3127, %v3213
      %v3215 = vpop.f32.mrb[0].mxu0
      %3216 = vdwg.mxu0
      %v3217 = vmax.f32 %v3214, 0.0
      %v3218 = vld [vmem:[#allocation6] sm:$0xff]
      %v3219 = vld [vmem:[#allocation6 + $0x8] sm:$0xff]
      %v3220 = vld [vmem:[#allocation6 + $0x10] sm:$0xff]
      %v3221 = vld [vmem:[#allocation6 + $0x18] sm:$0xff]
      %v3222 = vld [vmem:[#allocation6 + $0x20] sm:$0xff]
      %v3223 = vld [vmem:[#allocation6 + $0x28] sm:$0xff]
      %v3224 = vld [vmem:[#allocation6 + $0x30] sm:$0xff]
      %v3225 = vld [vmem:[#allocation6 + $0x38] sm:$0xff]
      %v3226 = vld [vmem:[#allocation6 + $0x40] sm:$0xff]
      %v3227 = vld [vmem:[#allocation6 + $0x48] sm:$0xff]
      %v3228 = vld [vmem:[#allocation6 + $0x50] sm:$0xff]
      %v3229 = vld [vmem:[#allocation6 + $0x58] sm:$0xff]
      %v3230 = vld [vmem:[#allocation6 + $0x60] sm:$0xff]
      %v3231 = vld [vmem:[#allocation6 + $0x68] sm:$0xff]
      %v3232 = vld [vmem:[#allocation6 + $0x70] sm:$0xff]
      %v3233 = vld [vmem:[#allocation6 + $0x78] sm:$0xff]
      %v3234 = vld [vmem:[%s9] sm:$0x1]
      %v3236 = vlaneseq
      %v3237 = vshrl.u32 %v3236, 7
      %v3238 = vsub.s32 0, %v3237
      %v3239 = vrot.slane %v3234, %v3238
      %3241 = vmatprep.subr.mxu0 0.0
      %v3242 = vand.u32 %v3218, 4294901760
      %3243 = vmatpush1.msra.mxu0 %v3242
      %3244 = vmatprep.subr.mxu0 0.0
      %v3245 = vand.u32 %v3219, 4294901760
      %3246 = vmatpush1.msra.mxu0 %v3245
      %3247 = vmatprep.subr.mxu0 0.0
      %v3248 = vand.u32 %v3220, 4294901760
      %3249 = vmatpush1.msra.mxu0 %v3248
      %3250 = vmatprep.subr.mxu0 0.0
      %v3251 = vand.u32 %v3221, 4294901760
      %3252 = vmatpush1.msra.mxu0 %v3251
      %3253 = vmatprep.subr.mxu0 0.0
      %v3254 = vand.u32 %v3222, 4294901760
      %3255 = vmatpush1.msra.mxu0 %v3254
      %3256 = vmatprep.subr.mxu0 0.0
      %v3257 = vand.u32 %v3223, 4294901760
      %3258 = vmatpush1.msra.mxu0 %v3257
      %3259 = vmatprep.subr.mxu0 0.0
      %v3260 = vand.u32 %v3224, 4294901760
      %3261 = vmatpush1.msra.mxu0 %v3260
      %3262 = vmatprep.subr.mxu0 0.0
      %v3263 = vand.u32 %v3225, 4294901760
      %3264 = vmatpush1.msra.mxu0 %v3263
      %3265 = vmatprep.subr.mxu0 0.0
      %v3266 = vand.u32 %v3226, 4294901760
      %3267 = vmatpush1.msra.mxu0 %v3266
      %3268 = vmatprep.subr.mxu0 0.0
      %v3269 = vand.u32 %v3227, 4294901760
      %3270 = vmatpush1.msra.mxu0 %v3269
      %3271 = vmatprep.subr.mxu0 0.0
      %v3272 = vand.u32 %v3228, 4294901760
      %3273 = vmatpush1.msra.mxu0 %v3272
      %3274 = vmatprep.subr.mxu0 0.0
      %v3275 = vand.u32 %v3229, 4294901760
      %3276 = vmatpush1.msra.mxu0 %v3275
      %3277 = vmatprep.subr.mxu0 0.0
      %v3278 = vand.u32 %v3230, 4294901760
      %3279 = vmatpush1.msra.mxu0 %v3278
      %3280 = vmatprep.subr.mxu0 0.0
      %v3281 = vand.u32 %v3231, 4294901760
      %3282 = vmatpush1.msra.mxu0 %v3281
      %3283 = vmatprep.subr.mxu0 0.0
      %v3284 = vand.u32 %v3232, 4294901760
      %3285 = vmatpush1.msra.mxu0 %v3284
      %3286 = vmatprep.subr.mxu0 0.0
      %v3287 = vand.u32 %v3233, 4294901760
      %3288 = vmatpush1.msra.mxu0 %v3287
      %3289 = vmatprep.subr.mxu0 0.0
      %3290 = vmatpush1.msra.mxu0 0.0
      %3291 = vmatprep.subr.mxu0 0.0
      %3292 = vmatpush1.msra.mxu0 0.0
      %3293 = vmatprep.subr.mxu0 0.0
      %3294 = vmatpush1.msra.mxu0 0.0
      %3295 = vmatprep.subr.mxu0 0.0
      %3296 = vmatpush1.msra.mxu0 0.0
      %3297 = vmatprep.subr.mxu0 0.0
      %3298 = vmatpush1.msra.mxu0 0.0
      %3299 = vmatprep.subr.mxu0 0.0
      %3300 = vmatpush1.msra.mxu0 0.0
      %3301 = vmatprep.subr.mxu0 0.0
      %3302 = vmatpush1.msra.mxu0 0.0
      %3303 = vmatprep.subr.mxu0 0.0
      %3304 = vmatpush1.msra.mxu0 0.0
      %3305 = vmatprep.subr.mxu0 0.0
      %3306 = vmatpush1.msra.mxu0 0.0
      %3307 = vmatprep.subr.mxu0 0.0
      %3308 = vmatpush1.msra.mxu0 0.0
      %3309 = vmatprep.subr.mxu0 0.0
      %3310 = vmatpush1.msra.mxu0 0.0
      %3311 = vmatprep.subr.mxu0 0.0
      %3312 = vmatpush1.msra.mxu0 0.0
      %3313 = vmatprep.subr.mxu0 0.0
      %3314 = vmatpush1.msra.mxu0 0.0
      %3315 = vmatprep.subr.mxu0 0.0
      %3316 = vmatpush1.msra.mxu0 0.0
      %3317 = vmatprep.subr.mxu0 0.0
      %3318 = vmatpush1.msra.mxu0 0.0
      %3319 = vmatprep.subr.mxu0 0.0
      %3320 = vmatpush1.msra.mxu0 0.0
      %3321 = vmatprep.mubr.f32.mxu0 0.0
      %v3322 = vand.u32 %v3217, 4294901760
      %v3323 = vsub.f32 %v3217, %v3322
      %v3324 = vand.u32 %v3323, 4294901760
      %v3325 = vsub.f32 %v3323, %v3324
      %v3326 = vand.u32 %v3325, 4294901760
      %3327 = vmatmul.mubr.f32.gmra.mrb[0].mxu0 %v3326
      %v3328 = vpop.f32.mrb[0].mxu0
      %v3329 = vadd.f32 %v3239, %v3328
      %v3330 = vpop.f32.mrb[0].mxu0
      %3331 = vdwg.mxu0
      %3332 = vmatprep.subr.mxu0 0.0
      %v3333 = vand.u32 %v3218, 4294901760
      %v3334 = vsub.f32 %v3218, %v3333
      %v3335 = vand.u32 %v3334, 4294901760
      %v3336 = vsub.f32 %v3334, %v3335
      %v3337 = vand.u32 %v3336, 4294901760
      %3338 = vmatpush1.msra.mxu0 %v3337
      %3339 = vmatprep.subr.mxu0 0.0
      %v3340 = vand.u32 %v3219, 4294901760
      %v3341 = vsub.f32 %v3219, %v3340
      %v3342 = vand.u32 %v3341, 4294901760
      %v3343 = vsub.f32 %v3341, %v3342
      %v3344 = vand.u32 %v3343, 4294901760
      %3345 = vmatpush1.msra.mxu0 %v3344
      %3346 = vmatprep.subr.mxu0 0.0
      %v3347 = vand.u32 %v3220, 4294901760
      %v3348 = vsub.f32 %v3220, %v3347
      %v3349 = vand.u32 %v3348, 4294901760
      %v3350 = vsub.f32 %v3348, %v3349
      %v3351 = vand.u32 %v3350, 4294901760
      %3352 = vmatpush1.msra.mxu0 %v3351
      %3353 = vmatprep.subr.mxu0 0.0
      %v3354 = vand.u32 %v3221, 4294901760
      %v3355 = vsub.f32 %v3221, %v3354
      %v3356 = vand.u32 %v3355, 4294901760
      %v3357 = vsub.f32 %v3355, %v3356
      %v3358 = vand.u32 %v3357, 4294901760
      %3359 = vmatpush1.msra.mxu0 %v3358
      %3360 = vmatprep.subr.mxu0 0.0
      %v3361 = vand.u32 %v3222, 4294901760
      %v3362 = vsub.f32 %v3222, %v3361
      %v3363 = vand.u32 %v3362, 4294901760
      %v3364 = vsub.f32 %v3362, %v3363
      %v3365 = vand.u32 %v3364, 4294901760
      %3366 = vmatpush1.msra.mxu0 %v3365
      %3367 = vmatprep.subr.mxu0 0.0
      %v3368 = vand.u32 %v3223, 4294901760
      %v3369 = vsub.f32 %v3223, %v3368
      %v3370 = vand.u32 %v3369, 4294901760
      %v3371 = vsub.f32 %v3369, %v3370
      %v3372 = vand.u32 %v3371, 4294901760
      %3373 = vmatpush1.msra.mxu0 %v3372
      %3374 = vmatprep.subr.mxu0 0.0
      %v3375 = vand.u32 %v3224, 4294901760
      %v3376 = vsub.f32 %v3224, %v3375
      %v3377 = vand.u32 %v3376, 4294901760
      %v3378 = vsub.f32 %v3376, %v3377
      %v3379 = vand.u32 %v3378, 4294901760
      %3380 = vmatpush1.msra.mxu0 %v3379
      %3381 = vmatprep.subr.mxu0 0.0
      %v3382 = vand.u32 %v3225, 4294901760
      %v3383 = vsub.f32 %v3225, %v3382
      %v3384 = vand.u32 %v3383, 4294901760
      %v3385 = vsub.f32 %v3383, %v3384
      %v3386 = vand.u32 %v3385, 4294901760
      %3387 = vmatpush1.msra.mxu0 %v3386
      %3388 = vmatprep.subr.mxu0 0.0
      %v3389 = vand.u32 %v3226, 4294901760
      %v3390 = vsub.f32 %v3226, %v3389
      %v3391 = vand.u32 %v3390, 4294901760
      %v3392 = vsub.f32 %v3390, %v3391
      %v3393 = vand.u32 %v3392, 4294901760
      %3394 = vmatpush1.msra.mxu0 %v3393
      %3395 = vmatprep.subr.mxu0 0.0
      %v3396 = vand.u32 %v3227, 4294901760
      %v3397 = vsub.f32 %v3227, %v3396
      %v3398 = vand.u32 %v3397, 4294901760
      %v3399 = vsub.f32 %v3397, %v3398
      %v3400 = vand.u32 %v3399, 4294901760
      %3401 = vmatpush1.msra.mxu0 %v3400
      %3402 = vmatprep.subr.mxu0 0.0
      %v3403 = vand.u32 %v3228, 4294901760
      %v3404 = vsub.f32 %v3228, %v3403
      %v3405 = vand.u32 %v3404, 4294901760
      %v3406 = vsub.f32 %v3404, %v3405
      %v3407 = vand.u32 %v3406, 4294901760
      %3408 = vmatpush1.msra.mxu0 %v3407
      %3409 = vmatprep.subr.mxu0 0.0
      %v3410 = vand.u32 %v3229, 4294901760
      %v3411 = vsub.f32 %v3229, %v3410
      %v3412 = vand.u32 %v3411, 4294901760
      %v3413 = vsub.f32 %v3411, %v3412
      %v3414 = vand.u32 %v3413, 4294901760
      %3415 = vmatpush1.msra.mxu0 %v3414
      %3416 = vmatprep.subr.mxu0 0.0
      %v3417 = vand.u32 %v3230, 4294901760
      %v3418 = vsub.f32 %v3230, %v3417
      %v3419 = vand.u32 %v3418, 4294901760
      %v3420 = vsub.f32 %v3418, %v3419
      %v3421 = vand.u32 %v3420, 4294901760
      %3422 = vmatpush1.msra.mxu0 %v3421
      %3423 = vmatprep.subr.mxu0 0.0
      %v3424 = vand.u32 %v3231, 4294901760
      %v3425 = vsub.f32 %v3231, %v3424
      %v3426 = vand.u32 %v3425, 4294901760
      %v3427 = vsub.f32 %v3425, %v3426
      %v3428 = vand.u32 %v3427, 4294901760
      %3429 = vmatpush1.msra.mxu0 %v3428
      %3430 = vmatprep.subr.mxu0 0.0
      %v3431 = vand.u32 %v3232, 4294901760
      %v3432 = vsub.f32 %v3232, %v3431
      %v3433 = vand.u32 %v3432, 4294901760
      %v3434 = vsub.f32 %v3432, %v3433
      %v3435 = vand.u32 %v3434, 4294901760
      %3436 = vmatpush1.msra.mxu0 %v3435
      %3437 = vmatprep.subr.mxu0 0.0
      %v3438 = vand.u32 %v3233, 4294901760
      %v3439 = vsub.f32 %v3233, %v3438
      %v3440 = vand.u32 %v3439, 4294901760
      %v3441 = vsub.f32 %v3439, %v3440
      %v3442 = vand.u32 %v3441, 4294901760
      %3443 = vmatpush1.msra.mxu0 %v3442
      %3444 = vmatprep.subr.mxu0 0.0
      %3445 = vmatpush1.msra.mxu0 0.0
      %3446 = vmatprep.subr.mxu0 0.0
      %3447 = vmatpush1.msra.mxu0 0.0
      %3448 = vmatprep.subr.mxu0 0.0
      %3449 = vmatpush1.msra.mxu0 0.0
      %3450 = vmatprep.subr.mxu0 0.0
      %3451 = vmatpush1.msra.mxu0 0.0
      %3452 = vmatprep.subr.mxu0 0.0
      %3453 = vmatpush1.msra.mxu0 0.0
      %3454 = vmatprep.subr.mxu0 0.0
      %3455 = vmatpush1.msra.mxu0 0.0
      %3456 = vmatprep.subr.mxu0 0.0
      %3457 = vmatpush1.msra.mxu0 0.0
      %3458 = vmatprep.subr.mxu0 0.0
      %3459 = vmatpush1.msra.mxu0 0.0
      %3460 = vmatprep.subr.mxu0 0.0
      %3461 = vmatpush1.msra.mxu0 0.0
      %3462 = vmatprep.subr.mxu0 0.0
      %3463 = vmatpush1.msra.mxu0 0.0
      %3464 = vmatprep.subr.mxu0 0.0
      %3465 = vmatpush1.msra.mxu0 0.0
      %3466 = vmatprep.subr.mxu0 0.0
      %3467 = vmatpush1.msra.mxu0 0.0
      %3468 = vmatprep.subr.mxu0 0.0
      %3469 = vmatpush1.msra.mxu0 0.0
      %3470 = vmatprep.subr.mxu0 0.0
      %3471 = vmatpush1.msra.mxu0 0.0
      %3472 = vmatprep.subr.mxu0 0.0
      %3473 = vmatpush1.msra.mxu0 0.0
      %3474 = vmatprep.subr.mxu0 0.0
      %3475 = vmatpush1.msra.mxu0 0.0
      %3476 = vmatprep.mubr.f32.mxu0 0.0
      %v3477 = vand.u32 %v3217, 4294901760
      %3478 = vmatmul.mubr.f32.gmra.mrb[0].mxu0 %v3477
      %v3479 = vpop.f32.mrb[0].mxu0
      %v3480 = vadd.f32 %v3329, %v3479
      %v3481 = vpop.f32.mrb[0].mxu0
      %3482 = vdwg.mxu0
      %3483 = vmatprep.subr.mxu0 0.0
      %v3484 = vand.u32 %v3218, 4294901760
      %v3485 = vsub.f32 %v3218, %v3484
      %3486 = vmatpush1.msra.mxu0 %v3485
      %3487 = vmatprep.subr.mxu0 0.0
      %v3488 = vand.u32 %v3219, 4294901760
      %v3489 = vsub.f32 %v3219, %v3488
      %3490 = vmatpush1.msra.mxu0 %v3489
      %3491 = vmatprep.subr.mxu0 0.0
      %v3492 = vand.u32 %v3220, 4294901760
      %v3493 = vsub.f32 %v3220, %v3492
      %3494 = vmatpush1.msra.mxu0 %v3493
      %3495 = vmatprep.subr.mxu0 0.0
      %v3496 = vand.u32 %v3221, 4294901760
      %v3497 = vsub.f32 %v3221, %v3496
      %3498 = vmatpush1.msra.mxu0 %v3497
      %3499 = vmatprep.subr.mxu0 0.0
      %v3500 = vand.u32 %v3222, 4294901760
      %v3501 = vsub.f32 %v3222, %v3500
      %3502 = vmatpush1.msra.mxu0 %v3501
      %3503 = vmatprep.subr.mxu0 0.0
      %v3504 = vand.u32 %v3223, 4294901760
      %v3505 = vsub.f32 %v3223, %v3504
      %3506 = vmatpush1.msra.mxu0 %v3505
      %3507 = vmatprep.subr.mxu0 0.0
      %v3508 = vand.u32 %v3224, 4294901760
      %v3509 = vsub.f32 %v3224, %v3508
      %3510 = vmatpush1.msra.mxu0 %v3509
      %3511 = vmatprep.subr.mxu0 0.0
      %v3512 = vand.u32 %v3225, 4294901760
      %v3513 = vsub.f32 %v3225, %v3512
      %3514 = vmatpush1.msra.mxu0 %v3513
      %3515 = vmatprep.subr.mxu0 0.0
      %v3516 = vand.u32 %v3226, 4294901760
      %v3517 = vsub.f32 %v3226, %v3516
      %3518 = vmatpush1.msra.mxu0 %v3517
      %3519 = vmatprep.subr.mxu0 0.0
      %v3520 = vand.u32 %v3227, 4294901760
      %v3521 = vsub.f32 %v3227, %v3520
      %3522 = vmatpush1.msra.mxu0 %v3521
      %3523 = vmatprep.subr.mxu0 0.0
      %v3524 = vand.u32 %v3228, 4294901760
      %v3525 = vsub.f32 %v3228, %v3524
      %3526 = vmatpush1.msra.mxu0 %v3525
      %3527 = vmatprep.subr.mxu0 0.0
      %v3528 = vand.u32 %v3229, 4294901760
      %v3529 = vsub.f32 %v3229, %v3528
      %3530 = vmatpush1.msra.mxu0 %v3529
      %3531 = vmatprep.subr.mxu0 0.0
      %v3532 = vand.u32 %v3230, 4294901760
      %v3533 = vsub.f32 %v3230, %v3532
      %3534 = vmatpush1.msra.mxu0 %v3533
      %3535 = vmatprep.subr.mxu0 0.0
      %v3536 = vand.u32 %v3231, 4294901760
      %v3537 = vsub.f32 %v3231, %v3536
      %3538 = vmatpush1.msra.mxu0 %v3537
      %3539 = vmatprep.subr.mxu0 0.0
      %v3540 = vand.u32 %v3232, 4294901760
      %v3541 = vsub.f32 %v3232, %v3540
      %3542 = vmatpush1.msra.mxu0 %v3541
      %3543 = vmatprep.subr.mxu0 0.0
      %v3544 = vand.u32 %v3233, 4294901760
      %v3545 = vsub.f32 %v3233, %v3544
      %3546 = vmatpush1.msra.mxu0 %v3545
      %3547 = vmatprep.subr.mxu0 0.0
      %3548 = vmatpush1.msra.mxu0 0.0
      %3549 = vmatprep.subr.mxu0 0.0
      %3550 = vmatpush1.msra.mxu0 0.0
      %3551 = vmatprep.subr.mxu0 0.0
      %3552 = vmatpush1.msra.mxu0 0.0
      %3553 = vmatprep.subr.mxu0 0.0
      %3554 = vmatpush1.msra.mxu0 0.0
      %3555 = vmatprep.subr.mxu0 0.0
      %3556 = vmatpush1.msra.mxu0 0.0
      %3557 = vmatprep.subr.mxu0 0.0
      %3558 = vmatpush1.msra.mxu0 0.0
      %3559 = vmatprep.subr.mxu0 0.0
      %3560 = vmatpush1.msra.mxu0 0.0
      %3561 = vmatprep.subr.mxu0 0.0
      %3562 = vmatpush1.msra.mxu0 0.0
      %3563 = vmatprep.subr.mxu0 0.0
      %3564 = vmatpush1.msra.mxu0 0.0
      %3565 = vmatprep.subr.mxu0 0.0
      %3566 = vmatpush1.msra.mxu0 0.0
      %3567 = vmatprep.subr.mxu0 0.0
      %3568 = vmatpush1.msra.mxu0 0.0
      %3569 = vmatprep.subr.mxu0 0.0
      %3570 = vmatpush1.msra.mxu0 0.0
      %3571 = vmatprep.subr.mxu0 0.0
      %3572 = vmatpush1.msra.mxu0 0.0
      %3573 = vmatprep.subr.mxu0 0.0
      %3574 = vmatpush1.msra.mxu0 0.0
      %3575 = vmatprep.subr.mxu0 0.0
      %3576 = vmatpush1.msra.mxu0 0.0
      %3577 = vmatprep.subr.mxu0 0.0
      %3578 = vmatpush1.msra.mxu0 0.0
      %3579 = vmatprep.mubr.f32.mxu0 0.0
      %v3580 = vand.u32 %v3217, 4294901760
      %v3581 = vsub.f32 %v3217, %v3580
      %3582 = vmatmul.mubr.f32.gmra.mrb[0].mxu0 %v3581
      %v3583 = vpop.f32.mrb[0].mxu0
      %v3584 = vadd.f32 %v3480, %v3583
      %v3585 = vpop.f32.mrb[0].mxu0
      %3586 = vdwg.mxu0
      %3587 = vmatprep.subr.mxu0 0.0
      %v3588 = vand.u32 %v3218, 4294901760
      %3589 = vmatpush1.msra.mxu0 %v3588
      %3590 = vmatprep.subr.mxu0 0.0
      %v3591 = vand.u32 %v3219, 4294901760
      %3592 = vmatpush1.msra.mxu0 %v3591
      %3593 = vmatprep.subr.mxu0 0.0
      %v3594 = vand.u32 %v3220, 4294901760
      %3595 = vmatpush1.msra.mxu0 %v3594
      %3596 = vmatprep.subr.mxu0 0.0
      %v3597 = vand.u32 %v3221, 4294901760
      %3598 = vmatpush1.msra.mxu0 %v3597
      %3599 = vmatprep.subr.mxu0 0.0
      %v3600 = vand.u32 %v3222, 4294901760
      %3601 = vmatpush1.msra.mxu0 %v3600
      %3602 = vmatprep.subr.mxu0 0.0
      %v3603 = vand.u32 %v3223, 4294901760
      %3604 = vmatpush1.msra.mxu0 %v3603
      %3605 = vmatprep.subr.mxu0 0.0
      %v3606 = vand.u32 %v3224, 4294901760
      %3607 = vmatpush1.msra.mxu0 %v3606
      %3608 = vmatprep.subr.mxu0 0.0
      %v3609 = vand.u32 %v3225, 4294901760
      %3610 = vmatpush1.msra.mxu0 %v3609
      %3611 = vmatprep.subr.mxu0 0.0
      %v3612 = vand.u32 %v3226, 4294901760
      %3613 = vmatpush1.msra.mxu0 %v3612
      %3614 = vmatprep.subr.mxu0 0.0
      %v3615 = vand.u32 %v3227, 4294901760
      %3616 = vmatpush1.msra.mxu0 %v3615
      %3617 = vmatprep.subr.mxu0 0.0
      %v3618 = vand.u32 %v3228, 4294901760
      %3619 = vmatpush1.msra.mxu0 %v3618
      %3620 = vmatprep.subr.mxu0 0.0
      %v3621 = vand.u32 %v3229, 4294901760
      %3622 = vmatpush1.msra.mxu0 %v3621
      %3623 = vmatprep.subr.mxu0 0.0
      %v3624 = vand.u32 %v3230, 4294901760
      %3625 = vmatpush1.msra.mxu0 %v3624
      %3626 = vmatprep.subr.mxu0 0.0
      %v3627 = vand.u32 %v3231, 4294901760
      %3628 = vmatpush1.msra.mxu0 %v3627
      %3629 = vmatprep.subr.mxu0 0.0
      %v3630 = vand.u32 %v3232, 4294901760
      %3631 = vmatpush1.msra.mxu0 %v3630
      %3632 = vmatprep.subr.mxu0 0.0
      %v3633 = vand.u32 %v3233, 4294901760
      %3634 = vmatpush1.msra.mxu0 %v3633
      %3635 = vmatprep.subr.mxu0 0.0
      %3636 = vmatpush1.msra.mxu0 0.0
      %3637 = vmatprep.subr.mxu0 0.0
      %3638 = vmatpush1.msra.mxu0 0.0
      %3639 = vmatprep.subr.mxu0 0.0
      %3640 = vmatpush1.msra.mxu0 0.0
      %3641 = vmatprep.subr.mxu0 0.0
      %3642 = vmatpush1.msra.mxu0 0.0
      %3643 = vmatprep.subr.mxu0 0.0
      %3644 = vmatpush1.msra.mxu0 0.0
      %3645 = vmatprep.subr.mxu0 0.0
      %3646 = vmatpush1.msra.mxu0 0.0
      %3647 = vmatprep.subr.mxu0 0.0
      %3648 = vmatpush1.msra.mxu0 0.0
      %3649 = vmatprep.subr.mxu0 0.0
      %3650 = vmatpush1.msra.mxu0 0.0
      %3651 = vmatprep.subr.mxu0 0.0
      %3652 = vmatpush1.msra.mxu0 0.0
      %3653 = vmatprep.subr.mxu0 0.0
      %3654 = vmatpush1.msra.mxu0 0.0
      %3655 = vmatprep.subr.mxu0 0.0
      %3656 = vmatpush1.msra.mxu0 0.0
      %3657 = vmatprep.subr.mxu0 0.0
      %3658 = vmatpush1.msra.mxu0 0.0
      %3659 = vmatprep.subr.mxu0 0.0
      %3660 = vmatpush1.msra.mxu0 0.0
      %3661 = vmatprep.subr.mxu0 0.0
      %3662 = vmatpush1.msra.mxu0 0.0
      %3663 = vmatprep.subr.mxu0 0.0
      %3664 = vmatpush1.msra.mxu0 0.0
      %3665 = vmatprep.subr.mxu0 0.0
      %3666 = vmatpush1.msra.mxu0 0.0
      %3667 = vmatprep.mubr.f32.mxu0 0.0
      %v3668 = vand.u32 %v3217, 4294901760
      %v3669 = vsub.f32 %v3217, %v3668
      %v3670 = vand.u32 %v3669, 4294901760
      %3671 = vmatmul.mubr.f32.gmra.mrb[0].mxu0 %v3670
      %v3672 = vpop.f32.mrb[0].mxu0
      %v3673 = vadd.f32 %v3584, %v3672
      %v3674 = vpop.f32.mrb[0].mxu0
      %3675 = vdwg.mxu0
      %3676 = vmatprep.subr.mxu0 0.0
      %v3677 = vand.u32 %v3218, 4294901760
      %v3678 = vsub.f32 %v3218, %v3677
      %v3679 = vand.u32 %v3678, 4294901760
      %3680 = vmatpush1.msra.mxu0 %v3679
      %3681 = vmatprep.subr.mxu0 0.0
      %v3682 = vand.u32 %v3219, 4294901760
      %v3683 = vsub.f32 %v3219, %v3682
      %v3684 = vand.u32 %v3683, 4294901760
      %3685 = vmatpush1.msra.mxu0 %v3684
      %3686 = vmatprep.subr.mxu0 0.0
      %v3687 = vand.u32 %v3220, 4294901760
      %v3688 = vsub.f32 %v3220, %v3687
      %v3689 = vand.u32 %v3688, 4294901760
      %3690 = vmatpush1.msra.mxu0 %v3689
      %3691 = vmatprep.subr.mxu0 0.0
      %v3692 = vand.u32 %v3221, 4294901760
      %v3693 = vsub.f32 %v3221, %v3692
      %v3694 = vand.u32 %v3693, 4294901760
      %3695 = vmatpush1.msra.mxu0 %v3694
      %3696 = vmatprep.subr.mxu0 0.0
      %v3697 = vand.u32 %v3222, 4294901760
      %v3698 = vsub.f32 %v3222, %v3697
      %v3699 = vand.u32 %v3698, 4294901760
      %3700 = vmatpush1.msra.mxu0 %v3699
      %3701 = vmatprep.subr.mxu0 0.0
      %v3702 = vand.u32 %v3223, 4294901760
      %v3703 = vsub.f32 %v3223, %v3702
      %v3704 = vand.u32 %v3703, 4294901760
      %3705 = vmatpush1.msra.mxu0 %v3704
      %3706 = vmatprep.subr.mxu0 0.0
      %v3707 = vand.u32 %v3224, 4294901760
      %v3708 = vsub.f32 %v3224, %v3707
      %v3709 = vand.u32 %v3708, 4294901760
      %3710 = vmatpush1.msra.mxu0 %v3709
      %3711 = vmatprep.subr.mxu0 0.0
      %v3712 = vand.u32 %v3225, 4294901760
      %v3713 = vsub.f32 %v3225, %v3712
      %v3714 = vand.u32 %v3713, 4294901760
      %3715 = vmatpush1.msra.mxu0 %v3714
      %3716 = vmatprep.subr.mxu0 0.0
      %v3717 = vand.u32 %v3226, 4294901760
      %v3718 = vsub.f32 %v3226, %v3717
      %v3719 = vand.u32 %v3718, 4294901760
      %3720 = vmatpush1.msra.mxu0 %v3719
      %3721 = vmatprep.subr.mxu0 0.0
      %v3722 = vand.u32 %v3227, 4294901760
      %v3723 = vsub.f32 %v3227, %v3722
      %v3724 = vand.u32 %v3723, 4294901760
      %3725 = vmatpush1.msra.mxu0 %v3724
      %3726 = vmatprep.subr.mxu0 0.0
      %v3727 = vand.u32 %v3228, 4294901760
      %v3728 = vsub.f32 %v3228, %v3727
      %v3729 = vand.u32 %v3728, 4294901760
      %3730 = vmatpush1.msra.mxu0 %v3729
      %3731 = vmatprep.subr.mxu0 0.0
      %v3732 = vand.u32 %v3229, 4294901760
      %v3733 = vsub.f32 %v3229, %v3732
      %v3734 = vand.u32 %v3733, 4294901760
      %3735 = vmatpush1.msra.mxu0 %v3734
      %3736 = vmatprep.subr.mxu0 0.0
      %v3737 = vand.u32 %v3230, 4294901760
      %v3738 = vsub.f32 %v3230, %v3737
      %v3739 = vand.u32 %v3738, 4294901760
      %3740 = vmatpush1.msra.mxu0 %v3739
      %3741 = vmatprep.subr.mxu0 0.0
      %v3742 = vand.u32 %v3231, 4294901760
      %v3743 = vsub.f32 %v3231, %v3742
      %v3744 = vand.u32 %v3743, 4294901760
      %3745 = vmatpush1.msra.mxu0 %v3744
      %3746 = vmatprep.subr.mxu0 0.0
      %v3747 = vand.u32 %v3232, 4294901760
      %v3748 = vsub.f32 %v3232, %v3747
      %v3749 = vand.u32 %v3748, 4294901760
      %3750 = vmatpush1.msra.mxu0 %v3749
      %3751 = vmatprep.subr.mxu0 0.0
      %v3752 = vand.u32 %v3233, 4294901760
      %v3753 = vsub.f32 %v3233, %v3752
      %v3754 = vand.u32 %v3753, 4294901760
      %3755 = vmatpush1.msra.mxu0 %v3754
      %3756 = vmatprep.subr.mxu0 0.0
      %3757 = vmatpush1.msra.mxu0 0.0
      %3758 = vmatprep.subr.mxu0 0.0
      %3759 = vmatpush1.msra.mxu0 0.0
      %3760 = vmatprep.subr.mxu0 0.0
      %3761 = vmatpush1.msra.mxu0 0.0
      %3762 = vmatprep.subr.mxu0 0.0
      %3763 = vmatpush1.msra.mxu0 0.0
      %3764 = vmatprep.subr.mxu0 0.0
      %3765 = vmatpush1.msra.mxu0 0.0
      %3766 = vmatprep.subr.mxu0 0.0
      %3767 = vmatpush1.msra.mxu0 0.0
      %3768 = vmatprep.subr.mxu0 0.0
      %3769 = vmatpush1.msra.mxu0 0.0
      %3770 = vmatprep.subr.mxu0 0.0
      %3771 = vmatpush1.msra.mxu0 0.0
      %3772 = vmatprep.subr.mxu0 0.0
      %3773 = vmatpush1.msra.mxu0 0.0
      %3774 = vmatprep.subr.mxu0 0.0
      %3775 = vmatpush1.msra.mxu0 0.0
      %3776 = vmatprep.subr.mxu0 0.0
      %3777 = vmatpush1.msra.mxu0 0.0
      %3778 = vmatprep.subr.mxu0 0.0
      %3779 = vmatpush1.msra.mxu0 0.0
      %3780 = vmatprep.subr.mxu0 0.0
      %3781 = vmatpush1.msra.mxu0 0.0
      %3782 = vmatprep.subr.mxu0 0.0
      %3783 = vmatpush1.msra.mxu0 0.0
      %3784 = vmatprep.subr.mxu0 0.0
      %3785 = vmatpush1.msra.mxu0 0.0
      %3786 = vmatprep.subr.mxu0 0.0
      %3787 = vmatpush1.msra.mxu0 0.0
      %3788 = vmatprep.mubr.f32.mxu0 0.0
      %v3789 = vand.u32 %v3217, 4294901760
      %3790 = vmatmul.mubr.f32.gmra.mrb[0].mxu0 %v3789
      %v3791 = vpop.f32.mrb[0].mxu0
      %v3792 = vadd.f32 %v3673, %v3791
      %v3793 = vpop.f32.mrb[0].mxu0
      %3794 = vdwg.mxu0
      %3795 = vmatprep.subr.mxu0 0.0
      %v3796 = vand.u32 %v3218, 4294901760
      %3797 = vmatpush1.msra.mxu0 %v3796
      %3798 = vmatprep.subr.mxu0 0.0
      %v3799 = vand.u32 %v3219, 4294901760
      %3800 = vmatpush1.msra.mxu0 %v3799
      %3801 = vmatprep.subr.mxu0 0.0
      %v3802 = vand.u32 %v3220, 4294901760
      %3803 = vmatpush1.msra.mxu0 %v3802
      %3804 = vmatprep.subr.mxu0 0.0
      %v3805 = vand.u32 %v3221, 4294901760
      %3806 = vmatpush1.msra.mxu0 %v3805
      %3807 = vmatprep.subr.mxu0 0.0
      %v3808 = vand.u32 %v3222, 4294901760
      %3809 = vmatpush1.msra.mxu0 %v3808
      %3810 = vmatprep.subr.mxu0 0.0
      %v3811 = vand.u32 %v3223, 4294901760
      %3812 = vmatpush1.msra.mxu0 %v3811
      %3813 = vmatprep.subr.mxu0 0.0
      %v3814 = vand.u32 %v3224, 4294901760
      %3815 = vmatpush1.msra.mxu0 %v3814
      %3816 = vmatprep.subr.mxu0 0.0
      %v3817 = vand.u32 %v3225, 4294901760
      %3818 = vmatpush1.msra.mxu0 %v3817
      %3819 = vmatprep.subr.mxu0 0.0
      %v3820 = vand.u32 %v3226, 4294901760
      %3821 = vmatpush1.msra.mxu0 %v3820
      %3822 = vmatprep.subr.mxu0 0.0
      %v3823 = vand.u32 %v3227, 4294901760
      %3824 = vmatpush1.msra.mxu0 %v3823
      %3825 = vmatprep.subr.mxu0 0.0
      %v3826 = vand.u32 %v3228, 4294901760
      %3827 = vmatpush1.msra.mxu0 %v3826
      %3828 = vmatprep.subr.mxu0 0.0
      %v3829 = vand.u32 %v3229, 4294901760
      %3830 = vmatpush1.msra.mxu0 %v3829
      %3831 = vmatprep.subr.mxu0 0.0
      %v3832 = vand.u32 %v3230, 4294901760
      %3833 = vmatpush1.msra.mxu0 %v3832
      %3834 = vmatprep.subr.mxu0 0.0
      %v3835 = vand.u32 %v3231, 4294901760
      %3836 = vmatpush1.msra.mxu0 %v3835
      %3837 = vmatprep.subr.mxu0 0.0
      %v3838 = vand.u32 %v3232, 4294901760
      %3839 = vmatpush1.msra.mxu0 %v3838
      %3840 = vmatprep.subr.mxu0 0.0
      %v3841 = vand.u32 %v3233, 4294901760
      %3842 = vmatpush1.msra.mxu0 %v3841
      %3843 = vmatprep.subr.mxu0 0.0
      %3844 = vmatpush1.msra.mxu0 0.0
      %3845 = vmatprep.subr.mxu0 0.0
      %3846 = vmatpush1.msra.mxu0 0.0
      %3847 = vmatprep.subr.mxu0 0.0
      %3848 = vmatpush1.msra.mxu0 0.0
      %3849 = vmatprep.subr.mxu0 0.0
      %3850 = vmatpush1.msra.mxu0 0.0
      %3851 = vmatprep.subr.mxu0 0.0
      %3852 = vmatpush1.msra.mxu0 0.0
      %3853 = vmatprep.subr.mxu0 0.0
      %3854 = vmatpush1.msra.mxu0 0.0
      %3855 = vmatprep.subr.mxu0 0.0
      %3856 = vmatpush1.msra.mxu0 0.0
      %3857 = vmatprep.subr.mxu0 0.0
      %3858 = vmatpush1.msra.mxu0 0.0
      %3859 = vmatprep.subr.mxu0 0.0
      %3860 = vmatpush1.msra.mxu0 0.0
      %3861 = vmatprep.subr.mxu0 0.0
      %3862 = vmatpush1.msra.mxu0 0.0
      %3863 = vmatprep.subr.mxu0 0.0
      %3864 = vmatpush1.msra.mxu0 0.0
      %3865 = vmatprep.subr.mxu0 0.0
      %3866 = vmatpush1.msra.mxu0 0.0
      %3867 = vmatprep.subr.mxu0 0.0
      %3868 = vmatpush1.msra.mxu0 0.0
      %3869 = vmatprep.subr.mxu0 0.0
      %3870 = vmatpush1.msra.mxu0 0.0
      %3871 = vmatprep.subr.mxu0 0.0
      %3872 = vmatpush1.msra.mxu0 0.0
      %3873 = vmatprep.subr.mxu0 0.0
      %3874 = vmatpush1.msra.mxu0 0.0
      %3875 = vmatprep.mubr.f32.mxu0 0.0
      %v3876 = vand.u32 %v3217, 4294901760
      %3877 = vmatmul.mubr.f32.gmra.mrb[0].mxu0 %v3876
      %v3878 = vpop.f32.mrb[0].mxu0
      %v3879 = vadd.f32 %v3792, %v3878
      %v3880 = vpop.f32.mrb[0].mxu0
      %3881 = vdwg.mxu0
      %3882 = vst [vmem:[#allocation9] sm:$0x3] %v3879
    $region53: #{tpu_custom_call.1} parent=1 // pred_fallthru
      _
    // Predicated region
    $region54: #{tpu_custom_call.1} parent=1 // pred_check
      _
    $region55: #{tpu_custom_call.1} parent=1 // pred_check_branch
      %3884 = sbr.rel (0) target = $region57
    $region56: #{tpu_custom_call.1} parent=1 // pred_region
      %s3886 = ssub.s32 32, 32
      %3887 = vsyncadd [#allocation8], %s3886
      %s3889 = sshll.u32 [#allocation9], 4
      %s3890 = int_to_ptr.vmem [resolvable:$true] %s3889
      %3892 = dma.vmem_to_hbm [thread:$0]  %s3890, 32, %s10, [#allocation8]
    $region57: #{tpu_custom_call.1} parent=1 // pred_fallthru
      _
    // Predicated region
    $region58: #{tpu_custom_call.1} parent=1 // pred_check
      _
    $region59: #{tpu_custom_call.1} parent=1 // pred_check_branch
      %3894 = sbr.rel (0) target = $region61
    $region60: #{tpu_custom_call.1} parent=1 // pred_region
      %3895 = dma.done [#allocation8], 32
    $region61: #{tpu_custom_call.1} parent=1 // pred_fallthru
      _
    %3896 = vsyncpa [#allocation7], 1
    %3897 = vsyncpa [#allocation8], 1

</llo_original>
